<compile_context>
chip_gen: v6e
topology: v6e:2x2x1
jax: 0.10.0
libtpu: 0.0.40
codegen_flags: <defaults>
</compile_context>

<pallas_src>
import jax
import jax.numpy as jnp
from jax.experimental import pallas as pl
from jax.experimental.pallas import tpu as pltpu

# --- module hyperparameters (from the PyTorch spec) --------------------------
VOCAB_SIZE = 10000
EMBEDDING_DIM = 100
HIDDEN_SIZE = 128
NUM_LAYERS = 2
DROPOUT = 0.1          # train-mode only; identity at inference

BATCH = 2
SEQ = 8

E_PAD = 128            # embedding dim zero-padded to a full lane tile
B_PAD = 8              # batch padded to the f32 sublane count


# --- Pallas kernel: fused, wavefront-interleaved 2-layer LSTM -----------------
def _make_text_encoder_kernel(T, B, H):
    def kernel(x_ref, wih0_ref, whh0_ref, b0_ref, w1_hbm_ref, b1_ref,
               y_ref, h_out_ref, c_out_ref, w1_vmem, dma_sem):
        # Prefetch layer-1 stacked weights HBM -> VMEM; overlaps with the
        # hoisted zx0 matmul and the first layer-0 recurrence step.
        w1_copy = pltpu.make_async_copy(w1_hbm_ref, w1_vmem, dma_sem.at[0])
        w1_copy.start()

        # Hoisted layer-0 input projection over all timesteps (one matmul).
        zx0 = jnp.dot(x_ref[...], wih0_ref[...],
                      preferred_element_type=jnp.float32) + b0_ref[...]
        whh0 = whh0_ref[...]
        b1 = b1_ref[...]

        def lstm_cell(gates, c_prev):
            # Gate column order is [i, f, o, g] (set at pack time):
            # one sigmoid over 3H lanes + one tanh over H lanes.
            sg = jax.nn.sigmoid(gates[:, :3 * H])
            i_g = sg[:, 0 * H:1 * H]
            f_g = sg[:, 1 * H:2 * H]
            o_g = sg[:, 2 * H:3 * H]
            g_g = jnp.tanh(gates[:, 3 * H:4 * H])
            c_new = f_g * c_prev + i_g * g_g
            h_new = o_g * jnp.tanh(c_new)
            return h_new, c_new

        zeros = jnp.zeros((B, H), jnp.float32)
        h0, c0 = zeros, zeros
        h1, c1 = zeros, zeros
        hs1 = []
        w1 = None

        # Wavefront: step s computes layer-0 step s and layer-1 step s-1 as
        # two independent chains the scheduler can overlap.
        for s in range(T + 1):                       # static full unroll
            h0_prev = h0
            if s < T:
                gates0 = zx0[s * B:(s + 1) * B, :] + jnp.dot(
                    h0.astype(jnp.bfloat16), whh0,
                    preferred_element_type=jnp.float32)
                h0, c0 = lstm_cell(gates0, c0)
            if s == 1:
                # First layer-1 step is about to run: weight prefetch must be
                # done by now (it had the zx0 matmul + 2 layer-0 steps to land).
                w1_copy.wait()
                w1 = w1_vmem[...]
            if s >= 1:
                # Layer-1 step s-1: single K=2H contraction over [h0 | h1].
                inp = jnp.concatenate([h0_prev, h1],
                                      axis=1).astype(jnp.bfloat16)
                gates1 = jnp.dot(inp, w1,
                                 preferred_element_type=jnp.float32) + b1
                h1, c1 = lstm_cell(gates1, c1)
                hs1.append(h1)

        # TODO(synk): PyTorch applies dropout(p=0.1) between LSTM layers only
        # in train mode; eval/inference semantics (identity) implemented here.

        # Lane-dense slab stores, each written exactly once.
        y_ref[...] = jnp.concatenate(hs1, axis=1)            # (B, T*H)
        h_out_ref[...] = jnp.stack([h0, h1], axis=0)          # (2, B, H)
        c_out_ref[...] = jnp.stack([c0, c1], axis=0)

    return kernel


def _text_encoder_pallas(x_flat, wih0, whh0, b0, w1, b1, *, T):
    """x_flat: (T*B_PAD, E_PAD) time-major bf16 embeddings. Returns y, hN, cN."""
    TB, Ep = x_flat.shape
    H = HIDDEN_SIZE
    B = B_PAD
    kernel = _make_text_encoder_kernel(T, B, H)

    return pl.pallas_call(
        kernel,
        out_shape=(
            jax.ShapeDtypeStruct((B, T * H), jnp.float32),
            jax.ShapeDtypeStruct((NUM_LAYERS, B, H), jnp.float32),
            jax.ShapeDtypeStruct((NUM_LAYERS, B, H), jnp.float32),
        ),
        grid=(1,),
        in_specs=[
            pl.BlockSpec((TB, Ep), lambda i: (0, 0)),
            pl.BlockSpec((Ep, 4 * H), lambda i: (0, 0)),
            pl.BlockSpec((H, 4 * H), lambda i: (0, 0)),
            pl.BlockSpec((1, 4 * H), lambda i: (0, 0)),
            pl.BlockSpec(memory_space=pl.ANY),   # layer-1 stacked weights (HBM)
            pl.BlockSpec((1, 4 * H), lambda i: (0, 0)),
        ],
        out_specs=(
            pl.BlockSpec((B, T * H), lambda i: (0, 0)),
            pl.BlockSpec((NUM_LAYERS, B, H), lambda i: (0, 0, 0)),
            pl.BlockSpec((NUM_LAYERS, B, H), lambda i: (0, 0, 0)),
        ),
        scratch_shapes=[
            pltpu.VMEM((2 * H, 4 * H), jnp.bfloat16),   # layer-1 weight buffer
            pltpu.SemaphoreType.DMA((1,)),              # its DMA semaphore
        ],
        compiler_params=pltpu.CompilerParams(
            dimension_semantics=("arbitrary",)),  # sequential recurrence
    )(x_flat, wih0, whh0, b0, w1, b1)


# --- TextEncoder forward ------------------------------------------------------
def text_encoder_forward(packed, input_ids):
    """input_ids: (B, T) int32. Returns (output (B,T,H), (hidden, cell))."""
    B, T = input_ids.shape
    H = HIDDEN_SIZE
    assert B <= B_PAD  # TODO(synk): for larger B, shard batch across cores
                       # (v7x) instead of padding.

    # Embedding lookup: memory gather, kept as plain-JAX glue.
    emb = jnp.take(packed["embedding"], input_ids, axis=0)     # (B, T, E_PAD)
    x = jnp.transpose(emb, (1, 0, 2))                           # (T, B, E_PAD)
    x = jnp.pad(x, ((0, 0), (0, B_PAD - B), (0, 0)))            # pad to 8 rows
    x_flat = x.reshape(T * B_PAD, E_PAD).astype(jnp.bfloat16)

    y, hN, cN = _text_encoder_pallas(
        x_flat, packed["wih0"], packed["whh0"], packed["b0"],
        packed["w1"], packed["b1"], T=T)

    # (B_PAD, T*H) lane-dense slab -> (B, T, H) batch-first; no transpose copy.
    output = y[:B].reshape(B, T, H)
    return output, (hN[:, :B], cN[:, :B])


text_encoder_forward_jit = jax.jit(text_encoder_forward)


# --- pure-JAX reference (for correctness check) -------------------------------
def _lstm_layer_ref(x_tbe, w_ih, w_hh, b_ih, b_hh, mm_dtype):
    H = w_hh.shape[1]
    w_ih_t = w_ih.T.astype(mm_dtype)
    w_hh_t = w_hh.T.astype(mm_dtype)

    def step(carry, x_t):
        h, c = carry
        gates = (jnp.dot(x_t.astype(mm_dtype), w_ih_t,
                         preferred_element_type=jnp.float32)
                 + jnp.dot(h.astype(mm_dtype), w_hh_t,
                           preferred_element_type=jnp.float32)
                 + b_ih + b_hh)
        i = jax.nn.sigmoid(gates[:, 0 * H:1 * H])
        f = jax.nn.sigmoid(gates[:, 1 * H:2 * H])
        g = jnp.tanh(gates[:, 2 * H:3 * H])
        o = jax.nn.sigmoid(gates[:, 3 * H:4 * H])
        c = f * c + i * g
        h = o * jnp.tanh(c)
        return (h, c), h

    B = x_tbe.shape[1]
    init = (jnp.zeros((B, H), jnp.float32), jnp.zeros((B, H), jnp.float32))
    (hN, cN), ys = jax.lax.scan(step, init, x_tbe)
    return ys, hN, cN


def text_encoder_forward_ref(params, input_ids, mm_dtype=jnp.float32):
    emb = jnp.take(params["embedding"], input_ids, axis=0)
    x = jnp.transpose(emb, (1, 0, 2))
    hs, cs = [], []
    for layer in params["lstm"]:
        x, hN, cN = _lstm_layer_ref(x, layer["w_ih"], layer["w_hh"],
                                    layer["b_ih"], layer["b_hh"], mm_dtype)
        hs.append(hN)
        cs.append(cN)
    return jnp.transpose(x, (1, 0, 2)), (jnp.stack(hs, 0), jnp.stack(cs, 0))


# --- deterministic parameter init + one-time kernel-layout packing ------------
def init_params(key, vocab_size, embedding_dim, hidden_size, num_layers):
    keys = jax.random.split(key, 1 + 4 * num_layers)
    params = {
        "embedding": jax.random.normal(
            keys[0], (vocab_size, embedding_dim), jnp.float32),
        "lstm": [],
    }
    bound = float(1.0 / (hidden_size ** 0.5))
    in_dim = embedding_dim
    for l in range(num_layers):
        kk = keys[1 + 4 * l: 1 + 4 * (l + 1)]
        params["lstm"].append({
            "w_ih": jax.random.uniform(kk[0], (4 * hidden_size, in_dim),
                                       jnp.float32, -bound, bound),
            "w_hh": jax.random.uniform(kk[1], (4 * hidden_size, hidden_size),
                                       jnp.float32, -bound, bound),
            "b_ih": jax.random.uniform(kk[2], (4 * hidden_size,),
                                       jnp.float32, -bound, bound),
            "b_hh": jax.random.uniform(kk[3], (4 * hidden_size,),
                                       jnp.float32, -bound, bound),
        })
        in_dim = hidden_size
    return params


def pack_params(params):
    """One-time relayout to kernel form.

    - Transpose to (in, 4H), permute gate columns to [i, f, o, g].
    - Fuse b_ih + b_hh (same permutation), store as (1, 4H) f32.
    - Zero-pad embedding feature dim and wih0 rows from E=100 to 128.
    - Stack layer-1 weights into (2H, 4H): rows [0:H] multiply h0 (was w_ih),
      rows [H:2H] multiply h1 (was w_hh).
    - Store all matmul weights as bf16 (f32 accumulation in the kernel).
    """
    H = HIDDEN_SIZE
    perm = jnp.concatenate([jnp.arange(0, H), jnp.arange(H, 2 * H),
                            jnp.arange(3 * H, 4 * H), jnp.arange(2 * H, 3 * H)])

    def relayout(w):                       # (4H, in) -> (in, 4H), cols [i,f,o,g]
        return jnp.asarray(w).T[:, perm]

    def fuse_bias(b_ih, b_hh):
        return (b_ih + b_hh)[perm].reshape(1, -1).astype(jnp.float32)

    l0, l1 = params["lstm"]
    emb = params["embedding"]
    E = emb.shape[1]

    wih0 = relayout(l0["w_ih"])                              # (E, 4H)
    wih0 = jnp.pad(wih0, ((0, E_PAD - E), (0, 0)))           # (E_PAD, 4H)

    return {
        "embedding": jnp.pad(emb, ((0, 0), (0, E_PAD - E))),  # (V, E_PAD) f32
        "wih0": wih0.astype(jnp.bfloat16),
        "whh0": relayout(l0["w_hh"]).astype(jnp.bfloat16),
        "b0": fuse_bias(l0["b_ih"], l0["b_hh"]),
        "w1": jnp.concatenate([relayout(l1["w_ih"]),
                               relayout(l1["w_hh"])],
                              axis=0).astype(jnp.bfloat16),   # (2H, 4H)
        "b1": fuse_bias(l1["b_ih"], l1["b_hh"]),
    }


if __name__ == "__main__":
    key = jax.random.PRNGKey(0)
    k_param, k_ids = jax.random.split(key)

    params = init_params(k_param, VOCAB_SIZE, EMBEDDING_DIM, HIDDEN_SIZE,
                         NUM_LAYERS)
    packed = pack_params(params)   # weight relayout done once, outside forward
    input_ids = jax.random.randint(k_ids, (BATCH, SEQ), 0, VOCAB_SIZE,
                                   dtype=jnp.int32)

    output, (hidden, cell) = text_encoder_forward_jit(packed, input_ids)
    jax.block_until_ready((output, hidden, cell))

    assert output.shape == (BATCH, SEQ, HIDDEN_SIZE)
    assert hidden.shape == (NUM_LAYERS, BATCH, HIDDEN_SIZE)
    assert cell.shape == (NUM_LAYERS, BATCH, HIDDEN_SIZE)

    # (1) Tight check vs a reference using the same bf16 matmul operands
    #     (isolates kernel-structure errors from bf16 quantization).
    out_r, (hid_r, cel_r) = text_encoder_forward_ref(params, input_ids,
                                                     mm_dtype=jnp.bfloat16)
    for a, b in ((output, out_r), (hidden, hid_r), (cell, cel_r)):
        if not jnp.allclose(a, b, atol=2e-3, rtol=2e-3):
            raise AssertionError("Pallas LSTM mismatch vs bf16-matmul reference")

    # (2) Coarse check vs the pure-f32 reference (bounds bf16 weight
    #     quantization drift over the recurrence).
    out_f, (hid_f, cel_f) = text_encoder_forward_ref(params, input_ids,
                                                     mm_dtype=jnp.float32)
    for a, b in ((output, out_f), (hidden, hid_f), (cell, cel_f)):
        if not jnp.allclose(a, b, atol=5e-2, rtol=5e-2):
            raise AssertionError("Pallas LSTM drifted too far from f32 reference")

    print("KERNEL_OK")
</pallas_src>

<mosaic_0001>
module attributes {stable_mosaic.version = 11 : i64} {
  func.func @kernel(%arg0: i32, %arg1: memref<64x128xbf16, #tpu.memory_space<vmem>>, %arg2: memref<128x512xbf16, #tpu.memory_space<vmem>>, %arg3: memref<128x512xbf16, #tpu.memory_space<vmem>>, %arg4: memref<1x512xf32, #tpu.memory_space<vmem>>, %arg5: memref<256x512xbf16, #tpu.memory_space<any>>, %arg6: memref<1x512xf32, #tpu.memory_space<vmem>>, %arg7: memref<8x1024xf32, #tpu.memory_space<vmem>>, %arg8: memref<2x8x128xf32, #tpu.memory_space<vmem>>, %arg9: memref<2x8x128xf32, #tpu.memory_space<vmem>>, %arg10: memref<256x512xbf16, #tpu.memory_space<vmem>>, %arg11: memref<1x!tpu.dma_semaphore, #tpu.memory_space<semaphore_mem>>) attributes {dimension_semantics = [#tpu.dimension_semantics<arbitrary>], iteration_bounds = array<i64: 1>, scalar_prefetch = 0 : i64, scratch_operands = 2 : i64, tpu.core_type = #tpu.core_type<tc>, window_params = [{pipeline_mode = #tpu.pipeline_mode<synchronous>, transform_indices = @transform_0, window_bounds = array<i64: 64, 128>}, {pipeline_mode = #tpu.pipeline_mode<synchronous>, transform_indices = @transform_1, window_bounds = array<i64: 128, 512>}, {pipeline_mode = #tpu.pipeline_mode<synchronous>, transform_indices = @transform_2, window_bounds = array<i64: 128, 512>}, {pipeline_mode = #tpu.pipeline_mode<synchronous>, transform_indices = @transform_3, window_bounds = array<i64: 1, 512>}, {}, {pipeline_mode = #tpu.pipeline_mode<synchronous>, transform_indices = @transform_5, window_bounds = array<i64: 1, 512>}, {pipeline_mode = #tpu.pipeline_mode<synchronous>, transform_indices = @transform_6, window_bounds = array<i64: 8, 1024>}, {pipeline_mode = #tpu.pipeline_mode<synchronous>, transform_indices = @transform_7, window_bounds = array<i64: 2, 8, 128>}, {pipeline_mode = #tpu.pipeline_mode<synchronous>, transform_indices = @transform_8, window_bounds = array<i64: 2, 8, 128>}]} {
    %c0_i32 = arith.constant 0 : i32
    %0 = tpu.memref_slice %arg11[%c0_i32] : memref<1x!tpu.dma_semaphore, #tpu.memory_space<semaphore_mem>> -> memref<1x!tpu.dma_semaphore, #tpu.memory_space<semaphore_mem>>
    %1 = tpu.memref_squeeze %0 : memref<1x!tpu.dma_semaphore, #tpu.memory_space<semaphore_mem>> -> memref<!tpu.dma_semaphore, #tpu.memory_space<semaphore_mem>>
    tpu.enqueue_dma source(%arg5 : memref<256x512xbf16, #tpu.memory_space<any>>) target(%arg10 : memref<256x512xbf16, #tpu.memory_space<vmem>>) target_semaphore(%1 : memref<!tpu.dma_semaphore, #tpu.memory_space<semaphore_mem>>)
    %c0 = arith.constant 0 : index
    %c0_0 = arith.constant 0 : index
    %2 = vector.load %arg1[%c0, %c0_0] : memref<64x128xbf16, #tpu.memory_space<vmem>>, vector<64x128xbf16>
    %c0_1 = arith.constant 0 : index
    %c0_2 = arith.constant 0 : index
    %3 = vector.load %arg2[%c0_1, %c0_2] : memref<128x512xbf16, #tpu.memory_space<vmem>>, vector<128x512xbf16>
    %cst = arith.constant dense<0.000000e+00> : vector<64x512xf32>
    %4 = tpu.matmul %2, %3, %cst {dimension_numbers = #tpu.dot_dimension_numbers<[1], [0], [0], [1], [0, 0, 1, 1], [], []>} : vector<64x128xbf16>, vector<128x512xbf16>, vector<64x512xf32> -> vector<64x512xf32>
    %c0_3 = arith.constant 0 : index
    %c0_4 = arith.constant 0 : index
    %5 = vector.load %arg4[%c0_3, %c0_4] : memref<1x512xf32, #tpu.memory_space<vmem>>, vector<1x512xf32>
    %6 = vector.broadcast %5 : vector<1x512xf32> to vector<64x512xf32>
    %7 = arith.addf %4, %6 : vector<64x512xf32>
    %c0_5 = arith.constant 0 : index
    %c0_6 = arith.constant 0 : index
    %8 = vector.load %arg3[%c0_5, %c0_6] : memref<128x512xbf16, #tpu.memory_space<vmem>>, vector<128x512xbf16>
    %c0_7 = arith.constant 0 : index
    %c0_8 = arith.constant 0 : index
    %9 = vector.load %arg6[%c0_7, %c0_8] : memref<1x512xf32, #tpu.memory_space<vmem>>, vector<1x512xf32>
    %cst_9 = arith.constant 0.000000e+00 : f32
    %10 = vector.broadcast %cst_9 : f32 to vector<8x128xf32>
    %11 = vector.extract_strided_slice %7 {offsets = [0, 0], sizes = [8, 512], strides = [1, 1]} : vector<64x512xf32> to vector<8x512xf32>
    %12 = arith.truncf %10 : vector<8x128xf32> to vector<8x128xbf16>
    %cst_10 = arith.constant dense<0.000000e+00> : vector<8x512xf32>
    %13 = tpu.matmul %12, %8, %cst_10 {dimension_numbers = #tpu.dot_dimension_numbers<[1], [0], [0], [1], [0, 0, 1, 1], [], []>} : vector<8x128xbf16>, vector<128x512xbf16>, vector<8x512xf32> -> vector<8x512xf32>
    %14 = arith.addf %11, %13 : vector<8x512xf32>
    %15 = vector.extract_strided_slice %14 {offsets = [0, 0], sizes = [8, 384], strides = [1, 1]} : vector<8x512xf32> to vector<8x384xf32>
    %16 = arith.negf %15 : vector<8x384xf32>
    %17 = math.exp %16 : vector<8x384xf32>
    %cst_11 = arith.constant 1.000000e+00 : f32
    %18 = vector.broadcast %cst_11 : f32 to vector<8x384xf32>
    %19 = arith.addf %18, %17 : vector<8x384xf32>
    %20 = arith.divf %18, %19 : vector<8x384xf32>
    %21 = vector.extract_strided_slice %20 {offsets = [0, 0], sizes = [8, 128], strides = [1, 1]} : vector<8x384xf32> to vector<8x128xf32>
    %22 = vector.extract_strided_slice %20 {offsets = [0, 128], sizes = [8, 128], strides = [1, 1]} : vector<8x384xf32> to vector<8x128xf32>
    %23 = vector.extract_strided_slice %20 {offsets = [0, 256], sizes = [8, 128], strides = [1, 1]} : vector<8x384xf32> to vector<8x128xf32>
    %24 = vector.extract_strided_slice %14 {offsets = [0, 384], sizes = [8, 128], strides = [1, 1]} : vector<8x512xf32> to vector<8x128xf32>
    %25 = math.tanh %24 : vector<8x128xf32>
    %26 = arith.mulf %22, %10 : vector<8x128xf32>
    %27 = arith.mulf %21, %25 : vector<8x128xf32>
    %28 = arith.addf %26, %27 : vector<8x128xf32>
    %29 = math.tanh %28 : vector<8x128xf32>
    %30 = arith.mulf %23, %29 : vector<8x128xf32>
    %31 = vector.extract_strided_slice %7 {offsets = [8, 0], sizes = [8, 512], strides = [1, 1]} : vector<64x512xf32> to vector<8x512xf32>
    %32 = arith.truncf %30 : vector<8x128xf32> to vector<8x128xbf16>
    %cst_12 = arith.constant dense<0.000000e+00> : vector<8x512xf32>
    %33 = tpu.matmul %32, %8, %cst_12 {dimension_numbers = #tpu.dot_dimension_numbers<[1], [0], [0], [1], [0, 0, 1, 1], [], []>} : vector<8x128xbf16>, vector<128x512xbf16>, vector<8x512xf32> -> vector<8x512xf32>
    %34 = arith.addf %31, %33 : vector<8x512xf32>
    %35 = vector.extract_strided_slice %34 {offsets = [0, 0], sizes = [8, 384], strides = [1, 1]} : vector<8x512xf32> to vector<8x384xf32>
    %36 = arith.negf %35 : vector<8x384xf32>
    %37 = math.exp %36 : vector<8x384xf32>
    %cst_13 = arith.constant 1.000000e+00 : f32
    %38 = vector.broadcast %cst_13 : f32 to vector<8x384xf32>
    %39 = arith.addf %38, %37 : vector<8x384xf32>
    %40 = arith.divf %38, %39 : vector<8x384xf32>
    %41 = vector.extract_strided_slice %40 {offsets = [0, 0], sizes = [8, 128], strides = [1, 1]} : vector<8x384xf32> to vector<8x128xf32>
    %42 = vector.extract_strided_slice %40 {offsets = [0, 128], sizes = [8, 128], strides = [1, 1]} : vector<8x384xf32> to vector<8x128xf32>
    %43 = vector.extract_strided_slice %40 {offsets = [0, 256], sizes = [8, 128], strides = [1, 1]} : vector<8x384xf32> to vector<8x128xf32>
    %44 = vector.extract_strided_slice %34 {offsets = [0, 384], sizes = [8, 128], strides = [1, 1]} : vector<8x512xf32> to vector<8x128xf32>
    %45 = math.tanh %44 : vector<8x128xf32>
    %46 = arith.mulf %42, %28 : vector<8x128xf32>
    %47 = arith.mulf %41, %45 : vector<8x128xf32>
    %48 = arith.addf %46, %47 : vector<8x128xf32>
    %49 = math.tanh %48 : vector<8x128xf32>
    %50 = arith.mulf %43, %49 : vector<8x128xf32>
    %c0_i32_14 = arith.constant 0 : i32
    %51 = tpu.memref_slice %arg11[%c0_i32_14] : memref<1x!tpu.dma_semaphore, #tpu.memory_space<semaphore_mem>> -> memref<1x!tpu.dma_semaphore, #tpu.memory_space<semaphore_mem>>
    %52 = tpu.memref_squeeze %51 : memref<1x!tpu.dma_semaphore, #tpu.memory_space<semaphore_mem>> -> memref<!tpu.dma_semaphore, #tpu.memory_space<semaphore_mem>>
    tpu.wait_dma2 semaphore(%52 : memref<!tpu.dma_semaphore, #tpu.memory_space<semaphore_mem>>) src(%arg5 : memref<256x512xbf16, #tpu.memory_space<any>>) dst(%arg10 : memref<256x512xbf16, #tpu.memory_space<vmem>>)
    %c0_15 = arith.constant 0 : index
    %c0_16 = arith.constant 0 : index
    %53 = vector.load %arg10[%c0_15, %c0_16] : memref<256x512xbf16, #tpu.memory_space<vmem>>, vector<256x512xbf16>
    %54 = tpu.concatenate %30, %10 in 1 : vector<8x128xf32>, vector<8x128xf32> -> vector<8x256xf32>
    %55 = arith.truncf %54 : vector<8x256xf32> to vector<8x256xbf16>
    %cst_17 = arith.constant dense<0.000000e+00> : vector<8x512xf32>
    %56 = tpu.matmul %55, %53, %cst_17 {dimension_numbers = #tpu.dot_dimension_numbers<[1], [0], [0], [1], [0, 0, 1, 1], [], []>} : vector<8x256xbf16>, vector<256x512xbf16>, vector<8x512xf32> -> vector<8x512xf32>
    %57 = vector.broadcast %9 : vector<1x512xf32> to vector<8x512xf32>
    %58 = arith.addf %56, %57 : vector<8x512xf32>
    %59 = vector.extract_strided_slice %58 {offsets = [0, 0], sizes = [8, 384], strides = [1, 1]} : vector<8x512xf32> to vector<8x384xf32>
    %60 = arith.negf %59 : vector<8x384xf32>
    %61 = math.exp %60 : vector<8x384xf32>
    %cst_18 = arith.constant 1.000000e+00 : f32
    %62 = vector.broadcast %cst_18 : f32 to vector<8x384xf32>
    %63 = arith.addf %62, %61 : vector<8x384xf32>
    %64 = arith.divf %62, %63 : vector<8x384xf32>
    %65 = vector.extract_strided_slice %64 {offsets = [0, 0], sizes = [8, 128], strides = [1, 1]} : vector<8x384xf32> to vector<8x128xf32>
    %66 = vector.extract_strided_slice %64 {offsets = [0, 128], sizes = [8, 128], strides = [1, 1]} : vector<8x384xf32> to vector<8x128xf32>
    %67 = vector.extract_strided_slice %64 {offsets = [0, 256], sizes = [8, 128], strides = [1, 1]} : vector<8x384xf32> to vector<8x128xf32>
    %68 = vector.extract_strided_slice %58 {offsets = [0, 384], sizes = [8, 128], strides = [1, 1]} : vector<8x512xf32> to vector<8x128xf32>
    %69 = math.tanh %68 : vector<8x128xf32>
    %70 = arith.mulf %66, %10 : vector<8x128xf32>
    %71 = arith.mulf %65, %69 : vector<8x128xf32>
    %72 = arith.addf %70, %71 : vector<8x128xf32>
    %73 = math.tanh %72 : vector<8x128xf32>
    %74 = arith.mulf %67, %73 : vector<8x128xf32>
    %75 = vector.extract_strided_slice %7 {offsets = [16, 0], sizes = [8, 512], strides = [1, 1]} : vector<64x512xf32> to vector<8x512xf32>
    %76 = arith.truncf %50 : vector<8x128xf32> to vector<8x128xbf16>
    %cst_19 = arith.constant dense<0.000000e+00> : vector<8x512xf32>
    %77 = tpu.matmul %76, %8, %cst_19 {dimension_numbers = #tpu.dot_dimension_numbers<[1], [0], [0], [1], [0, 0, 1, 1], [], []>} : vector<8x128xbf16>, vector<128x512xbf16>, vector<8x512xf32> -> vector<8x512xf32>
    %78 = arith.addf %75, %77 : vector<8x512xf32>
    %79 = vector.extract_strided_slice %78 {offsets = [0, 0], sizes = [8, 384], strides = [1, 1]} : vector<8x512xf32> to vector<8x384xf32>
    %80 = arith.negf %79 : vector<8x384xf32>
    %81 = math.exp %80 : vector<8x384xf32>
    %cst_20 = arith.constant 1.000000e+00 : f32
    %82 = vector.broadcast %cst_20 : f32 to vector<8x384xf32>
    %83 = arith.addf %82, %81 : vector<8x384xf32>
    %84 = arith.divf %82, %83 : vector<8x384xf32>
    %85 = vector.extract_strided_slice %84 {offsets = [0, 0], sizes = [8, 128], strides = [1, 1]} : vector<8x384xf32> to vector<8x128xf32>
    %86 = vector.extract_strided_slice %84 {offsets = [0, 128], sizes = [8, 128], strides = [1, 1]} : vector<8x384xf32> to vector<8x128xf32>
    %87 = vector.extract_strided_slice %84 {offsets = [0, 256], sizes = [8, 128], strides = [1, 1]} : vector<8x384xf32> to vector<8x128xf32>
    %88 = vector.extract_strided_slice %78 {offsets = [0, 384], sizes = [8, 128], strides = [1, 1]} : vector<8x512xf32> to vector<8x128xf32>
    %89 = math.tanh %88 : vector<8x128xf32>
    %90 = arith.mulf %86, %48 : vector<8x128xf32>
    %91 = arith.mulf %85, %89 : vector<8x128xf32>
    %92 = arith.addf %90, %91 : vector<8x128xf32>
    %93 = math.tanh %92 : vector<8x128xf32>
    %94 = arith.mulf %87, %93 : vector<8x128xf32>
    %95 = tpu.concatenate %50, %74 in 1 : vector<8x128xf32>, vector<8x128xf32> -> vector<8x256xf32>
    %96 = arith.truncf %95 : vector<8x256xf32> to vector<8x256xbf16>
    %cst_21 = arith.constant dense<0.000000e+00> : vector<8x512xf32>
    %97 = tpu.matmul %96, %53, %cst_21 {dimension_numbers = #tpu.dot_dimension_numbers<[1], [0], [0], [1], [0, 0, 1, 1], [], []>} : vector<8x256xbf16>, vector<256x512xbf16>, vector<8x512xf32> -> vector<8x512xf32>
    %98 = vector.broadcast %9 : vector<1x512xf32> to vector<8x512xf32>
    %99 = arith.addf %97, %98 : vector<8x512xf32>
    %100 = vector.extract_strided_slice %99 {offsets = [0, 0], sizes = [8, 384], strides = [1, 1]} : vector<8x512xf32> to vector<8x384xf32>
    %101 = arith.negf %100 : vector<8x384xf32>
    %102 = math.exp %101 : vector<8x384xf32>
    %cst_22 = arith.constant 1.000000e+00 : f32
    %103 = vector.broadcast %cst_22 : f32 to vector<8x384xf32>
    %104 = arith.addf %103, %102 : vector<8x384xf32>
    %105 = arith.divf %103, %104 : vector<8x384xf32>
    %106 = vector.extract_strided_slice %105 {offsets = [0, 0], sizes = [8, 128], strides = [1, 1]} : vector<8x384xf32> to vector<8x128xf32>
    %107 = vector.extract_strided_slice %105 {offsets = [0, 128], sizes = [8, 128], strides = [1, 1]} : vector<8x384xf32> to vector<8x128xf32>
    %108 = vector.extract_strided_slice %105 {offsets = [0, 256], sizes = [8, 128], strides = [1, 1]} : vector<8x384xf32> to vector<8x128xf32>
    %109 = vector.extract_strided_slice %99 {offsets = [0, 384], sizes = [8, 128], strides = [1, 1]} : vector<8x512xf32> to vector<8x128xf32>
    %110 = math.tanh %109 : vector<8x128xf32>
    %111 = arith.mulf %107, %72 : vector<8x128xf32>
    %112 = arith.mulf %106, %110 : vector<8x128xf32>
    %113 = arith.addf %111, %112 : vector<8x128xf32>
    %114 = math.tanh %113 : vector<8x128xf32>
    %115 = arith.mulf %108, %114 : vector<8x128xf32>
    %116 = vector.extract_strided_slice %7 {offsets = [24, 0], sizes = [8, 512], strides = [1, 1]} : vector<64x512xf32> to vector<8x512xf32>
    %117 = arith.truncf %94 : vector<8x128xf32> to vector<8x128xbf16>
    %cst_23 = arith.constant dense<0.000000e+00> : vector<8x512xf32>
    %118 = tpu.matmul %117, %8, %cst_23 {dimension_numbers = #tpu.dot_dimension_numbers<[1], [0], [0], [1], [0, 0, 1, 1], [], []>} : vector<8x128xbf16>, vector<128x512xbf16>, vector<8x512xf32> -> vector<8x512xf32>
    %119 = arith.addf %116, %118 : vector<8x512xf32>
    %120 = vector.extract_strided_slice %119 {offsets = [0, 0], sizes = [8, 384], strides = [1, 1]} : vector<8x512xf32> to vector<8x384xf32>
    %121 = arith.negf %120 : vector<8x384xf32>
    %122 = math.exp %121 : vector<8x384xf32>
    %cst_24 = arith.constant 1.000000e+00 : f32
    %123 = vector.broadcast %cst_24 : f32 to vector<8x384xf32>
    %124 = arith.addf %123, %122 : vector<8x384xf32>
    %125 = arith.divf %123, %124 : vector<8x384xf32>
    %126 = vector.extract_strided_slice %125 {offsets = [0, 0], sizes = [8, 128], strides = [1, 1]} : vector<8x384xf32> to vector<8x128xf32>
    %127 = vector.extract_strided_slice %125 {offsets = [0, 128], sizes = [8, 128], strides = [1, 1]} : vector<8x384xf32> to vector<8x128xf32>
    %128 = vector.extract_strided_slice %125 {offsets = [0, 256], sizes = [8, 128], strides = [1, 1]} : vector<8x384xf32> to vector<8x128xf32>
    %129 = vector.extract_strided_slice %119 {offsets = [0, 384], sizes = [8, 128], strides = [1, 1]} : vector<8x512xf32> to vector<8x128xf32>
    %130 = math.tanh %129 : vector<8x128xf32>
    %131 = arith.mulf %127, %92 : vector<8x128xf32>
    %132 = arith.mulf %126, %130 : vector<8x128xf32>
    %133 = arith.addf %131, %132 : vector<8x128xf32>
    %134 = math.tanh %133 : vector<8x128xf32>
    %135 = arith.mulf %128, %134 : vector<8x128xf32>
    %136 = tpu.concatenate %94, %115 in 1 : vector<8x128xf32>, vector<8x128xf32> -> vector<8x256xf32>
    %137 = arith.truncf %136 : vector<8x256xf32> to vector<8x256xbf16>
    %cst_25 = arith.constant dense<0.000000e+00> : vector<8x512xf32>
    %138 = tpu.matmul %137, %53, %cst_25 {dimension_numbers = #tpu.dot_dimension_numbers<[1], [0], [0], [1], [0, 0, 1, 1], [], []>} : vector<8x256xbf16>, vector<256x512xbf16>, vector<8x512xf32> -> vector<8x512xf32>
    %139 = vector.broadcast %9 : vector<1x512xf32> to vector<8x512xf32>
    %140 = arith.addf %138, %139 : vector<8x512xf32>
    %141 = vector.extract_strided_slice %140 {offsets = [0, 0], sizes = [8, 384], strides = [1, 1]} : vector<8x512xf32> to vector<8x384xf32>
    %142 = arith.negf %141 : vector<8x384xf32>
    %143 = math.exp %142 : vector<8x384xf32>
    %cst_26 = arith.constant 1.000000e+00 : f32
    %144 = vector.broadcast %cst_26 : f32 to vector<8x384xf32>
    %145 = arith.addf %144, %143 : vector<8x384xf32>
    %146 = arith.divf %144, %145 : vector<8x384xf32>
    %147 = vector.extract_strided_slice %146 {offsets = [0, 0], sizes = [8, 128], strides = [1, 1]} : vector<8x384xf32> to vector<8x128xf32>
    %148 = vector.extract_strided_slice %146 {offsets = [0, 128], sizes = [8, 128], strides = [1, 1]} : vector<8x384xf32> to vector<8x128xf32>
    %149 = vector.extract_strided_slice %146 {offsets = [0, 256], sizes = [8, 128], strides = [1, 1]} : vector<8x384xf32> to vector<8x128xf32>
    %150 = vector.extract_strided_slice %140 {offsets = [0, 384], sizes = [8, 128], strides = [1, 1]} : vector<8x512xf32> to vector<8x128xf32>
    %151 = math.tanh %150 : vector<8x128xf32>
    %152 = arith.mulf %148, %113 : vector<8x128xf32>
    %153 = arith.mulf %147, %151 : vector<8x128xf32>
    %154 = arith.addf %152, %153 : vector<8x128xf32>
    %155 = math.tanh %154 : vector<8x128xf32>
    %156 = arith.mulf %149, %155 : vector<8x128xf32>
    %157 = vector.extract_strided_slice %7 {offsets = [32, 0], sizes = [8, 512], strides = [1, 1]} : vector<64x512xf32> to vector<8x512xf32>
    %158 = arith.truncf %135 : vector<8x128xf32> to vector<8x128xbf16>
    %cst_27 = arith.constant dense<0.000000e+00> : vector<8x512xf32>
    %159 = tpu.matmul %158, %8, %cst_27 {dimension_numbers = #tpu.dot_dimension_numbers<[1], [0], [0], [1], [0, 0, 1, 1], [], []>} : vector<8x128xbf16>, vector<128x512xbf16>, vector<8x512xf32> -> vector<8x512xf32>
    %160 = arith.addf %157, %159 : vector<8x512xf32>
    %161 = vector.extract_strided_slice %160 {offsets = [0, 0], sizes = [8, 384], strides = [1, 1]} : vector<8x512xf32> to vector<8x384xf32>
    %162 = arith.negf %161 : vector<8x384xf32>
    %163 = math.exp %162 : vector<8x384xf32>
    %cst_28 = arith.constant 1.000000e+00 : f32
    %164 = vector.broadcast %cst_28 : f32 to vector<8x384xf32>
    %165 = arith.addf %164, %163 : vector<8x384xf32>
    %166 = arith.divf %164, %165 : vector<8x384xf32>
    %167 = vector.extract_strided_slice %166 {offsets = [0, 0], sizes = [8, 128], strides = [1, 1]} : vector<8x384xf32> to vector<8x128xf32>
    %168 = vector.extract_strided_slice %166 {offsets = [0, 128], sizes = [8, 128], strides = [1, 1]} : vector<8x384xf32> to vector<8x128xf32>
    %169 = vector.extract_strided_slice %166 {offsets = [0, 256], sizes = [8, 128], strides = [1, 1]} : vector<8x384xf32> to vector<8x128xf32>
    %170 = vector.extract_strided_slice %160 {offsets = [0, 384], sizes = [8, 128], strides = [1, 1]} : vector<8x512xf32> to vector<8x128xf32>
    %171 = math.tanh %170 : vector<8x128xf32>
    %172 = arith.mulf %168, %133 : vector<8x128xf32>
    %173 = arith.mulf %167, %171 : vector<8x128xf32>
    %174 = arith.addf %172, %173 : vector<8x128xf32>
    %175 = math.tanh %174 : vector<8x128xf32>
    %176 = arith.mulf %169, %175 : vector<8x128xf32>
    %177 = tpu.concatenate %135, %156 in 1 : vector<8x128xf32>, vector<8x128xf32> -> vector<8x256xf32>
    %178 = arith.truncf %177 : vector<8x256xf32> to vector<8x256xbf16>
    %cst_29 = arith.constant dense<0.000000e+00> : vector<8x512xf32>
    %179 = tpu.matmul %178, %53, %cst_29 {dimension_numbers = #tpu.dot_dimension_numbers<[1], [0], [0], [1], [0, 0, 1, 1], [], []>} : vector<8x256xbf16>, vector<256x512xbf16>, vector<8x512xf32> -> vector<8x512xf32>
    %180 = vector.broadcast %9 : vector<1x512xf32> to vector<8x512xf32>
    %181 = arith.addf %179, %180 : vector<8x512xf32>
    %182 = vector.extract_strided_slice %181 {offsets = [0, 0], sizes = [8, 384], strides = [1, 1]} : vector<8x512xf32> to vector<8x384xf32>
    %183 = arith.negf %182 : vector<8x384xf32>
    %184 = math.exp %183 : vector<8x384xf32>
    %cst_30 = arith.constant 1.000000e+00 : f32
    %185 = vector.broadcast %cst_30 : f32 to vector<8x384xf32>
    %186 = arith.addf %185, %184 : vector<8x384xf32>
    %187 = arith.divf %185, %186 : vector<8x384xf32>
    %188 = vector.extract_strided_slice %187 {offsets = [0, 0], sizes = [8, 128], strides = [1, 1]} : vector<8x384xf32> to vector<8x128xf32>
    %189 = vector.extract_strided_slice %187 {offsets = [0, 128], sizes = [8, 128], strides = [1, 1]} : vector<8x384xf32> to vector<8x128xf32>
    %190 = vector.extract_strided_slice %187 {offsets = [0, 256], sizes = [8, 128], strides = [1, 1]} : vector<8x384xf32> to vector<8x128xf32>
    %191 = vector.extract_strided_slice %181 {offsets = [0, 384], sizes = [8, 128], strides = [1, 1]} : vector<8x512xf32> to vector<8x128xf32>
    %192 = math.tanh %191 : vector<8x128xf32>
    %193 = arith.mulf %189, %154 : vector<8x128xf32>
    %194 = arith.mulf %188, %192 : vector<8x128xf32>
    %195 = arith.addf %193, %194 : vector<8x128xf32>
    %196 = math.tanh %195 : vector<8x128xf32>
    %197 = arith.mulf %190, %196 : vector<8x128xf32>
    %198 = vector.extract_strided_slice %7 {offsets = [40, 0], sizes = [8, 512], strides = [1, 1]} : vector<64x512xf32> to vector<8x512xf32>
    %199 = arith.truncf %176 : vector<8x128xf32> to vector<8x128xbf16>
    %cst_31 = arith.constant dense<0.000000e+00> : vector<8x512xf32>
    %200 = tpu.matmul %199, %8, %cst_31 {dimension_numbers = #tpu.dot_dimension_numbers<[1], [0], [0], [1], [0, 0, 1, 1], [], []>} : vector<8x128xbf16>, vector<128x512xbf16>, vector<8x512xf32> -> vector<8x512xf32>
    %201 = arith.addf %198, %200 : vector<8x512xf32>
    %202 = vector.extract_strided_slice %201 {offsets = [0, 0], sizes = [8, 384], strides = [1, 1]} : vector<8x512xf32> to vector<8x384xf32>
    %203 = arith.negf %202 : vector<8x384xf32>
    %204 = math.exp %203 : vector<8x384xf32>
    %cst_32 = arith.constant 1.000000e+00 : f32
    %205 = vector.broadcast %cst_32 : f32 to vector<8x384xf32>
    %206 = arith.addf %205, %204 : vector<8x384xf32>
    %207 = arith.divf %205, %206 : vector<8x384xf32>
    %208 = vector.extract_strided_slice %207 {offsets = [0, 0], sizes = [8, 128], strides = [1, 1]} : vector<8x384xf32> to vector<8x128xf32>
    %209 = vector.extract_strided_slice %207 {offsets = [0, 128], sizes = [8, 128], strides = [1, 1]} : vector<8x384xf32> to vector<8x128xf32>
    %210 = vector.extract_strided_slice %207 {offsets = [0, 256], sizes = [8, 128], strides = [1, 1]} : vector<8x384xf32> to vector<8x128xf32>
    %211 = vector.extract_strided_slice %201 {offsets = [0, 384], sizes = [8, 128], strides = [1, 1]} : vector<8x512xf32> to vector<8x128xf32>
    %212 = math.tanh %211 : vector<8x128xf32>
    %213 = arith.mulf %209, %174 : vector<8x128xf32>
    %214 = arith.mulf %208, %212 : vector<8x128xf32>
    %215 = arith.addf %213, %214 : vector<8x128xf32>
    %216 = math.tanh %215 : vector<8x128xf32>
    %217 = arith.mulf %210, %216 : vector<8x128xf32>
    %218 = tpu.concatenate %176, %197 in 1 : vector<8x128xf32>, vector<8x128xf32> -> vector<8x256xf32>
    %219 = arith.truncf %218 : vector<8x256xf32> to vector<8x256xbf16>
    %cst_33 = arith.constant dense<0.000000e+00> : vector<8x512xf32>
    %220 = tpu.matmul %219, %53, %cst_33 {dimension_numbers = #tpu.dot_dimension_numbers<[1], [0], [0], [1], [0, 0, 1, 1], [], []>} : vector<8x256xbf16>, vector<256x512xbf16>, vector<8x512xf32> -> vector<8x512xf32>
    %221 = vector.broadcast %9 : vector<1x512xf32> to vector<8x512xf32>
    %222 = arith.addf %220, %221 : vector<8x512xf32>
    %223 = vector.extract_strided_slice %222 {offsets = [0, 0], sizes = [8, 384], strides = [1, 1]} : vector<8x512xf32> to vector<8x384xf32>
    %224 = arith.negf %223 : vector<8x384xf32>
    %225 = math.exp %224 : vector<8x384xf32>
    %cst_34 = arith.constant 1.000000e+00 : f32
    %226 = vector.broadcast %cst_34 : f32 to vector<8x384xf32>
    %227 = arith.addf %226, %225 : vector<8x384xf32>
    %228 = arith.divf %226, %227 : vector<8x384xf32>
    %229 = vector.extract_strided_slice %228 {offsets = [0, 0], sizes = [8, 128], strides = [1, 1]} : vector<8x384xf32> to vector<8x128xf32>
    %230 = vector.extract_strided_slice %228 {offsets = [0, 128], sizes = [8, 128], strides = [1, 1]} : vector<8x384xf32> to vector<8x128xf32>
    %231 = vector.extract_strided_slice %228 {offsets = [0, 256], sizes = [8, 128], strides = [1, 1]} : vector<8x384xf32> to vector<8x128xf32>
    %232 = vector.extract_strided_slice %222 {offsets = [0, 384], sizes = [8, 128], strides = [1, 1]} : vector<8x512xf32> to vector<8x128xf32>
    %233 = math.tanh %232 : vector<8x128xf32>
    %234 = arith.mulf %230, %195 : vector<8x128xf32>
    %235 = arith.mulf %229, %233 : vector<8x128xf32>
    %236 = arith.addf %234, %235 : vector<8x128xf32>
    %237 = math.tanh %236 : vector<8x128xf32>
    %238 = arith.mulf %231, %237 : vector<8x128xf32>
    %239 = vector.extract_strided_slice %7 {offsets = [48, 0], sizes = [8, 512], strides = [1, 1]} : vector<64x512xf32> to vector<8x512xf32>
    %240 = arith.truncf %217 : vector<8x128xf32> to vector<8x128xbf16>
    %cst_35 = arith.constant dense<0.000000e+00> : vector<8x512xf32>
    %241 = tpu.matmul %240, %8, %cst_35 {dimension_numbers = #tpu.dot_dimension_numbers<[1], [0], [0], [1], [0, 0, 1, 1], [], []>} : vector<8x128xbf16>, vector<128x512xbf16>, vector<8x512xf32> -> vector<8x512xf32>
    %242 = arith.addf %239, %241 : vector<8x512xf32>
    %243 = vector.extract_strided_slice %242 {offsets = [0, 0], sizes = [8, 384], strides = [1, 1]} : vector<8x512xf32> to vector<8x384xf32>
    %244 = arith.negf %243 : vector<8x384xf32>
    %245 = math.exp %244 : vector<8x384xf32>
    %cst_36 = arith.constant 1.000000e+00 : f32
    %246 = vector.broadcast %cst_36 : f32 to vector<8x384xf32>
    %247 = arith.addf %246, %245 : vector<8x384xf32>
    %248 = arith.divf %246, %247 : vector<8x384xf32>
    %249 = vector.extract_strided_slice %248 {offsets = [0, 0], sizes = [8, 128], strides = [1, 1]} : vector<8x384xf32> to vector<8x128xf32>
    %250 = vector.extract_strided_slice %248 {offsets = [0, 128], sizes = [8, 128], strides = [1, 1]} : vector<8x384xf32> to vector<8x128xf32>
    %251 = vector.extract_strided_slice %248 {offsets = [0, 256], sizes = [8, 128], strides = [1, 1]} : vector<8x384xf32> to vector<8x128xf32>
    %252 = vector.extract_strided_slice %242 {offsets = [0, 384], sizes = [8, 128], strides = [1, 1]} : vector<8x512xf32> to vector<8x128xf32>
    %253 = math.tanh %252 : vector<8x128xf32>
    %254 = arith.mulf %250, %215 : vector<8x128xf32>
    %255 = arith.mulf %249, %253 : vector<8x128xf32>
    %256 = arith.addf %254, %255 : vector<8x128xf32>
    %257 = math.tanh %256 : vector<8x128xf32>
    %258 = arith.mulf %251, %257 : vector<8x128xf32>
    %259 = tpu.concatenate %217, %238 in 1 : vector<8x128xf32>, vector<8x128xf32> -> vector<8x256xf32>
    %260 = arith.truncf %259 : vector<8x256xf32> to vector<8x256xbf16>
    %cst_37 = arith.constant dense<0.000000e+00> : vector<8x512xf32>
    %261 = tpu.matmul %260, %53, %cst_37 {dimension_numbers = #tpu.dot_dimension_numbers<[1], [0], [0], [1], [0, 0, 1, 1], [], []>} : vector<8x256xbf16>, vector<256x512xbf16>, vector<8x512xf32> -> vector<8x512xf32>
    %262 = vector.broadcast %9 : vector<1x512xf32> to vector<8x512xf32>
    %263 = arith.addf %261, %262 : vector<8x512xf32>
    %264 = vector.extract_strided_slice %263 {offsets = [0, 0], sizes = [8, 384], strides = [1, 1]} : vector<8x512xf32> to vector<8x384xf32>
    %265 = arith.negf %264 : vector<8x384xf32>
    %266 = math.exp %265 : vector<8x384xf32>
    %cst_38 = arith.constant 1.000000e+00 : f32
    %267 = vector.broadcast %cst_38 : f32 to vector<8x384xf32>
    %268 = arith.addf %267, %266 : vector<8x384xf32>
    %269 = arith.divf %267, %268 : vector<8x384xf32>
    %270 = vector.extract_strided_slice %269 {offsets = [0, 0], sizes = [8, 128], strides = [1, 1]} : vector<8x384xf32> to vector<8x128xf32>
    %271 = vector.extract_strided_slice %269 {offsets = [0, 128], sizes = [8, 128], strides = [1, 1]} : vector<8x384xf32> to vector<8x128xf32>
    %272 = vector.extract_strided_slice %269 {offsets = [0, 256], sizes = [8, 128], strides = [1, 1]} : vector<8x384xf32> to vector<8x128xf32>
    %273 = vector.extract_strided_slice %263 {offsets = [0, 384], sizes = [8, 128], strides = [1, 1]} : vector<8x512xf32> to vector<8x128xf32>
    %274 = math.tanh %273 : vector<8x128xf32>
    %275 = arith.mulf %271, %236 : vector<8x128xf32>
    %276 = arith.mulf %270, %274 : vector<8x128xf32>
    %277 = arith.addf %275, %276 : vector<8x128xf32>
    %278 = math.tanh %277 : vector<8x128xf32>
    %279 = arith.mulf %272, %278 : vector<8x128xf32>
    %280 = vector.extract_strided_slice %7 {offsets = [56, 0], sizes = [8, 512], strides = [1, 1]} : vector<64x512xf32> to vector<8x512xf32>
    %281 = arith.truncf %258 : vector<8x128xf32> to vector<8x128xbf16>
    %cst_39 = arith.constant dense<0.000000e+00> : vector<8x512xf32>
    %282 = tpu.matmul %281, %8, %cst_39 {dimension_numbers = #tpu.dot_dimension_numbers<[1], [0], [0], [1], [0, 0, 1, 1], [], []>} : vector<8x128xbf16>, vector<128x512xbf16>, vector<8x512xf32> -> vector<8x512xf32>
    %283 = arith.addf %280, %282 : vector<8x512xf32>
    %284 = vector.extract_strided_slice %283 {offsets = [0, 0], sizes = [8, 384], strides = [1, 1]} : vector<8x512xf32> to vector<8x384xf32>
    %285 = arith.negf %284 : vector<8x384xf32>
    %286 = math.exp %285 : vector<8x384xf32>
    %cst_40 = arith.constant 1.000000e+00 : f32
    %287 = vector.broadcast %cst_40 : f32 to vector<8x384xf32>
    %288 = arith.addf %287, %286 : vector<8x384xf32>
    %289 = arith.divf %287, %288 : vector<8x384xf32>
    %290 = vector.extract_strided_slice %289 {offsets = [0, 0], sizes = [8, 128], strides = [1, 1]} : vector<8x384xf32> to vector<8x128xf32>
    %291 = vector.extract_strided_slice %289 {offsets = [0, 128], sizes = [8, 128], strides = [1, 1]} : vector<8x384xf32> to vector<8x128xf32>
    %292 = vector.extract_strided_slice %289 {offsets = [0, 256], sizes = [8, 128], strides = [1, 1]} : vector<8x384xf32> to vector<8x128xf32>
    %293 = vector.extract_strided_slice %283 {offsets = [0, 384], sizes = [8, 128], strides = [1, 1]} : vector<8x512xf32> to vector<8x128xf32>
    %294 = math.tanh %293 : vector<8x128xf32>
    %295 = arith.mulf %291, %256 : vector<8x128xf32>
    %296 = arith.mulf %290, %294 : vector<8x128xf32>
    %297 = arith.addf %295, %296 : vector<8x128xf32>
    %298 = math.tanh %297 : vector<8x128xf32>
    %299 = arith.mulf %292, %298 : vector<8x128xf32>
    %300 = tpu.concatenate %258, %279 in 1 : vector<8x128xf32>, vector<8x128xf32> -> vector<8x256xf32>
    %301 = arith.truncf %300 : vector<8x256xf32> to vector<8x256xbf16>
    %cst_41 = arith.constant dense<0.000000e+00> : vector<8x512xf32>
    %302 = tpu.matmul %301, %53, %cst_41 {dimension_numbers = #tpu.dot_dimension_numbers<[1], [0], [0], [1], [0, 0, 1, 1], [], []>} : vector<8x256xbf16>, vector<256x512xbf16>, vector<8x512xf32> -> vector<8x512xf32>
    %303 = vector.broadcast %9 : vector<1x512xf32> to vector<8x512xf32>
    %304 = arith.addf %302, %303 : vector<8x512xf32>
    %305 = vector.extract_strided_slice %304 {offsets = [0, 0], sizes = [8, 384], strides = [1, 1]} : vector<8x512xf32> to vector<8x384xf32>
    %306 = arith.negf %305 : vector<8x384xf32>
    %307 = math.exp %306 : vector<8x384xf32>
    %cst_42 = arith.constant 1.000000e+00 : f32
    %308 = vector.broadcast %cst_42 : f32 to vector<8x384xf32>
    %309 = arith.addf %308, %307 : vector<8x384xf32>
    %310 = arith.divf %308, %309 : vector<8x384xf32>
    %311 = vector.extract_strided_slice %310 {offsets = [0, 0], sizes = [8, 128], strides = [1, 1]} : vector<8x384xf32> to vector<8x128xf32>
    %312 = vector.extract_strided_slice %310 {offsets = [0, 128], sizes = [8, 128], strides = [1, 1]} : vector<8x384xf32> to vector<8x128xf32>
    %313 = vector.extract_strided_slice %310 {offsets = [0, 256], sizes = [8, 128], strides = [1, 1]} : vector<8x384xf32> to vector<8x128xf32>
    %314 = vector.extract_strided_slice %304 {offsets = [0, 384], sizes = [8, 128], strides = [1, 1]} : vector<8x512xf32> to vector<8x128xf32>
    %315 = math.tanh %314 : vector<8x128xf32>
    %316 = arith.mulf %312, %277 : vector<8x128xf32>
    %317 = arith.mulf %311, %315 : vector<8x128xf32>
    %318 = arith.addf %316, %317 : vector<8x128xf32>
    %319 = math.tanh %318 : vector<8x128xf32>
    %320 = arith.mulf %313, %319 : vector<8x128xf32>
    %321 = tpu.concatenate %299, %320 in 1 : vector<8x128xf32>, vector<8x128xf32> -> vector<8x256xf32>
    %322 = arith.truncf %321 : vector<8x256xf32> to vector<8x256xbf16>
    %cst_43 = arith.constant dense<0.000000e+00> : vector<8x512xf32>
    %323 = tpu.matmul %322, %53, %cst_43 {dimension_numbers = #tpu.dot_dimension_numbers<[1], [0], [0], [1], [0, 0, 1, 1], [], []>} : vector<8x256xbf16>, vector<256x512xbf16>, vector<8x512xf32> -> vector<8x512xf32>
    %324 = vector.broadcast %9 : vector<1x512xf32> to vector<8x512xf32>
    %325 = arith.addf %323, %324 : vector<8x512xf32>
    %326 = vector.extract_strided_slice %325 {offsets = [0, 0], sizes = [8, 384], strides = [1, 1]} : vector<8x512xf32> to vector<8x384xf32>
    %327 = arith.negf %326 : vector<8x384xf32>
    %328 = math.exp %327 : vector<8x384xf32>
    %cst_44 = arith.constant 1.000000e+00 : f32
    %329 = vector.broadcast %cst_44 : f32 to vector<8x384xf32>
    %330 = arith.addf %329, %328 : vector<8x384xf32>
    %331 = arith.divf %329, %330 : vector<8x384xf32>
    %332 = vector.extract_strided_slice %331 {offsets = [0, 0], sizes = [8, 128], strides = [1, 1]} : vector<8x384xf32> to vector<8x128xf32>
    %333 = vector.extract_strided_slice %331 {offsets = [0, 128], sizes = [8, 128], strides = [1, 1]} : vector<8x384xf32> to vector<8x128xf32>
    %334 = vector.extract_strided_slice %331 {offsets = [0, 256], sizes = [8, 128], strides = [1, 1]} : vector<8x384xf32> to vector<8x128xf32>
    %335 = vector.extract_strided_slice %325 {offsets = [0, 384], sizes = [8, 128], strides = [1, 1]} : vector<8x512xf32> to vector<8x128xf32>
    %336 = math.tanh %335 : vector<8x128xf32>
    %337 = arith.mulf %333, %318 : vector<8x128xf32>
    %338 = arith.mulf %332, %336 : vector<8x128xf32>
    %339 = arith.addf %337, %338 : vector<8x128xf32>
    %340 = math.tanh %339 : vector<8x128xf32>
    %341 = arith.mulf %334, %340 : vector<8x128xf32>
    %342 = tpu.concatenate %74, %115, %156, %197, %238, %279, %320, %341 in 1 : vector<8x128xf32>, vector<8x128xf32>, vector<8x128xf32>, vector<8x128xf32>, vector<8x128xf32>, vector<8x128xf32>, vector<8x128xf32>, vector<8x128xf32> -> vector<8x1024xf32>
    %c0_45 = arith.constant 0 : index
    %c0_46 = arith.constant 0 : index
    %343 = vector.load %arg7[%c0_45, %c0_46] : memref<8x1024xf32, #tpu.memory_space<vmem>>, vector<8x1024xf32>
    tpu.vector_store %arg7[%c0_45, %c0_46], %342 {strides = array<i32>} : memref<8x1024xf32, #tpu.memory_space<vmem>>, vector<8x1024xf32>,
    %344 = vector.shape_cast %299 : vector<8x128xf32> to vector<1x8x128xf32>
    %345 = vector.shape_cast %341 : vector<8x128xf32> to vector<1x8x128xf32>
    %346 = tpu.concatenate %344, %345 in 0 : vector<1x8x128xf32>, vector<1x8x128xf32> -> vector<2x8x128xf32>
    %c0_47 = arith.constant 0 : index
    %c0_48 = arith.constant 0 : index
    %c0_49 = arith.constant 0 : index
    %347 = vector.load %arg8[%c0_47, %c0_48, %c0_49] : memref<2x8x128xf32, #tpu.memory_space<vmem>>, vector<2x8x128xf32>
    tpu.vector_store %arg8[%c0_47, %c0_48, %c0_49], %346 {strides = array<i32>} : memref<2x8x128xf32, #tpu.memory_space<vmem>>, vector<2x8x128xf32>,
    %348 = vector.shape_cast %297 : vector<8x128xf32> to vector<1x8x128xf32>
    %349 = vector.shape_cast %339 : vector<8x128xf32> to vector<1x8x128xf32>
    %350 = tpu.concatenate %348, %349 in 0 : vector<1x8x128xf32>, vector<1x8x128xf32> -> vector<2x8x128xf32>
    %c0_50 = arith.constant 0 : index
    %c0_51 = arith.constant 0 : index
    %c0_52 = arith.constant 0 : index
    %351 = vector.load %arg9[%c0_50, %c0_51, %c0_52] : memref<2x8x128xf32, #tpu.memory_space<vmem>>, vector<2x8x128xf32>
    tpu.vector_store %arg9[%c0_50, %c0_51, %c0_52], %350 {strides = array<i32>} : memref<2x8x128xf32, #tpu.memory_space<vmem>>, vector<2x8x128xf32>,
    return
  }
  func.func @transform_0(%arg0: i32) -> (i32, i32) {
    %c0_i32 = arith.constant 0 : i32
    %c0_i32_0 = arith.constant 0 : i32
    %c0_i32_1 = arith.constant 0 : i32
    return %c0_i32, %c0_i32_0 : i32, i32
  }
  func.func @transform_1(%arg0: i32) -> (i32, i32) {
    %c0_i32 = arith.constant 0 : i32
    %c0_i32_0 = arith.constant 0 : i32
    %c0_i32_1 = arith.constant 0 : i32
    return %c0_i32, %c0_i32_0 : i32, i32
  }
  func.func @transform_2(%arg0: i32) -> (i32, i32) {
    %c0_i32 = arith.constant 0 : i32
    %c0_i32_0 = arith.constant 0 : i32
    %c0_i32_1 = arith.constant 0 : i32
    return %c0_i32, %c0_i32_0 : i32, i32
  }
  func.func @transform_3(%arg0: i32) -> (i32, i32) {
    %c0_i32 = arith.constant 0 : i32
    %c0_i32_0 = arith.constant 0 : i32
    %c0_i32_1 = arith.constant 0 : i32
    return %c0_i32, %c0_i32_0 : i32, i32
  }
  func.func @transform_5(%arg0: i32) -> (i32, i32) {
    %c0_i32 = arith.constant 0 : i32
    %c0_i32_0 = arith.constant 0 : i32
    %c0_i32_1 = arith.constant 0 : i32
    return %c0_i32, %c0_i32_0 : i32, i32
  }
  func.func @transform_6(%arg0: i32) -> (i32, i32) {
    %c0_i32 = arith.constant 0 : i32
    %c0_i32_0 = arith.constant 0 : i32
    %c0_i32_1 = arith.constant 0 : i32
    return %c0_i32, %c0_i32_0 : i32, i32
  }
  func.func @transform_7(%arg0: i32) -> (i32, i32, i32) {
    %c0_i32 = arith.constant 0 : i32
    %c0_i32_0 = arith.constant 0 : i32
    %c0_i32_1 = arith.constant 0 : i32
    %c0_i32_2 = arith.constant 0 : i32
    return %c0_i32, %c0_i32_0, %c0_i32_1 : i32, i32, i32
  }
  func.func @transform_8(%arg0: i32) -> (i32, i32, i32) {
    %c0_i32 = arith.constant 0 : i32
    %c0_i32_0 = arith.constant 0 : i32
    %c0_i32_1 = arith.constant 0 : i32
    %c0_i32_2 = arith.constant 0 : i32
    return %c0_i32, %c0_i32_0, %c0_i32_1 : i32, i32, i32
  }
}

</mosaic_0001>

<llo_original>
// kernel: text_encoder_forward.1
$region0: #{text_encoder_forward.1}
  #allocation0 [shape = 'u32[]', space=smem, size = 0x4, offset = 0x4, fixed_abs, tag = 'smem constant byte address 0x4 - core index']
  #allocation1 [shape = 'u32[144,128]{1,0:T(1,128)}', space=vmem, size = 0x12000, scoped, tag = 'internal scratch']
  #allocation2 [shape = 'bf16[256,512]{1,0:T(8,128)(2,1)}', space=vmem, size = 0x40000, scoped, tag = 'scratch operand']
  #allocation3 [shape = 's32[1]{0}', space=sflag, size = 0x4, scoped, tag = 'scratch operand']
  #allocation11 [shape = 's32[]', space=sflag, size = 0x4, offset = 0, fixed_abs, tag = 'sflag constant byte address 0x0 - dummy sync flag']
  #allocation12 [shape = 's32[]', space=sflag, size = 0x4, offset = 0, fixed_abs, tag = 'sflag constant byte address 0x0 - dummy sync flag']
  #allocation13 [shape = 'u32[]', space=smem, size = 0x4, offset = 0x44, fixed_abs, tag = 'smem constant byte address 0x44 - assertion arg 0']
  #allocation14 [shape = 'u32[]', space=smem, size = 0x4, offset = 0x48, fixed_abs, tag = 'smem constant byte address 0x48 - assertion arg 1']
  %s0 = inlined_call_operand.vmem [shape: bf16[64,128], index: 0, kind: input, shape index: {}]
  %s1 = inlined_call_operand.hbm [shape: bf16[128,512], index: 1, kind: input, shape index: {}]
  %s2 = inlined_call_operand.hbm [shape: bf16[128,512], index: 2, kind: input, shape index: {}]
  %s3 = inlined_call_operand.hbm [shape: f32[1,512], index: 3, kind: input, shape index: {}]
  %s4 = inlined_call_operand.hbm [shape: bf16[256,512], index: 4, kind: input, shape index: {}]
  %s5 = inlined_call_operand.hbm [shape: f32[1,512], index: 5, kind: input, shape index: {}]
  %s6 = inlined_call_operand.vmem [shape: f32[8,1024], index: 6, kind: output, shape index: {0}]
  %s7 = inlined_call_operand.vmem [shape: f32[2,8,128], index: 7, kind: output, shape index: {1}]
  %s8 = inlined_call_operand.vmem [shape: f32[2,8,128], index: 8, kind: output, shape index: {2}]
  %9 = xla_tuple %s6, %s7, %s8
  %s10 = sld [smem:[#allocation0]]
  $region66: #{text_encoder_forward.1} parent=0
    _
  %s12 = ssub.s32 1, %s10
  %s13 = scalar_select 0, %s12, %s10
  $region1: #{text_encoder_forward.1} parent=0
    #allocation4 [shape = 'u8[131072]{0}', space=vmem, size = 0x20000, scoped, tag = 'input window, operand 1, single buffered']
    #allocation5 [shape = 's32[1]{0}', space=sflag, size = 0x4, scoped, tag = 'scoped memory for text_encoder_forward.1']
    #allocation6 [shape = 'u8[131072]{0}', space=vmem, size = 0x20000, scoped, tag = 'input window, operand 2, single buffered']
    #allocation7 [shape = 's32[1]{0}', space=sflag, size = 0x4, scoped, tag = 'scoped memory for text_encoder_forward.1']
    #allocation8 [shape = 'u8[2048]{0}', space=vmem, size = 0x800, scoped, tag = 'input window, operand 3, single buffered']
    #allocation9 [shape = 'u8[2048]{0}', space=vmem, size = 0x800, scoped, tag = 'input window, operand 5, single buffered']
    #allocation10 [shape = 's32[1]{0}', space=sflag, size = 0x4, scoped, tag = 'scoped memory for text_encoder_forward.1']
    %14 = vsyncpa [#allocation5], 0
    %15 = vsyncpa [#allocation7], 0
    %16 = vsyncpa [#allocation10], 0
    // Predicated region
    $region2: #{text_encoder_forward.1} parent=1 // pred_check
      _
    $region3: #{text_encoder_forward.1} parent=1 // pred_check_branch
      %18 = sbr.rel (0) target = $region5
    $region4: #{text_encoder_forward.1} parent=1 // pred_region
      _
    $region5: #{text_encoder_forward.1} parent=1 // pred_fallthru
      _
    // Predicated region
    $region6: #{text_encoder_forward.1} parent=1 // pred_check
      _
    $region7: #{text_encoder_forward.1} parent=1 // pred_check_branch
      %20 = sbr.rel (0) target = $region9
    $region8: #{text_encoder_forward.1} parent=1 // pred_region
      %s22 = ssub.s32 4096, 4096
      %23 = vsyncadd [#allocation5], %s22
      %s24 = sshll.u32 [#allocation4], 4
      %s25 = int_to_ptr.vmem [resolvable:$true] %s24
      %30 = dma.hbm_to_vmem [thread:$0]  %s1, 4096, %s25, [#allocation5], 256, 256, 16
    $region9: #{text_encoder_forward.1} parent=1 // pred_fallthru
      _
    // Predicated region
    $region10: #{text_encoder_forward.1} parent=1 // pred_check
      _
    $region11: #{text_encoder_forward.1} parent=1 // pred_check_branch
      %32 = sbr.rel (0) target = $region13
    $region12: #{text_encoder_forward.1} parent=1 // pred_region
      %s34 = ssub.s32 4096, 4096
      %35 = vsyncadd [#allocation7], %s34
      %s36 = sshll.u32 [#allocation6], 4
      %s37 = int_to_ptr.vmem [resolvable:$true] %s36
      %42 = dma.hbm_to_vmem [thread:$0]  %s2, 4096, %s37, [#allocation7], 256, 256, 16
    $region13: #{text_encoder_forward.1} parent=1 // pred_fallthru
      _
    // Predicated region
    $region14: #{text_encoder_forward.1} parent=1 // pred_check
      _
    $region15: #{text_encoder_forward.1} parent=1 // pred_check_branch
      %44 = sbr.rel (0) target = $region17
    $region16: #{text_encoder_forward.1} parent=1 // pred_region
      %s46 = ssub.s32 64, 64
      %47 = vsyncadd [#allocation7], %s46
      %s49 = sshll.u32 [#allocation8], 4
      %s50 = int_to_ptr.vmem [resolvable:$true] %s49
      %52 = dma.hbm_to_vmem [thread:$0]  %s3, 64, %s50, [#allocation7]
    $region17: #{text_encoder_forward.1} parent=1 // pred_fallthru
      _
    // Predicated region
    $region18: #{text_encoder_forward.1} parent=1 // pred_check
      _
    $region19: #{text_encoder_forward.1} parent=1 // pred_check_branch
      %54 = sbr.rel (0) target = $region21
    $region20: #{text_encoder_forward.1} parent=1 // pred_region
      %s56 = ssub.s32 64, 64
      %57 = vsyncadd [#allocation10], %s56
      %s59 = sshll.u32 [#allocation9], 4
      %s60 = int_to_ptr.vmem [resolvable:$true] %s59
      %62 = dma.hbm_to_vmem [thread:$0]  %s5, 64, %s60, [#allocation10]
    $region21: #{text_encoder_forward.1} parent=1 // pred_fallthru
      _
    // Predicated region
    $region22: #{text_encoder_forward.1} parent=1 // pred_check
      _
    $region23: #{text_encoder_forward.1} parent=1 // pred_check_branch
      %64 = sbr.rel (0) target = $region25
    $region24: #{text_encoder_forward.1} parent=1 // pred_region
      %65 = dma.done [#allocation5], 4096
    $region25: #{text_encoder_forward.1} parent=1 // pred_fallthru
      _
    // Predicated region
    $region26: #{text_encoder_forward.1} parent=1 // pred_check
      _
    $region27: #{text_encoder_forward.1} parent=1 // pred_check_branch
      %67 = sbr.rel (0) target = $region29
    $region28: #{text_encoder_forward.1} parent=1 // pred_region
      %68 = dma.done [#allocation7], 4096
    $region29: #{text_encoder_forward.1} parent=1 // pred_fallthru
      _
    // Predicated region
    $region30: #{text_encoder_forward.1} parent=1 // pred_check
      _
    $region31: #{text_encoder_forward.1} parent=1 // pred_check_branch
      %70 = sbr.rel (0) target = $region33
    $region32: #{text_encoder_forward.1} parent=1 // pred_region
      %71 = dma.done [#allocation7], 64
    $region33: #{text_encoder_forward.1} parent=1 // pred_fallthru
      _
    // Predicated region
    $region34: #{text_encoder_forward.1} parent=1 // pred_check
      _
    $region35: #{text_encoder_forward.1} parent=1 // pred_check_branch
      %73 = sbr.rel (0) target = $region37
    $region36: #{text_encoder_forward.1} parent=1 // pred_region
      %74 = dma.done [#allocation10], 64
    $region37: #{text_encoder_forward.1} parent=1 // pred_fallthru
      _
    // Predicated region
    $region38: #{text_encoder_forward.1} parent=1 // pred_check
      _
    $region39: #{text_encoder_forward.1} parent=1 // pred_check_branch
      %77 = sbr.rel target = $region41
    $region40: #{text_encoder_forward.1} parent=1 // pred_region
      %78 = sst [smem:[#allocation13]] [#allocation12]
      %79 = sst [smem:[#allocation14]] [#allocation11]
    $region41: #{text_encoder_forward.1} parent=1 // pred_fallthru
      _
    %81 = shalt.err (0)
    %s83 = sshll.u32 [#allocation2], 4
    %s84 = int_to_ptr.vmem [resolvable:$true] %s83
    %86 = dma.hbm_to_vmem [thread:$0]  %s4, 8192, %s84, [#allocation3]
    %v87 = vld [vmem:[%s0] sm:$0xf]
    %v88 = vld [vmem:[%s0 + $0x4] sm:$0xf]
    %v89 = vld [vmem:[%s0 + $0x8] sm:$0xf]
    %v90 = vld [vmem:[%s0 + $0xc] sm:$0xf]
    %v91 = vld [vmem:[%s0 + $0x10] sm:$0xf]
    %v92 = vld [vmem:[%s0 + $0x14] sm:$0xf]
    %v93 = vld [vmem:[%s0 + $0x18] sm:$0xf]
    %v94 = vld [vmem:[%s0 + $0x1c] sm:$0xf]
    %v95 = vld [vmem:[#allocation4] sm:$0xff]
    %v96 = vld [vmem:[#allocation4 + $0x8] sm:$0xff]
    %v97 = vld [vmem:[#allocation4 + $0x10] sm:$0xff]
    %v98 = vld [vmem:[#allocation4 + $0x18] sm:$0xff]
    %v99 = vld [vmem:[#allocation4 + $0x20] sm:$0xff]
    %v100 = vld [vmem:[#allocation4 + $0x28] sm:$0xff]
    %v101 = vld [vmem:[#allocation4 + $0x30] sm:$0xff]
    %v102 = vld [vmem:[#allocation4 + $0x38] sm:$0xff]
    %v103 = vld [vmem:[#allocation4 + $0x40] sm:$0xff]
    %v104 = vld [vmem:[#allocation4 + $0x48] sm:$0xff]
    %v105 = vld [vmem:[#allocation4 + $0x50] sm:$0xff]
    %v106 = vld [vmem:[#allocation4 + $0x58] sm:$0xff]
    %v107 = vld [vmem:[#allocation4 + $0x60] sm:$0xff]
    %v108 = vld [vmem:[#allocation4 + $0x68] sm:$0xff]
    %v109 = vld [vmem:[#allocation4 + $0x70] sm:$0xff]
    %v110 = vld [vmem:[#allocation4 + $0x78] sm:$0xff]
    %v111 = vld [vmem:[#allocation4 + $0x80] sm:$0xff]
    %v112 = vld [vmem:[#allocation4 + $0x88] sm:$0xff]
    %v113 = vld [vmem:[#allocation4 + $0x90] sm:$0xff]
    %v114 = vld [vmem:[#allocation4 + $0x98] sm:$0xff]
    %v115 = vld [vmem:[#allocation4 + $0xa0] sm:$0xff]
    %v116 = vld [vmem:[#allocation4 + $0xa8] sm:$0xff]
    %v117 = vld [vmem:[#allocation4 + $0xb0] sm:$0xff]
    %v118 = vld [vmem:[#allocation4 + $0xb8] sm:$0xff]
    %v119 = vld [vmem:[#allocation4 + $0xc0] sm:$0xff]
    %v120 = vld [vmem:[#allocation4 + $0xc8] sm:$0xff]
    %v121 = vld [vmem:[#allocation4 + $0xd0] sm:$0xff]
    %v122 = vld [vmem:[#allocation4 + $0xd8] sm:$0xff]
    %v123 = vld [vmem:[#allocation4 + $0xe0] sm:$0xff]
    %v124 = vld [vmem:[#allocation4 + $0xe8] sm:$0xff]
    %v125 = vld [vmem:[#allocation4 + $0xf0] sm:$0xff]
    %v126 = vld [vmem:[#allocation4 + $0xf8] sm:$0xff]
    %v127 = vld [vmem:[#allocation8] sm:$0xf]
    %v129 = vlaneseq
    %v130 = vshrl.u32 %v129, 7
    %v131 = vsub.s32 0, %v130
    %v132 = vrot.slane %v127, %v131
    %v133 = vlaneseq
    %v134 = vshrl.u32 %v133, 7
    %v135 = vsub.s32 1, %v134
    %v136 = vrot.slane %v127, %v135
    %v137 = vlaneseq
    %v138 = vshrl.u32 %v137, 7
    %v139 = vsub.s32 2, %v138
    %v140 = vrot.slane %v127, %v139
    %v141 = vlaneseq
    %v142 = vshrl.u32 %v141, 7
    %v143 = vsub.s32 3, %v142
    %v144 = vrot.slane %v127, %v143
    %v157 = vunpack.c.l.b16 %v87
    %v158 = vunpack.c.l.b16 %v88
    %v159 = vunpack.c.l.b16 %v89
    %v160 = vunpack.c.l.b16 %v90
    %v161 = vunpack.c.l.b16 %v91
    %v162 = vunpack.c.l.b16 %v92
    %v163 = vunpack.c.l.b16 %v93
    %v164 = vunpack.c.l.b16 %v94
    %v165 = vpack.c.b16 %v158, %v157
    %v166 = vpack.c.b16 %v160, %v159
    %v167 = vpack.c.b16 %v162, %v161
    %v168 = vpack.c.b16 %v164, %v163
    %v205 = vunpack.c.l.b16 %v95
    %v206 = vunpack.c.h.b16 %v95
    %v207 = vunpack.c.l.b16 %v96
    %v208 = vunpack.c.h.b16 %v96
    %v209 = vunpack.c.l.b16 %v97
    %v210 = vunpack.c.h.b16 %v97
    %v211 = vunpack.c.l.b16 %v98
    %v212 = vunpack.c.h.b16 %v98
    %v213 = vunpack.c.l.b16 %v99
    %v214 = vunpack.c.h.b16 %v99
    %v215 = vunpack.c.l.b16 %v100
    %v216 = vunpack.c.h.b16 %v100
    %v217 = vunpack.c.l.b16 %v101
    %v218 = vunpack.c.h.b16 %v101
    %v219 = vunpack.c.l.b16 %v102
    %v220 = vunpack.c.h.b16 %v102
    %v221 = vunpack.c.l.b16 %v103
    %v222 = vunpack.c.h.b16 %v103
    %v223 = vunpack.c.l.b16 %v104
    %v224 = vunpack.c.h.b16 %v104
    %v225 = vunpack.c.l.b16 %v105
    %v226 = vunpack.c.h.b16 %v105
    %v227 = vunpack.c.l.b16 %v106
    %v228 = vunpack.c.h.b16 %v106
    %v229 = vunpack.c.l.b16 %v107
    %v230 = vunpack.c.h.b16 %v107
    %v231 = vunpack.c.l.b16 %v108
    %v232 = vunpack.c.h.b16 %v108
    %v233 = vunpack.c.l.b16 %v109
    %v234 = vunpack.c.h.b16 %v109
    %v235 = vunpack.c.l.b16 %v110
    %v236 = vunpack.c.h.b16 %v110
    %v237 = vunpack.c.l.b16 %v111
    %v238 = vunpack.c.h.b16 %v111
    %v239 = vunpack.c.l.b16 %v112
    %v240 = vunpack.c.h.b16 %v112
    %v241 = vunpack.c.l.b16 %v113
    %v242 = vunpack.c.h.b16 %v113
    %v243 = vunpack.c.l.b16 %v114
    %v244 = vunpack.c.h.b16 %v114
    %v245 = vunpack.c.l.b16 %v115
    %v246 = vunpack.c.h.b16 %v115
    %v247 = vunpack.c.l.b16 %v116
    %v248 = vunpack.c.h.b16 %v116
    %v249 = vunpack.c.l.b16 %v117
    %v250 = vunpack.c.h.b16 %v117
    %v251 = vunpack.c.l.b16 %v118
    %v252 = vunpack.c.h.b16 %v118
    %v253 = vunpack.c.l.b16 %v119
    %v254 = vunpack.c.h.b16 %v119
    %v255 = vunpack.c.l.b16 %v120
    %v256 = vunpack.c.h.b16 %v120
    %v257 = vunpack.c.l.b16 %v121
    %v258 = vunpack.c.h.b16 %v121
    %v259 = vunpack.c.l.b16 %v122
    %v260 = vunpack.c.h.b16 %v122
    %v261 = vunpack.c.l.b16 %v123
    %v262 = vunpack.c.h.b16 %v123
    %v263 = vunpack.c.l.b16 %v124
    %v264 = vunpack.c.h.b16 %v124
    %v265 = vunpack.c.l.b16 %v125
    %v266 = vunpack.c.h.b16 %v125
    %v267 = vunpack.c.l.b16 %v126
    %v268 = vunpack.c.h.b16 %v126
    %v269 = vpack.c.b16 %v209, %v205
    %v270 = vpack.c.b16 %v210, %v206
    %v271 = vpack.c.b16 %v211, %v207
    %v272 = vpack.c.b16 %v212, %v208
    %v273 = vpack.c.b16 %v217, %v213
    %v274 = vpack.c.b16 %v218, %v214
    %v275 = vpack.c.b16 %v219, %v215
    %v276 = vpack.c.b16 %v220, %v216
    %v277 = vpack.c.b16 %v225, %v221
    %v278 = vpack.c.b16 %v226, %v222
    %v279 = vpack.c.b16 %v227, %v223
    %v280 = vpack.c.b16 %v228, %v224
    %v281 = vpack.c.b16 %v233, %v229
    %v282 = vpack.c.b16 %v234, %v230
    %v283 = vpack.c.b16 %v235, %v231
    %v284 = vpack.c.b16 %v236, %v232
    %v285 = vpack.c.b16 %v241, %v237
    %v286 = vpack.c.b16 %v242, %v238
    %v287 = vpack.c.b16 %v243, %v239
    %v288 = vpack.c.b16 %v244, %v240
    %v289 = vpack.c.b16 %v249, %v245
    %v290 = vpack.c.b16 %v250, %v246
    %v291 = vpack.c.b16 %v251, %v247
    %v292 = vpack.c.b16 %v252, %v248
    %v293 = vpack.c.b16 %v257, %v253
    %v294 = vpack.c.b16 %v258, %v254
    %v295 = vpack.c.b16 %v259, %v255
    %v296 = vpack.c.b16 %v260, %v256
    %v297 = vpack.c.b16 %v265, %v261
    %v298 = vpack.c.b16 %v266, %v262
    %v299 = vpack.c.b16 %v267, %v263
    %v300 = vpack.c.b16 %v268, %v264
    %333 = vmatprep.subr.bf16.mxu0 %v298
    %334 = vmatpush1.bf16.msra.mxu0 %v297
    %335 = vmatprep.subr.bf16.mxu0 %v294
    %336 = vmatpush1.bf16.msra.mxu0 %v293
    %337 = vmatprep.subr.bf16.mxu0 %v290
    %338 = vmatpush1.bf16.msra.mxu0 %v289
    %339 = vmatprep.subr.bf16.mxu0 %v286
    %340 = vmatpush1.bf16.msra.mxu0 %v285
    %341 = vmatprep.subr.bf16.mxu0 %v282
    %342 = vmatpush1.bf16.msra.mxu0 %v281
    %343 = vmatprep.subr.bf16.mxu0 %v278
    %344 = vmatpush1.bf16.msra.mxu0 %v277
    %345 = vmatprep.subr.bf16.mxu0 %v274
    %346 = vmatpush1.bf16.msra.mxu0 %v273
    %347 = vmatprep.subr.bf16.mxu0 %v270
    %348 = vmatpush1.bf16.msra.mxu0 %v269
    %349 = vmatprep.subr.bf16.mxu0 0
    %350 = vmatpush2.bf16.msra.mxu0 0
    %351 = vmatprep.subr.bf16.mxu0 0
    %352 = vmatpush2.bf16.msra.mxu0 0
    %353 = vmatprep.subr.bf16.mxu0 0
    %354 = vmatpush2.bf16.msra.mxu0 0
    %355 = vmatprep.subr.bf16.mxu0 0
    %356 = vmatpush2.bf16.msra.mxu0 0
    %357 = vmatprep.subr.bf16.mxu0 0
    %358 = vmatpush2.bf16.msra.mxu0 0
    %359 = vmatprep.subr.bf16.mxu0 0
    %360 = vmatpush2.bf16.msra.mxu0 0
    %361 = vmatprep.subr.bf16.mxu0 0
    %362 = vmatpush2.bf16.msra.mxu0 0
    %363 = vmatprep.subr.bf16.mxu0 0
    %364 = vmatpush2.bf16.msra.mxu0 0
    %365 = vmatprep.mubr.bf16.mxu0 0
    %366 = vmatmul.mubr.bf16.gmra.mxu0 %v165
    %v367 = vpop.f32.mrf.mxu0
    %v368 = vadd.f32 %v132, %v367
    %v369 = vpop.f32.mrf.mxu0
    %v370 = vadd.f32 %v136, %v369
    %v371 = vpop.f32.mrf.mxu0
    %v372 = vadd.f32 %v132, %v371
    %v373 = vpop.f32.mrf.mxu0
    %v374 = vadd.f32 %v136, %v373
    %375 = vmatprep.mubr.bf16.mxu0 0
    %376 = vmatmul.mubr.bf16.gmra.mxu0 %v166
    %v377 = vpop.f32.mrf.mxu0
    %v378 = vadd.f32 %v132, %v377
    %v379 = vpop.f32.mrf.mxu0
    %v380 = vadd.f32 %v136, %v379
    %v381 = vpop.f32.mrf.mxu0
    %v382 = vadd.f32 %v132, %v381
    %v383 = vpop.f32.mrf.mxu0
    %v384 = vadd.f32 %v136, %v383
    %385 = vmatprep.mubr.bf16.mxu0 0
    %386 = vmatmul.mubr.bf16.gmra.mxu0 %v167
    %v387 = vpop.f32.mrf.mxu0
    %v388 = vadd.f32 %v132, %v387
    %v389 = vpop.f32.mrf.mxu0
    %v390 = vadd.f32 %v136, %v389
    %v391 = vpop.f32.mrf.mxu0
    %v392 = vadd.f32 %v132, %v391
    %v393 = vpop.f32.mrf.mxu0
    %v394 = vadd.f32 %v136, %v393
    %395 = vmatprep.mubr.bf16.mxu0 0
    %396 = vmatmul.mubr.bf16.gmra.mxu0 %v168
    %v397 = vpop.f32.mrf.mxu0
    %v398 = vadd.f32 %v132, %v397
    %v399 = vpop.f32.mrf.mxu0
    %v400 = vadd.f32 %v136, %v399
    %v401 = vpop.f32.mrf.mxu0
    %v402 = vadd.f32 %v132, %v401
    %v403 = vpop.f32.mrf.mxu0
    %v404 = vadd.f32 %v136, %v403
    %405 = vdwg.mxu0
    %406 = vmatprep.subr.bf16.mxu0 %v300
    %407 = vmatpush1.bf16.msra.mxu0 %v299
    %408 = vmatprep.subr.bf16.mxu0 %v296
    %409 = vmatpush1.bf16.msra.mxu0 %v295
    %410 = vmatprep.subr.bf16.mxu0 %v292
    %411 = vmatpush1.bf16.msra.mxu0 %v291
    %412 = vmatprep.subr.bf16.mxu0 %v288
    %413 = vmatpush1.bf16.msra.mxu0 %v287
    %414 = vmatprep.subr.bf16.mxu0 %v284
    %415 = vmatpush1.bf16.msra.mxu0 %v283
    %416 = vmatprep.subr.bf16.mxu0 %v280
    %417 = vmatpush1.bf16.msra.mxu0 %v279
    %418 = vmatprep.subr.bf16.mxu0 %v276
    %419 = vmatpush1.bf16.msra.mxu0 %v275
    %420 = vmatprep.subr.bf16.mxu0 %v272
    %421 = vmatpush1.bf16.msra.mxu0 %v271
    %422 = vmatprep.subr.bf16.mxu0 0
    %423 = vmatpush2.bf16.msra.mxu0 0
    %424 = vmatprep.subr.bf16.mxu0 0
    %425 = vmatpush2.bf16.msra.mxu0 0
    %426 = vmatprep.subr.bf16.mxu0 0
    %427 = vmatpush2.bf16.msra.mxu0 0
    %428 = vmatprep.subr.bf16.mxu0 0
    %429 = vmatpush2.bf16.msra.mxu0 0
    %430 = vmatprep.subr.bf16.mxu0 0
    %431 = vmatpush2.bf16.msra.mxu0 0
    %432 = vmatprep.subr.bf16.mxu0 0
    %433 = vmatpush2.bf16.msra.mxu0 0
    %434 = vmatprep.subr.bf16.mxu0 0
    %435 = vmatpush2.bf16.msra.mxu0 0
    %436 = vmatprep.subr.bf16.mxu0 0
    %437 = vmatpush2.bf16.msra.mxu0 0
    %438 = vmatprep.mubr.bf16.mxu0 0
    %439 = vmatmul.mubr.bf16.gmra.mxu0 %v165
    %v440 = vpop.f32.mrf.mxu0
    %v441 = vadd.f32 %v140, %v440
    %v442 = vpop.f32.mrf.mxu0
    %v443 = vadd.f32 %v144, %v442
    %v444 = vpop.f32.mrf.mxu0
    %v445 = vadd.f32 %v140, %v444
    %v446 = vpop.f32.mrf.mxu0
    %v447 = vadd.f32 %v144, %v446
    %448 = vmatprep.mubr.bf16.mxu0 0
    %449 = vmatmul.mubr.bf16.gmra.mxu0 %v166
    %v450 = vpop.f32.mrf.mxu0
    %v451 = vadd.f32 %v140, %v450
    %v452 = vpop.f32.mrf.mxu0
    %v453 = vadd.f32 %v144, %v452
    %v454 = vpop.f32.mrf.mxu0
    %v455 = vadd.f32 %v140, %v454
    %v456 = vpop.f32.mrf.mxu0
    %v457 = vadd.f32 %v144, %v456
    %458 = vmatprep.mubr.bf16.mxu0 0
    %459 = vmatmul.mubr.bf16.gmra.mxu0 %v167
    %v460 = vpop.f32.mrf.mxu0
    %v461 = vadd.f32 %v140, %v460
    %v462 = vpop.f32.mrf.mxu0
    %v463 = vadd.f32 %v144, %v462
    %v464 = vpop.f32.mrf.mxu0
    %v465 = vadd.f32 %v140, %v464
    %v466 = vpop.f32.mrf.mxu0
    %v467 = vadd.f32 %v144, %v466
    %468 = vmatprep.mubr.bf16.mxu0 0
    %469 = vmatmul.mubr.bf16.gmra.mxu0 %v168
    %v470 = vpop.f32.mrf.mxu0
    %v471 = vadd.f32 %v140, %v470
    %v472 = vpop.f32.mrf.mxu0
    %v473 = vadd.f32 %v144, %v472
    %v474 = vpop.f32.mrf.mxu0
    %v475 = vadd.f32 %v140, %v474
    %v476 = vpop.f32.mrf.mxu0
    %v477 = vadd.f32 %v144, %v476
    %478 = vdwg.mxu0
    %v479 = vld [vmem:[#allocation6] sm:$0xff]
    %v480 = vld [vmem:[#allocation6 + $0x8] sm:$0xff]
    %v481 = vld [vmem:[#allocation6 + $0x10] sm:$0xff]
    %v482 = vld [vmem:[#allocation6 + $0x18] sm:$0xff]
    %v483 = vld [vmem:[#allocation6 + $0x20] sm:$0xff]
    %v484 = vld [vmem:[#allocation6 + $0x28] sm:$0xff]
    %v485 = vld [vmem:[#allocation6 + $0x30] sm:$0xff]
    %v486 = vld [vmem:[#allocation6 + $0x38] sm:$0xff]
    %v487 = vld [vmem:[#allocation6 + $0x40] sm:$0xff]
    %v488 = vld [vmem:[#allocation6 + $0x48] sm:$0xff]
    %v489 = vld [vmem:[#allocation6 + $0x50] sm:$0xff]
    %v490 = vld [vmem:[#allocation6 + $0x58] sm:$0xff]
    %v491 = vld [vmem:[#allocation6 + $0x60] sm:$0xff]
    %v492 = vld [vmem:[#allocation6 + $0x68] sm:$0xff]
    %v493 = vld [vmem:[#allocation6 + $0x70] sm:$0xff]
    %v494 = vld [vmem:[#allocation6 + $0x78] sm:$0xff]
    %v495 = vld [vmem:[#allocation6 + $0x80] sm:$0xff]
    %v496 = vld [vmem:[#allocation6 + $0x88] sm:$0xff]
    %v497 = vld [vmem:[#allocation6 + $0x90] sm:$0xff]
    %v498 = vld [vmem:[#allocation6 + $0x98] sm:$0xff]
    %v499 = vld [vmem:[#allocation6 + $0xa0] sm:$0xff]
    %v500 = vld [vmem:[#allocation6 + $0xa8] sm:$0xff]
    %v501 = vld [vmem:[#allocation6 + $0xb0] sm:$0xff]
    %v502 = vld [vmem:[#allocation6 + $0xb8] sm:$0xff]
    %v503 = vld [vmem:[#allocation6 + $0xc0] sm:$0xff]
    %v504 = vld [vmem:[#allocation6 + $0xc8] sm:$0xff]
    %v505 = vld [vmem:[#allocation6 + $0xd0] sm:$0xff]
    %v506 = vld [vmem:[#allocation6 + $0xd8] sm:$0xff]
    %v507 = vld [vmem:[#allocation6 + $0xe0] sm:$0xff]
    %v508 = vld [vmem:[#allocation6 + $0xe8] sm:$0xff]
    %v509 = vld [vmem:[#allocation6 + $0xf0] sm:$0xff]
    %v510 = vld [vmem:[#allocation6 + $0xf8] sm:$0xff]
    %v511 = vld [vmem:[#allocation9] sm:$0xf]
    %v544 = vunpack.c.l.b16 %v479
    %v545 = vunpack.c.h.b16 %v479
    %v546 = vunpack.c.l.b16 %v480
    %v547 = vunpack.c.h.b16 %v480
    %v548 = vunpack.c.l.b16 %v481
    %v549 = vunpack.c.h.b16 %v481
    %v550 = vunpack.c.l.b16 %v482
    %v551 = vunpack.c.h.b16 %v482
    %v552 = vunpack.c.l.b16 %v483
    %v553 = vunpack.c.h.b16 %v483
    %v554 = vunpack.c.l.b16 %v484
    %v555 = vunpack.c.h.b16 %v484
    %v556 = vunpack.c.l.b16 %v485
    %v557 = vunpack.c.h.b16 %v485
    %v558 = vunpack.c.l.b16 %v486
    %v559 = vunpack.c.h.b16 %v486
    %v560 = vunpack.c.l.b16 %v487
    %v561 = vunpack.c.h.b16 %v487
    %v562 = vunpack.c.l.b16 %v488
    %v563 = vunpack.c.h.b16 %v488
    %v564 = vunpack.c.l.b16 %v489
    %v565 = vunpack.c.h.b16 %v489
    %v566 = vunpack.c.l.b16 %v490
    %v567 = vunpack.c.h.b16 %v490
    %v568 = vunpack.c.l.b16 %v491
    %v569 = vunpack.c.h.b16 %v491
    %v570 = vunpack.c.l.b16 %v492
    %v571 = vunpack.c.h.b16 %v492
    %v572 = vunpack.c.l.b16 %v493
    %v573 = vunpack.c.h.b16 %v493
    %v574 = vunpack.c.l.b16 %v494
    %v575 = vunpack.c.h.b16 %v494
    %v576 = vunpack.c.l.b16 %v495
    %v577 = vunpack.c.h.b16 %v495
    %v578 = vunpack.c.l.b16 %v496
    %v579 = vunpack.c.h.b16 %v496
    %v580 = vunpack.c.l.b16 %v497
    %v581 = vunpack.c.h.b16 %v497
    %v582 = vunpack.c.l.b16 %v498
    %v583 = vunpack.c.h.b16 %v498
    %v584 = vunpack.c.l.b16 %v499
    %v585 = vunpack.c.h.b16 %v499
    %v586 = vunpack.c.l.b16 %v500
    %v587 = vunpack.c.h.b16 %v500
    %v588 = vunpack.c.l.b16 %v501
    %v589 = vunpack.c.h.b16 %v501
    %v590 = vunpack.c.l.b16 %v502
    %v591 = vunpack.c.h.b16 %v502
    %v592 = vunpack.c.l.b16 %v503
    %v593 = vunpack.c.h.b16 %v503
    %v594 = vunpack.c.l.b16 %v504
    %v595 = vunpack.c.h.b16 %v504
    %v596 = vunpack.c.l.b16 %v505
    %v597 = vunpack.c.h.b16 %v505
    %v598 = vunpack.c.l.b16 %v506
    %v599 = vunpack.c.h.b16 %v506
    %v600 = vunpack.c.l.b16 %v507
    %v601 = vunpack.c.h.b16 %v507
    %v602 = vunpack.c.l.b16 %v508
    %v603 = vunpack.c.h.b16 %v508
    %v604 = vunpack.c.l.b16 %v509
    %v605 = vunpack.c.h.b16 %v509
    %v606 = vunpack.c.l.b16 %v510
    %v607 = vunpack.c.h.b16 %v510
    %v608 = vpack.c.b16 %v548, %v544
    %v609 = vpack.c.b16 %v549, %v545
    %v610 = vpack.c.b16 %v550, %v546
    %v611 = vpack.c.b16 %v551, %v547
    %v612 = vpack.c.b16 %v556, %v552
    %v613 = vpack.c.b16 %v557, %v553
    %v614 = vpack.c.b16 %v558, %v554
    %v615 = vpack.c.b16 %v559, %v555
    %v616 = vpack.c.b16 %v564, %v560
    %v617 = vpack.c.b16 %v565, %v561
    %v618 = vpack.c.b16 %v566, %v562
    %v619 = vpack.c.b16 %v567, %v563
    %v620 = vpack.c.b16 %v572, %v568
    %v621 = vpack.c.b16 %v573, %v569
    %v622 = vpack.c.b16 %v574, %v570
    %v623 = vpack.c.b16 %v575, %v571
    %v624 = vpack.c.b16 %v580, %v576
    %v625 = vpack.c.b16 %v581, %v577
    %v626 = vpack.c.b16 %v582, %v578
    %v627 = vpack.c.b16 %v583, %v579
    %v628 = vpack.c.b16 %v588, %v584
    %v629 = vpack.c.b16 %v589, %v585
    %v630 = vpack.c.b16 %v590, %v586
    %v631 = vpack.c.b16 %v591, %v587
    %v632 = vpack.c.b16 %v596, %v592
    %v633 = vpack.c.b16 %v597, %v593
    %v634 = vpack.c.b16 %v598, %v594
    %v635 = vpack.c.b16 %v599, %v595
    %v636 = vpack.c.b16 %v604, %v600
    %v637 = vpack.c.b16 %v605, %v601
    %v638 = vpack.c.b16 %v606, %v602
    %v639 = vpack.c.b16 %v607, %v603
    %672 = vmatprep.subr.bf16.mxu0 %v637
    %673 = vmatpush1.bf16.msra.mxu0 %v636
    %674 = vmatprep.subr.bf16.mxu0 %v633
    %675 = vmatpush1.bf16.msra.mxu0 %v632
    %676 = vmatprep.subr.bf16.mxu0 %v629
    %677 = vmatpush1.bf16.msra.mxu0 %v628
    %678 = vmatprep.subr.bf16.mxu0 %v625
    %679 = vmatpush1.bf16.msra.mxu0 %v624
    %680 = vmatprep.subr.bf16.mxu0 %v621
    %681 = vmatpush1.bf16.msra.mxu0 %v620
    %682 = vmatprep.subr.bf16.mxu0 %v617
    %683 = vmatpush1.bf16.msra.mxu0 %v616
    %684 = vmatprep.subr.bf16.mxu0 %v613
    %685 = vmatpush1.bf16.msra.mxu0 %v612
    %686 = vmatprep.subr.bf16.mxu0 %v609
    %687 = vmatpush1.bf16.msra.mxu0 %v608
    %688 = vmatprep.subr.bf16.mxu0 0
    %689 = vmatpush2.bf16.msra.mxu0 0
    %690 = vmatprep.subr.bf16.mxu0 0
    %691 = vmatpush2.bf16.msra.mxu0 0
    %692 = vmatprep.subr.bf16.mxu0 0
    %693 = vmatpush2.bf16.msra.mxu0 0
    %694 = vmatprep.subr.bf16.mxu0 0
    %695 = vmatpush2.bf16.msra.mxu0 0
    %696 = vmatprep.subr.bf16.mxu0 0
    %697 = vmatpush2.bf16.msra.mxu0 0
    %698 = vmatprep.subr.bf16.mxu0 0
    %699 = vmatpush2.bf16.msra.mxu0 0
    %700 = vmatprep.subr.bf16.mxu0 0
    %701 = vmatpush2.bf16.msra.mxu0 0
    %702 = vmatprep.subr.bf16.mxu0 0
    %703 = vmatpush2.bf16.msra.mxu0 0
    %704 = vmatprep.mubr.bf16.mxu0 0
    %705 = vmatmul.mubr.bf16.gmra.mxu0 0
    %v706 = vpop.f32.mrf.mxu0
    %v707 = vadd.f32 0.0, %v706
    %v708 = vpop.f32.mrf.mxu0
    %v709 = vadd.f32 0.0, %v708
    %v710 = vpop.f32.mrf.mxu0
    %v711 = vpop.f32.mrf.mxu0
    %712 = vdwg.mxu0
    %713 = vmatprep.subr.bf16.mxu0 %v639
    %714 = vmatpush1.bf16.msra.mxu0 %v638
    %715 = vmatprep.subr.bf16.mxu0 %v635
    %716 = vmatpush1.bf16.msra.mxu0 %v634
    %717 = vmatprep.subr.bf16.mxu0 %v631
    %718 = vmatpush1.bf16.msra.mxu0 %v630
    %719 = vmatprep.subr.bf16.mxu0 %v627
    %720 = vmatpush1.bf16.msra.mxu0 %v626
    %721 = vmatprep.subr.bf16.mxu0 %v623
    %722 = vmatpush1.bf16.msra.mxu0 %v622
    %723 = vmatprep.subr.bf16.mxu0 %v619
    %724 = vmatpush1.bf16.msra.mxu0 %v618
    %725 = vmatprep.subr.bf16.mxu0 %v615
    %726 = vmatpush1.bf16.msra.mxu0 %v614
    %727 = vmatprep.subr.bf16.mxu0 %v611
    %728 = vmatpush1.bf16.msra.mxu0 %v610
    %729 = vmatprep.subr.bf16.mxu0 0
    %730 = vmatpush2.bf16.msra.mxu0 0
    %731 = vmatprep.subr.bf16.mxu0 0
    %732 = vmatpush2.bf16.msra.mxu0 0
    %733 = vmatprep.subr.bf16.mxu0 0
    %734 = vmatpush2.bf16.msra.mxu0 0
    %735 = vmatprep.subr.bf16.mxu0 0
    %736 = vmatpush2.bf16.msra.mxu0 0
    %737 = vmatprep.subr.bf16.mxu0 0
    %738 = vmatpush2.bf16.msra.mxu0 0
    %739 = vmatprep.subr.bf16.mxu0 0
    %740 = vmatpush2.bf16.msra.mxu0 0
    %741 = vmatprep.subr.bf16.mxu0 0
    %742 = vmatpush2.bf16.msra.mxu0 0
    %743 = vmatprep.subr.bf16.mxu0 0
    %744 = vmatpush2.bf16.msra.mxu0 0
    %745 = vmatprep.mubr.bf16.mxu0 0
    %746 = vmatmul.mubr.bf16.gmra.mxu0 0
    %v747 = vpop.f32.mrf.mxu0
    %v748 = vadd.f32 0.0, %v747
    %v749 = vpop.f32.mrf.mxu0
    %v750 = vadd.f32 0.0, %v749
    %v751 = vpop.f32.mrf.mxu0
    %v752 = vpop.f32.mrf.mxu0
    %753 = vdwg.mxu0
    %v754 = vadd.f32 %v368, %v707
    %v755 = vadd.f32 %v370, %v709
    %v756 = vadd.f32 %v441, %v748
    %v757 = vadd.f32 %v443, %v750
    %v758 = vxor.u32 %v754, 2147483648
    %v759 = vxor.u32 %v755, 2147483648
    %v760 = vxor.u32 %v756, 2147483648
    %v761 = vmul.f32 %v758, 1.442695
    %v762 = vpow.pop %v761
    %v763 = vmul.f32 %v759, 1.442695
    %v764 = vpow.pop %v763
    %v765 = vmul.f32 %v760, 1.442695
    %v766 = vpow.pop %v765
    %v767 = vadd.f32 %v762, 1.0
    %v768 = vadd.f32 %v764, 1.0
    %v769 = vadd.f32 %v766, 1.0
    %v770 = vrcp.pop %v767
    %v771 = vmul.f32 1.0, %v770
    %v772 = vrcp.pop %v768
    %v773 = vmul.f32 1.0, %v772
    %v774 = vrcp.pop %v769
    %v775 = vmul.f32 1.0, %v774
    %v776 = vtanh.pop %v757
    %v777 = vmul.f32 %v773, 0.0
    %v778 = vmul.f32 %v771, %v776
    %v779 = vadd.f32 %v777, %v778
    %v780 = vtanh.pop %v779
    %v781 = vmul.f32 %v775, %v780
    %v782 = vpack.c.bf16 %v781, %v781
    %783 = vmatprep.subr.bf16.mxu0 %v637
    %784 = vmatpush1.bf16.msra.mxu0 %v636
    %785 = vmatprep.subr.bf16.mxu0 %v633
    %786 = vmatpush1.bf16.msra.mxu0 %v632
    %787 = vmatprep.subr.bf16.mxu0 %v629
    %788 = vmatpush1.bf16.msra.mxu0 %v628
    %789 = vmatprep.subr.bf16.mxu0 %v625
    %790 = vmatpush1.bf16.msra.mxu0 %v624
    %791 = vmatprep.subr.bf16.mxu0 %v621
    %792 = vmatpush1.bf16.msra.mxu0 %v620
    %793 = vmatprep.subr.bf16.mxu0 %v617
    %794 = vmatpush1.bf16.msra.mxu0 %v616
    %795 = vmatprep.subr.bf16.mxu0 %v613
    %796 = vmatpush1.bf16.msra.mxu0 %v612
    %797 = vmatprep.subr.bf16.mxu0 %v609
    %798 = vmatpush1.bf16.msra.mxu0 %v608
    %799 = vmatprep.subr.bf16.mxu0 0
    %800 = vmatpush2.bf16.msra.mxu0 0
    %801 = vmatprep.subr.bf16.mxu0 0
    %802 = vmatpush2.bf16.msra.mxu0 0
    %803 = vmatprep.subr.bf16.mxu0 0
    %804 = vmatpush2.bf16.msra.mxu0 0
    %805 = vmatprep.subr.bf16.mxu0 0
    %806 = vmatpush2.bf16.msra.mxu0 0
    %807 = vmatprep.subr.bf16.mxu0 0
    %808 = vmatpush2.bf16.msra.mxu0 0
    %809 = vmatprep.subr.bf16.mxu0 0
    %810 = vmatpush2.bf16.msra.mxu0 0
    %811 = vmatprep.subr.bf16.mxu0 0
    %812 = vmatpush2.bf16.msra.mxu0 0
    %813 = vmatprep.subr.bf16.mxu0 0
    %814 = vmatpush2.bf16.msra.mxu0 0
    %815 = vmatprep.mubr.bf16.mxu0 0
    %816 = vmatmul.mubr.bf16.gmra.mxu0 %v782
    %v817 = vpop.f32.mrf.mxu0
    %v818 = vadd.f32 0.0, %v817
    %v819 = vpop.f32.mrf.mxu0
    %v820 = vadd.f32 0.0, %v819
    %v821 = vpop.f32.mrf.mxu0
    %v822 = vpop.f32.mrf.mxu0
    %823 = vdwg.mxu0
    %824 = vmatprep.subr.bf16.mxu0 %v639
    %825 = vmatpush1.bf16.msra.mxu0 %v638
    %826 = vmatprep.subr.bf16.mxu0 %v635
    %827 = vmatpush1.bf16.msra.mxu0 %v634
    %828 = vmatprep.subr.bf16.mxu0 %v631
    %829 = vmatpush1.bf16.msra.mxu0 %v630
    %830 = vmatprep.subr.bf16.mxu0 %v627
    %831 = vmatpush1.bf16.msra.mxu0 %v626
    %832 = vmatprep.subr.bf16.mxu0 %v623
    %833 = vmatpush1.bf16.msra.mxu0 %v622
    %834 = vmatprep.subr.bf16.mxu0 %v619
    %835 = vmatpush1.bf16.msra.mxu0 %v618
    %836 = vmatprep.subr.bf16.mxu0 %v615
    %837 = vmatpush1.bf16.msra.mxu0 %v614
    %838 = vmatprep.subr.bf16.mxu0 %v611
    %839 = vmatpush1.bf16.msra.mxu0 %v610
    %840 = vmatprep.subr.bf16.mxu0 0
    %841 = vmatpush2.bf16.msra.mxu0 0
    %842 = vmatprep.subr.bf16.mxu0 0
    %843 = vmatpush2.bf16.msra.mxu0 0
    %844 = vmatprep.subr.bf16.mxu0 0
    %845 = vmatpush2.bf16.msra.mxu0 0
    %846 = vmatprep.subr.bf16.mxu0 0
    %847 = vmatpush2.bf16.msra.mxu0 0
    %848 = vmatprep.subr.bf16.mxu0 0
    %849 = vmatpush2.bf16.msra.mxu0 0
    %850 = vmatprep.subr.bf16.mxu0 0
    %851 = vmatpush2.bf16.msra.mxu0 0
    %852 = vmatprep.subr.bf16.mxu0 0
    %853 = vmatpush2.bf16.msra.mxu0 0
    %854 = vmatprep.subr.bf16.mxu0 0
    %855 = vmatpush2.bf16.msra.mxu0 0
    %856 = vmatprep.mubr.bf16.mxu0 0
    %857 = vmatmul.mubr.bf16.gmra.mxu0 %v782
    %v858 = vpop.f32.mrf.mxu0
    %v859 = vadd.f32 0.0, %v858
    %v860 = vpop.f32.mrf.mxu0
    %v861 = vadd.f32 0.0, %v860
    %v862 = vpop.f32.mrf.mxu0
    %v863 = vpop.f32.mrf.mxu0
    %864 = vdwg.mxu0
    %v865 = vadd.f32 %v372, %v818
    %v866 = vadd.f32 %v374, %v820
    %v867 = vadd.f32 %v445, %v859
    %v868 = vadd.f32 %v447, %v861
    %v869 = vxor.u32 %v865, 2147483648
    %v870 = vxor.u32 %v866, 2147483648
    %v871 = vxor.u32 %v867, 2147483648
    %v872 = vmul.f32 %v869, 1.442695
    %v873 = vpow.pop %v872
    %v874 = vmul.f32 %v870, 1.442695
    %v875 = vpow.pop %v874
    %v876 = vmul.f32 %v871, 1.442695
    %v877 = vpow.pop %v876
    %v878 = vadd.f32 %v873, 1.0
    %v879 = vadd.f32 %v875, 1.0
    %v880 = vadd.f32 %v877, 1.0
    %v881 = vrcp.pop %v878
    %v882 = vmul.f32 1.0, %v881
    %v883 = vrcp.pop %v879
    %v884 = vmul.f32 1.0, %v883
    %v885 = vrcp.pop %v880
    %v886 = vmul.f32 1.0, %v885
    %v887 = vtanh.pop %v868
    %v888 = vmul.f32 %v884, %v779
    %v889 = vmul.f32 %v882, %v887
    %v890 = vadd.f32 %v888, %v889
    %v891 = vtanh.pop %v890
    %v892 = vmul.f32 %v886, %v891
    %s893 = smul.u32 4, 32
    %s894 = smul.u32 %s893, 4
    %s895 = sshll.u32 %s894, 4
    %896 = dma.done [#allocation3], %s895
    %v897 = vld [vmem:[#allocation2] sm:$0xff]
    %v898 = vld [vmem:[#allocation2 + $0x8] sm:$0xff]
    %v899 = vld [vmem:[#allocation2 + $0x10] sm:$0xff]
    %v900 = vld [vmem:[#allocation2 + $0x18] sm:$0xff]
    %v901 = vld [vmem:[#allocation2 + $0x20] sm:$0xff]
    %v902 = vld [vmem:[#allocation2 + $0x28] sm:$0xff]
    %v903 = vld [vmem:[#allocation2 + $0x30] sm:$0xff]
    %v904 = vld [vmem:[#allocation2 + $0x38] sm:$0xff]
    %v905 = vld [vmem:[#allocation2 + $0x40] sm:$0xff]
    %v906 = vld [vmem:[#allocation2 + $0x48] sm:$0xff]
    %v907 = vld [vmem:[#allocation2 + $0x50] sm:$0xff]
    %v908 = vld [vmem:[#allocation2 + $0x58] sm:$0xff]
    %v909 = vld [vmem:[#allocation2 + $0x60] sm:$0xff]
    %v910 = vld [vmem:[#allocation2 + $0x68] sm:$0xff]
    %v911 = vld [vmem:[#allocation2 + $0x70] sm:$0xff]
    %v912 = vld [vmem:[#allocation2 + $0x78] sm:$0xff]
    %v913 = vld [vmem:[#allocation2 + $0x80] sm:$0xff]
    %v914 = vld [vmem:[#allocation2 + $0x88] sm:$0xff]
    %v915 = vld [vmem:[#allocation2 + $0x90] sm:$0xff]
    %v916 = vld [vmem:[#allocation2 + $0x98] sm:$0xff]
    %v917 = vld [vmem:[#allocation2 + $0xa0] sm:$0xff]
    %v918 = vld [vmem:[#allocation2 + $0xa8] sm:$0xff]
    %v919 = vld [vmem:[#allocation2 + $0xb0] sm:$0xff]
    %v920 = vld [vmem:[#allocation2 + $0xb8] sm:$0xff]
    %v921 = vld [vmem:[#allocation2 + $0xc0] sm:$0xff]
    %v922 = vld [vmem:[#allocation2 + $0xc8] sm:$0xff]
    %v923 = vld [vmem:[#allocation2 + $0xd0] sm:$0xff]
    %v924 = vld [vmem:[#allocation2 + $0xd8] sm:$0xff]
    %v925 = vld [vmem:[#allocation2 + $0xe0] sm:$0xff]
    %v926 = vld [vmem:[#allocation2 + $0xe8] sm:$0xff]
    %v927 = vld [vmem:[#allocation2 + $0xf0] sm:$0xff]
    %v928 = vld [vmem:[#allocation2 + $0xf8] sm:$0xff]
    %v929 = vld [vmem:[#allocation2 + $0x100] sm:$0xff]
    %v930 = vld [vmem:[#allocation2 + $0x108] sm:$0xff]
    %v931 = vld [vmem:[#allocation2 + $0x110] sm:$0xff]
    %v932 = vld [vmem:[#allocation2 + $0x118] sm:$0xff]
    %v933 = vld [vmem:[#allocation2 + $0x120] sm:$0xff]
    %v934 = vld [vmem:[#allocation2 + $0x128] sm:$0xff]
    %v935 = vld [vmem:[#allocation2 + $0x130] sm:$0xff]
    %v936 = vld [vmem:[#allocation2 + $0x138] sm:$0xff]
    %v937 = vld [vmem:[#allocation2 + $0x140] sm:$0xff]
    %v938 = vld [vmem:[#allocation2 + $0x148] sm:$0xff]
    %v939 = vld [vmem:[#allocation2 + $0x150] sm:$0xff]
    %v940 = vld [vmem:[#allocation2 + $0x158] sm:$0xff]
    %v941 = vld [vmem:[#allocation2 + $0x160] sm:$0xff]
    %v942 = vld [vmem:[#allocation2 + $0x168] sm:$0xff]
    %v943 = vld [vmem:[#allocation2 + $0x170] sm:$0xff]
    %v944 = vld [vmem:[#allocation2 + $0x178] sm:$0xff]
    %v945 = vld [vmem:[#allocation2 + $0x180] sm:$0xff]
    %v946 = vld [vmem:[#allocation2 + $0x188] sm:$0xff]
    %v947 = vld [vmem:[#allocation2 + $0x190] sm:$0xff]
    %v948 = vld [vmem:[#allocation2 + $0x198] sm:$0xff]
    %v949 = vld [vmem:[#allocation2 + $0x1a0] sm:$0xff]
    %v950 = vld [vmem:[#allocation2 + $0x1a8] sm:$0xff]
    %v951 = vld [vmem:[#allocation2 + $0x1b0] sm:$0xff]
    %v952 = vld [vmem:[#allocation2 + $0x1b8] sm:$0xff]
    %v953 = vld [vmem:[#allocation2 + $0x1c0] sm:$0xff]
    %v954 = vld [vmem:[#allocation2 + $0x1c8] sm:$0xff]
    %v955 = vld [vmem:[#allocation2 + $0x1d0] sm:$0xff]
    %v956 = vld [vmem:[#allocation2 + $0x1d8] sm:$0xff]
    %v957 = vld [vmem:[#allocation2 + $0x1e0] sm:$0xff]
    %v958 = vld [vmem:[#allocation2 + $0x1e8] sm:$0xff]
    %v959 = vld [vmem:[#allocation2 + $0x1f0] sm:$0xff]
    %v960 = vld [vmem:[#allocation2 + $0x1f8] sm:$0xff]
    %v961 = vpack.c.bf16 0.0, 0.0
    %v963 = vlaneseq
    %v964 = vshrl.u32 %v963, 7
    %v965 = vsub.s32 0, %v964
    %v966 = vrot.slane %v511, %v965
    %v967 = vlaneseq
    %v968 = vshrl.u32 %v967, 7
    %v969 = vsub.s32 1, %v968
    %v970 = vrot.slane %v511, %v969
    %v971 = vlaneseq
    %v972 = vshrl.u32 %v971, 7
    %v973 = vsub.s32 2, %v972
    %v974 = vrot.slane %v511, %v973
    %v975 = vlaneseq
    %v976 = vshrl.u32 %v975, 7
    %v977 = vsub.s32 3, %v976
    %v978 = vrot.slane %v511, %v977
    %v1047 = vunpack.c.l.b16 %v897
    %v1048 = vunpack.c.h.b16 %v897
    %v1049 = vunpack.c.l.b16 %v898
    %v1050 = vunpack.c.h.b16 %v898
    %v1051 = vunpack.c.l.b16 %v899
    %v1052 = vunpack.c.h.b16 %v899
    %v1053 = vunpack.c.l.b16 %v900
    %v1054 = vunpack.c.h.b16 %v900
    %v1055 = vunpack.c.l.b16 %v901
    %v1056 = vunpack.c.h.b16 %v901
    %v1057 = vunpack.c.l.b16 %v902
    %v1058 = vunpack.c.h.b16 %v902
    %v1059 = vunpack.c.l.b16 %v903
    %v1060 = vunpack.c.h.b16 %v903
    %v1061 = vunpack.c.l.b16 %v904
    %v1062 = vunpack.c.h.b16 %v904
    %v1063 = vunpack.c.l.b16 %v905
    %v1064 = vunpack.c.h.b16 %v905
    %v1065 = vunpack.c.l.b16 %v906
    %v1066 = vunpack.c.h.b16 %v906
    %v1067 = vunpack.c.l.b16 %v907
    %v1068 = vunpack.c.h.b16 %v907
    %v1069 = vunpack.c.l.b16 %v908
    %v1070 = vunpack.c.h.b16 %v908
    %v1071 = vunpack.c.l.b16 %v909
    %v1072 = vunpack.c.h.b16 %v909
    %v1073 = vunpack.c.l.b16 %v910
    %v1074 = vunpack.c.h.b16 %v910
    %v1075 = vunpack.c.l.b16 %v911
    %v1076 = vunpack.c.h.b16 %v911
    %v1077 = vunpack.c.l.b16 %v912
    %v1078 = vunpack.c.h.b16 %v912
    %v1079 = vunpack.c.l.b16 %v913
    %v1080 = vunpack.c.h.b16 %v913
    %v1081 = vunpack.c.l.b16 %v914
    %v1082 = vunpack.c.h.b16 %v914
    %v1083 = vunpack.c.l.b16 %v915
    %v1084 = vunpack.c.h.b16 %v915
    %v1085 = vunpack.c.l.b16 %v916
    %v1086 = vunpack.c.h.b16 %v916
    %v1087 = vunpack.c.l.b16 %v917
    %v1088 = vunpack.c.h.b16 %v917
    %v1089 = vunpack.c.l.b16 %v918
    %v1090 = vunpack.c.h.b16 %v918
    %v1091 = vunpack.c.l.b16 %v919
    %v1092 = vunpack.c.h.b16 %v919
    %v1093 = vunpack.c.l.b16 %v920
    %v1094 = vunpack.c.h.b16 %v920
    %v1095 = vunpack.c.l.b16 %v921
    %v1096 = vunpack.c.h.b16 %v921
    %v1097 = vunpack.c.l.b16 %v922
    %v1098 = vunpack.c.h.b16 %v922
    %v1099 = vunpack.c.l.b16 %v923
    %v1100 = vunpack.c.h.b16 %v923
    %v1101 = vunpack.c.l.b16 %v924
    %v1102 = vunpack.c.h.b16 %v924
    %v1103 = vunpack.c.l.b16 %v925
    %v1104 = vunpack.c.h.b16 %v925
    %v1105 = vunpack.c.l.b16 %v926
    %v1106 = vunpack.c.h.b16 %v926
    %v1107 = vunpack.c.l.b16 %v927
    %v1108 = vunpack.c.h.b16 %v927
    %v1109 = vunpack.c.l.b16 %v928
    %v1110 = vunpack.c.h.b16 %v928
    %v1111 = vunpack.c.l.b16 %v929
    %v1112 = vunpack.c.h.b16 %v929
    %v1113 = vunpack.c.l.b16 %v930
    %v1114 = vunpack.c.h.b16 %v930
    %v1115 = vunpack.c.l.b16 %v931
    %v1116 = vunpack.c.h.b16 %v931
    %v1117 = vunpack.c.l.b16 %v932
    %v1118 = vunpack.c.h.b16 %v932
    %v1119 = vunpack.c.l.b16 %v933
    %v1120 = vunpack.c.h.b16 %v933
    %v1121 = vunpack.c.l.b16 %v934
    %v1122 = vunpack.c.h.b16 %v934
    %v1123 = vunpack.c.l.b16 %v935
    %v1124 = vunpack.c.h.b16 %v935
    %v1125 = vunpack.c.l.b16 %v936
    %v1126 = vunpack.c.h.b16 %v936
    %v1127 = vunpack.c.l.b16 %v937
    %v1128 = vunpack.c.h.b16 %v937
    %v1129 = vunpack.c.l.b16 %v938
    %v1130 = vunpack.c.h.b16 %v938
    %v1131 = vunpack.c.l.b16 %v939
    %v1132 = vunpack.c.h.b16 %v939
    %v1133 = vunpack.c.l.b16 %v940
    %v1134 = vunpack.c.h.b16 %v940
    %v1135 = vunpack.c.l.b16 %v941
    %v1136 = vunpack.c.h.b16 %v941
    %v1137 = vunpack.c.l.b16 %v942
    %v1138 = vunpack.c.h.b16 %v942
    %v1139 = vunpack.c.l.b16 %v943
    %v1140 = vunpack.c.h.b16 %v943
    %v1141 = vunpack.c.l.b16 %v944
    %v1142 = vunpack.c.h.b16 %v944
    %v1143 = vunpack.c.l.b16 %v945
    %v1144 = vunpack.c.h.b16 %v945
    %v1145 = vunpack.c.l.b16 %v946
    %v1146 = vunpack.c.h.b16 %v946
    %v1147 = vunpack.c.l.b16 %v947
    %v1148 = vunpack.c.h.b16 %v947
    %v1149 = vunpack.c.l.b16 %v948
    %v1150 = vunpack.c.h.b16 %v948
    %v1151 = vunpack.c.l.b16 %v949
    %v1152 = vunpack.c.h.b16 %v949
    %v1153 = vunpack.c.l.b16 %v950
    %v1154 = vunpack.c.h.b16 %v950
    %v1155 = vunpack.c.l.b16 %v951
    %v1156 = vunpack.c.h.b16 %v951
    %v1157 = vunpack.c.l.b16 %v952
    %v1158 = vunpack.c.h.b16 %v952
    %v1159 = vunpack.c.l.b16 %v953
    %v1160 = vunpack.c.h.b16 %v953
    %v1161 = vunpack.c.l.b16 %v954
    %v1162 = vunpack.c.h.b16 %v954
    %v1163 = vunpack.c.l.b16 %v955
    %v1164 = vunpack.c.h.b16 %v955
    %v1165 = vunpack.c.l.b16 %v956
    %v1166 = vunpack.c.h.b16 %v956
    %v1167 = vunpack.c.l.b16 %v957
    %v1168 = vunpack.c.h.b16 %v957
    %v1169 = vunpack.c.l.b16 %v958
    %v1170 = vunpack.c.h.b16 %v958
    %v1171 = vunpack.c.l.b16 %v959
    %v1172 = vunpack.c.h.b16 %v959
    %v1173 = vunpack.c.l.b16 %v960
    %v1174 = vunpack.c.h.b16 %v960
    %v1175 = vpack.c.b16 %v1051, %v1047
    %v1176 = vpack.c.b16 %v1052, %v1048
    %v1177 = vpack.c.b16 %v1053, %v1049
    %v1178 = vpack.c.b16 %v1054, %v1050
    %v1179 = vpack.c.b16 %v1059, %v1055
    %v1180 = vpack.c.b16 %v1060, %v1056
    %v1181 = vpack.c.b16 %v1061, %v1057
    %v1182 = vpack.c.b16 %v1062, %v1058
    %v1183 = vpack.c.b16 %v1067, %v1063
    %v1184 = vpack.c.b16 %v1068, %v1064
    %v1185 = vpack.c.b16 %v1069, %v1065
    %v1186 = vpack.c.b16 %v1070, %v1066
    %v1187 = vpack.c.b16 %v1075, %v1071
    %v1188 = vpack.c.b16 %v1076, %v1072
    %v1189 = vpack.c.b16 %v1077, %v1073
    %v1190 = vpack.c.b16 %v1078, %v1074
    %v1191 = vpack.c.b16 %v1083, %v1079
    %v1192 = vpack.c.b16 %v1084, %v1080
    %v1193 = vpack.c.b16 %v1085, %v1081
    %v1194 = vpack.c.b16 %v1086, %v1082
    %v1195 = vpack.c.b16 %v1091, %v1087
    %v1196 = vpack.c.b16 %v1092, %v1088
    %v1197 = vpack.c.b16 %v1093, %v1089
    %v1198 = vpack.c.b16 %v1094, %v1090
    %v1199 = vpack.c.b16 %v1099, %v1095
    %v1200 = vpack.c.b16 %v1100, %v1096
    %v1201 = vpack.c.b16 %v1101, %v1097
    %v1202 = vpack.c.b16 %v1102, %v1098
    %v1203 = vpack.c.b16 %v1107, %v1103
    %v1204 = vpack.c.b16 %v1108, %v1104
    %v1205 = vpack.c.b16 %v1109, %v1105
    %v1206 = vpack.c.b16 %v1110, %v1106
    %v1207 = vpack.c.b16 %v1115, %v1111
    %v1208 = vpack.c.b16 %v1116, %v1112
    %v1209 = vpack.c.b16 %v1117, %v1113
    %v1210 = vpack.c.b16 %v1118, %v1114
    %v1211 = vpack.c.b16 %v1123, %v1119
    %v1212 = vpack.c.b16 %v1124, %v1120
    %v1213 = vpack.c.b16 %v1125, %v1121
    %v1214 = vpack.c.b16 %v1126, %v1122
    %v1215 = vpack.c.b16 %v1131, %v1127
    %v1216 = vpack.c.b16 %v1132, %v1128
    %v1217 = vpack.c.b16 %v1133, %v1129
    %v1218 = vpack.c.b16 %v1134, %v1130
    %v1219 = vpack.c.b16 %v1139, %v1135
    %v1220 = vpack.c.b16 %v1140, %v1136
    %v1221 = vpack.c.b16 %v1141, %v1137
    %v1222 = vpack.c.b16 %v1142, %v1138
    %v1223 = vpack.c.b16 %v1147, %v1143
    %v1224 = vpack.c.b16 %v1148, %v1144
    %v1225 = vpack.c.b16 %v1149, %v1145
    %v1226 = vpack.c.b16 %v1150, %v1146
    %v1227 = vpack.c.b16 %v1155, %v1151
    %v1228 = vpack.c.b16 %v1156, %v1152
    %v1229 = vpack.c.b16 %v1157, %v1153
    %v1230 = vpack.c.b16 %v1158, %v1154
    %v1231 = vpack.c.b16 %v1163, %v1159
    %v1232 = vpack.c.b16 %v1164, %v1160
    %v1233 = vpack.c.b16 %v1165, %v1161
    %v1234 = vpack.c.b16 %v1166, %v1162
    %v1235 = vpack.c.b16 %v1171, %v1167
    %v1236 = vpack.c.b16 %v1172, %v1168
    %v1237 = vpack.c.b16 %v1173, %v1169
    %v1238 = vpack.c.b16 %v1174, %v1170
    %1303 = vmatprep.subr.bf16.mxu0 %v1204
    %1304 = vmatpush1.bf16.msra.mxu0 %v1203
    %1305 = vmatprep.subr.bf16.mxu0 %v1200
    %1306 = vmatpush1.bf16.msra.mxu0 %v1199
    %1307 = vmatprep.subr.bf16.mxu0 %v1196
    %1308 = vmatpush1.bf16.msra.mxu0 %v1195
    %1309 = vmatprep.subr.bf16.mxu0 %v1192
    %1310 = vmatpush1.bf16.msra.mxu0 %v1191
    %1311 = vmatprep.subr.bf16.mxu0 %v1188
    %1312 = vmatpush1.bf16.msra.mxu0 %v1187
    %1313 = vmatprep.subr.bf16.mxu0 %v1184
    %1314 = vmatpush1.bf16.msra.mxu0 %v1183
    %1315 = vmatprep.subr.bf16.mxu0 %v1180
    %1316 = vmatpush1.bf16.msra.mxu0 %v1179
    %1317 = vmatprep.subr.bf16.mxu0 %v1176
    %1318 = vmatpush1.bf16.msra.mxu0 %v1175
    %1319 = vmatprep.subr.bf16.mxu0 %v1236
    %1320 = vmatpush2.bf16.msra.mxu0 %v1235
    %1321 = vmatprep.subr.bf16.mxu0 %v1232
    %1322 = vmatpush2.bf16.msra.mxu0 %v1231
    %1323 = vmatprep.subr.bf16.mxu0 %v1228
    %1324 = vmatpush2.bf16.msra.mxu0 %v1227
    %1325 = vmatprep.subr.bf16.mxu0 %v1224
    %1326 = vmatpush2.bf16.msra.mxu0 %v1223
    %1327 = vmatprep.subr.bf16.mxu0 %v1220
    %1328 = vmatpush2.bf16.msra.mxu0 %v1219
    %1329 = vmatprep.subr.bf16.mxu0 %v1216
    %1330 = vmatpush2.bf16.msra.mxu0 %v1215
    %1331 = vmatprep.subr.bf16.mxu0 %v1212
    %1332 = vmatpush2.bf16.msra.mxu0 %v1211
    %1333 = vmatprep.subr.bf16.mxu0 %v1208
    %1334 = vmatpush2.bf16.msra.mxu0 %v1207
    %1335 = vmatprep.mubr.bf16.mxu0 %v961
    %1336 = vmatmul.mubr.bf16.gmra.mxu0 %v782
    %v1337 = vpop.f32.mrf.mxu0
    %v1338 = vadd.f32 %v966, %v1337
    %v1339 = vpop.f32.mrf.mxu0
    %v1340 = vadd.f32 %v970, %v1339
    %v1341 = vpop.f32.mrf.mxu0
    %v1342 = vpop.f32.mrf.mxu0
    %1343 = vdwg.mxu0
    %1344 = vmatprep.subr.bf16.mxu0 %v1206
    %1345 = vmatpush1.bf16.msra.mxu0 %v1205
    %1346 = vmatprep.subr.bf16.mxu0 %v1202
    %1347 = vmatpush1.bf16.msra.mxu0 %v1201
    %1348 = vmatprep.subr.bf16.mxu0 %v1198
    %1349 = vmatpush1.bf16.msra.mxu0 %v1197
    %1350 = vmatprep.subr.bf16.mxu0 %v1194
    %1351 = vmatpush1.bf16.msra.mxu0 %v1193
    %1352 = vmatprep.subr.bf16.mxu0 %v1190
    %1353 = vmatpush1.bf16.msra.mxu0 %v1189
    %1354 = vmatprep.subr.bf16.mxu0 %v1186
    %1355 = vmatpush1.bf16.msra.mxu0 %v1185
    %1356 = vmatprep.subr.bf16.mxu0 %v1182
    %1357 = vmatpush1.bf16.msra.mxu0 %v1181
    %1358 = vmatprep.subr.bf16.mxu0 %v1178
    %1359 = vmatpush1.bf16.msra.mxu0 %v1177
    %1360 = vmatprep.subr.bf16.mxu0 %v1238
    %1361 = vmatpush2.bf16.msra.mxu0 %v1237
    %1362 = vmatprep.subr.bf16.mxu0 %v1234
    %1363 = vmatpush2.bf16.msra.mxu0 %v1233
    %1364 = vmatprep.subr.bf16.mxu0 %v1230
    %1365 = vmatpush2.bf16.msra.mxu0 %v1229
    %1366 = vmatprep.subr.bf16.mxu0 %v1226
    %1367 = vmatpush2.bf16.msra.mxu0 %v1225
    %1368 = vmatprep.subr.bf16.mxu0 %v1222
    %1369 = vmatpush2.bf16.msra.mxu0 %v1221
    %1370 = vmatprep.subr.bf16.mxu0 %v1218
    %1371 = vmatpush2.bf16.msra.mxu0 %v1217
    %1372 = vmatprep.subr.bf16.mxu0 %v1214
    %1373 = vmatpush2.bf16.msra.mxu0 %v1213
    %1374 = vmatprep.subr.bf16.mxu0 %v1210
    %1375 = vmatpush2.bf16.msra.mxu0 %v1209
    %1376 = vmatprep.mubr.bf16.mxu0 %v961
    %1377 = vmatmul.mubr.bf16.gmra.mxu0 %v782
    %v1378 = vpop.f32.mrf.mxu0
    %v1379 = vadd.f32 %v974, %v1378
    %v1380 = vpop.f32.mrf.mxu0
    %v1381 = vadd.f32 %v978, %v1380
    %v1382 = vpop.f32.mrf.mxu0
    %v1383 = vpop.f32.mrf.mxu0
    %1384 = vdwg.mxu0
    %v1385 = vxor.u32 %v1338, 2147483648
    %v1386 = vxor.u32 %v1340, 2147483648
    %v1387 = vxor.u32 %v1379, 2147483648
    %v1388 = vmul.f32 %v1385, 1.442695
    %v1389 = vpow.pop %v1388
    %v1390 = vmul.f32 %v1386, 1.442695
    %v1391 = vpow.pop %v1390
    %v1392 = vmul.f32 %v1387, 1.442695
    %v1393 = vpow.pop %v1392
    %v1394 = vadd.f32 %v1389, 1.0
    %v1395 = vadd.f32 %v1391, 1.0
    %v1396 = vadd.f32 %v1393, 1.0
    %v1397 = vrcp.pop %v1394
    %v1398 = vmul.f32 1.0, %v1397
    %v1399 = vrcp.pop %v1395
    %v1400 = vmul.f32 1.0, %v1399
    %v1401 = vrcp.pop %v1396
    %v1402 = vmul.f32 1.0, %v1401
    %v1403 = vtanh.pop %v1381
    %v1404 = vmul.f32 %v1400, 0.0
    %v1405 = vmul.f32 %v1398, %v1403
    %v1406 = vadd.f32 %v1404, %v1405
    %v1407 = vtanh.pop %v1406
    %v1408 = vmul.f32 %v1402, %v1407
    %v1409 = vpack.c.bf16 %v892, %v892
    %1410 = vmatprep.subr.bf16.mxu0 %v637
    %1411 = vmatpush1.bf16.msra.mxu0 %v636
    %1412 = vmatprep.subr.bf16.mxu0 %v633
    %1413 = vmatpush1.bf16.msra.mxu0 %v632
    %1414 = vmatprep.subr.bf16.mxu0 %v629
    %1415 = vmatpush1.bf16.msra.mxu0 %v628
    %1416 = vmatprep.subr.bf16.mxu0 %v625
    %1417 = vmatpush1.bf16.msra.mxu0 %v624
    %1418 = vmatprep.subr.bf16.mxu0 %v621
    %1419 = vmatpush1.bf16.msra.mxu0 %v620
    %1420 = vmatprep.subr.bf16.mxu0 %v617
    %1421 = vmatpush1.bf16.msra.mxu0 %v616
    %1422 = vmatprep.subr.bf16.mxu0 %v613
    %1423 = vmatpush1.bf16.msra.mxu0 %v612
    %1424 = vmatprep.subr.bf16.mxu0 %v609
    %1425 = vmatpush1.bf16.msra.mxu0 %v608
    %1426 = vmatprep.subr.bf16.mxu0 0
    %1427 = vmatpush2.bf16.msra.mxu0 0
    %1428 = vmatprep.subr.bf16.mxu0 0
    %1429 = vmatpush2.bf16.msra.mxu0 0
    %1430 = vmatprep.subr.bf16.mxu0 0
    %1431 = vmatpush2.bf16.msra.mxu0 0
    %1432 = vmatprep.subr.bf16.mxu0 0
    %1433 = vmatpush2.bf16.msra.mxu0 0
    %1434 = vmatprep.subr.bf16.mxu0 0
    %1435 = vmatpush2.bf16.msra.mxu0 0
    %1436 = vmatprep.subr.bf16.mxu0 0
    %1437 = vmatpush2.bf16.msra.mxu0 0
    %1438 = vmatprep.subr.bf16.mxu0 0
    %1439 = vmatpush2.bf16.msra.mxu0 0
    %1440 = vmatprep.subr.bf16.mxu0 0
    %1441 = vmatpush2.bf16.msra.mxu0 0
    %1442 = vmatprep.mubr.bf16.mxu0 0
    %1443 = vmatmul.mubr.bf16.gmra.mxu0 %v1409
    %v1444 = vpop.f32.mrf.mxu0
    %v1445 = vadd.f32 0.0, %v1444
    %v1446 = vpop.f32.mrf.mxu0
    %v1447 = vadd.f32 0.0, %v1446
    %v1448 = vpop.f32.mrf.mxu0
    %v1449 = vpop.f32.mrf.mxu0
    %1450 = vdwg.mxu0
    %1451 = vmatprep.subr.bf16.mxu0 %v639
    %1452 = vmatpush1.bf16.msra.mxu0 %v638
    %1453 = vmatprep.subr.bf16.mxu0 %v635
    %1454 = vmatpush1.bf16.msra.mxu0 %v634
    %1455 = vmatprep.subr.bf16.mxu0 %v631
    %1456 = vmatpush1.bf16.msra.mxu0 %v630
    %1457 = vmatprep.subr.bf16.mxu0 %v627
    %1458 = vmatpush1.bf16.msra.mxu0 %v626
    %1459 = vmatprep.subr.bf16.mxu0 %v623
    %1460 = vmatpush1.bf16.msra.mxu0 %v622
    %1461 = vmatprep.subr.bf16.mxu0 %v619
    %1462 = vmatpush1.bf16.msra.mxu0 %v618
    %1463 = vmatprep.subr.bf16.mxu0 %v615
    %1464 = vmatpush1.bf16.msra.mxu0 %v614
    %1465 = vmatprep.subr.bf16.mxu0 %v611
    %1466 = vmatpush1.bf16.msra.mxu0 %v610
    %1467 = vmatprep.subr.bf16.mxu0 0
    %1468 = vmatpush2.bf16.msra.mxu0 0
    %1469 = vmatprep.subr.bf16.mxu0 0
    %1470 = vmatpush2.bf16.msra.mxu0 0
    %1471 = vmatprep.subr.bf16.mxu0 0
    %1472 = vmatpush2.bf16.msra.mxu0 0
    %1473 = vmatprep.subr.bf16.mxu0 0
    %1474 = vmatpush2.bf16.msra.mxu0 0
    %1475 = vmatprep.subr.bf16.mxu0 0
    %1476 = vmatpush2.bf16.msra.mxu0 0
    %1477 = vmatprep.subr.bf16.mxu0 0
    %1478 = vmatpush2.bf16.msra.mxu0 0
    %1479 = vmatprep.subr.bf16.mxu0 0
    %1480 = vmatpush2.bf16.msra.mxu0 0
    %1481 = vmatprep.subr.bf16.mxu0 0
    %1482 = vmatpush2.bf16.msra.mxu0 0
    %1483 = vmatprep.mubr.bf16.mxu0 0
    %1484 = vmatmul.mubr.bf16.gmra.mxu0 %v1409
    %v1485 = vpop.f32.mrf.mxu0
    %v1486 = vadd.f32 0.0, %v1485
    %v1487 = vpop.f32.mrf.mxu0
    %v1488 = vadd.f32 0.0, %v1487
    %v1489 = vpop.f32.mrf.mxu0
    %v1490 = vpop.f32.mrf.mxu0
    %1491 = vdwg.mxu0
    %v1492 = vadd.f32 %v378, %v1445
    %v1493 = vadd.f32 %v380, %v1447
    %v1494 = vadd.f32 %v451, %v1486
    %v1495 = vadd.f32 %v453, %v1488
    %v1496 = vxor.u32 %v1492, 2147483648
    %v1497 = vxor.u32 %v1493, 2147483648
    %v1498 = vxor.u32 %v1494, 2147483648
    %v1499 = vmul.f32 %v1496, 1.442695
    %v1500 = vpow.pop %v1499
    %v1501 = vmul.f32 %v1497, 1.442695
    %v1502 = vpow.pop %v1501
    %v1503 = vmul.f32 %v1498, 1.442695
    %v1504 = vpow.pop %v1503
    %v1505 = vadd.f32 %v1500, 1.0
    %v1506 = vadd.f32 %v1502, 1.0
    %v1507 = vadd.f32 %v1504, 1.0
    %v1508 = vrcp.pop %v1505
    %v1509 = vmul.f32 1.0, %v1508
    %v1510 = vrcp.pop %v1506
    %v1511 = vmul.f32 1.0, %v1510
    %v1512 = vrcp.pop %v1507
    %v1513 = vmul.f32 1.0, %v1512
    %v1514 = vtanh.pop %v1495
    %v1515 = vmul.f32 %v1511, %v890
    %v1516 = vmul.f32 %v1509, %v1514
    %v1517 = vadd.f32 %v1515, %v1516
    %v1518 = vtanh.pop %v1517
    %v1519 = vmul.f32 %v1513, %v1518
    %v1520 = vpack.c.bf16 %v1408, %v1408
    %1521 = vmatprep.subr.bf16.mxu0 %v1204
    %1522 = vmatpush1.bf16.msra.mxu0 %v1203
    %1523 = vmatprep.subr.bf16.mxu0 %v1200
    %1524 = vmatpush1.bf16.msra.mxu0 %v1199
    %1525 = vmatprep.subr.bf16.mxu0 %v1196
    %1526 = vmatpush1.bf16.msra.mxu0 %v1195
    %1527 = vmatprep.subr.bf16.mxu0 %v1192
    %1528 = vmatpush1.bf16.msra.mxu0 %v1191
    %1529 = vmatprep.subr.bf16.mxu0 %v1188
    %1530 = vmatpush1.bf16.msra.mxu0 %v1187
    %1531 = vmatprep.subr.bf16.mxu0 %v1184
    %1532 = vmatpush1.bf16.msra.mxu0 %v1183
    %1533 = vmatprep.subr.bf16.mxu0 %v1180
    %1534 = vmatpush1.bf16.msra.mxu0 %v1179
    %1535 = vmatprep.subr.bf16.mxu0 %v1176
    %1536 = vmatpush1.bf16.msra.mxu0 %v1175
    %1537 = vmatprep.subr.bf16.mxu0 %v1236
    %1538 = vmatpush2.bf16.msra.mxu0 %v1235
    %1539 = vmatprep.subr.bf16.mxu0 %v1232
    %1540 = vmatpush2.bf16.msra.mxu0 %v1231
    %1541 = vmatprep.subr.bf16.mxu0 %v1228
    %1542 = vmatpush2.bf16.msra.mxu0 %v1227
    %1543 = vmatprep.subr.bf16.mxu0 %v1224
    %1544 = vmatpush2.bf16.msra.mxu0 %v1223
    %1545 = vmatprep.subr.bf16.mxu0 %v1220
    %1546 = vmatpush2.bf16.msra.mxu0 %v1219
    %1547 = vmatprep.subr.bf16.mxu0 %v1216
    %1548 = vmatpush2.bf16.msra.mxu0 %v1215
    %1549 = vmatprep.subr.bf16.mxu0 %v1212
    %1550 = vmatpush2.bf16.msra.mxu0 %v1211
    %1551 = vmatprep.subr.bf16.mxu0 %v1208
    %1552 = vmatpush2.bf16.msra.mxu0 %v1207
    %1553 = vmatprep.mubr.bf16.mxu0 %v1520
    %1554 = vmatmul.mubr.bf16.gmra.mxu0 %v1409
    %v1555 = vpop.f32.mrf.mxu0
    %v1556 = vadd.f32 %v966, %v1555
    %v1557 = vpop.f32.mrf.mxu0
    %v1558 = vadd.f32 %v970, %v1557
    %v1559 = vpop.f32.mrf.mxu0
    %v1560 = vpop.f32.mrf.mxu0
    %1561 = vdwg.mxu0
    %1562 = vmatprep.subr.bf16.mxu0 %v1206
    %1563 = vmatpush1.bf16.msra.mxu0 %v1205
    %1564 = vmatprep.subr.bf16.mxu0 %v1202
    %1565 = vmatpush1.bf16.msra.mxu0 %v1201
    %1566 = vmatprep.subr.bf16.mxu0 %v1198
    %1567 = vmatpush1.bf16.msra.mxu0 %v1197
    %1568 = vmatprep.subr.bf16.mxu0 %v1194
    %1569 = vmatpush1.bf16.msra.mxu0 %v1193
    %1570 = vmatprep.subr.bf16.mxu0 %v1190
    %1571 = vmatpush1.bf16.msra.mxu0 %v1189
    %1572 = vmatprep.subr.bf16.mxu0 %v1186
    %1573 = vmatpush1.bf16.msra.mxu0 %v1185
    %1574 = vmatprep.subr.bf16.mxu0 %v1182
    %1575 = vmatpush1.bf16.msra.mxu0 %v1181
    %1576 = vmatprep.subr.bf16.mxu0 %v1178
    %1577 = vmatpush1.bf16.msra.mxu0 %v1177
    %1578 = vmatprep.subr.bf16.mxu0 %v1238
    %1579 = vmatpush2.bf16.msra.mxu0 %v1237
    %1580 = vmatprep.subr.bf16.mxu0 %v1234
    %1581 = vmatpush2.bf16.msra.mxu0 %v1233
    %1582 = vmatprep.subr.bf16.mxu0 %v1230
    %1583 = vmatpush2.bf16.msra.mxu0 %v1229
    %1584 = vmatprep.subr.bf16.mxu0 %v1226
    %1585 = vmatpush2.bf16.msra.mxu0 %v1225
    %1586 = vmatprep.subr.bf16.mxu0 %v1222
    %1587 = vmatpush2.bf16.msra.mxu0 %v1221
    %1588 = vmatprep.subr.bf16.mxu0 %v1218
    %1589 = vmatpush2.bf16.msra.mxu0 %v1217
    %1590 = vmatprep.subr.bf16.mxu0 %v1214
    %1591 = vmatpush2.bf16.msra.mxu0 %v1213
    %1592 = vmatprep.subr.bf16.mxu0 %v1210
    %1593 = vmatpush2.bf16.msra.mxu0 %v1209
    %1594 = vmatprep.mubr.bf16.mxu0 %v1520
    %1595 = vmatmul.mubr.bf16.gmra.mxu0 %v1409
    %v1596 = vpop.f32.mrf.mxu0
    %v1597 = vadd.f32 %v974, %v1596
    %v1598 = vpop.f32.mrf.mxu0
    %v1599 = vadd.f32 %v978, %v1598
    %v1600 = vpop.f32.mrf.mxu0
    %v1601 = vpop.f32.mrf.mxu0
    %1602 = vdwg.mxu0
    %v1603 = vxor.u32 %v1556, 2147483648
    %v1604 = vxor.u32 %v1558, 2147483648
    %v1605 = vxor.u32 %v1597, 2147483648
    %v1606 = vmul.f32 %v1603, 1.442695
    %v1607 = vpow.pop %v1606
    %v1608 = vmul.f32 %v1604, 1.442695
    %v1609 = vpow.pop %v1608
    %v1610 = vmul.f32 %v1605, 1.442695
    %v1611 = vpow.pop %v1610
    %v1612 = vadd.f32 %v1607, 1.0
    %v1613 = vadd.f32 %v1609, 1.0
    %v1614 = vadd.f32 %v1611, 1.0
    %v1615 = vrcp.pop %v1612
    %v1616 = vmul.f32 1.0, %v1615
    %v1617 = vrcp.pop %v1613
    %v1618 = vmul.f32 1.0, %v1617
    %v1619 = vrcp.pop %v1614
    %v1620 = vmul.f32 1.0, %v1619
    %v1621 = vtanh.pop %v1599
    %v1622 = vmul.f32 %v1618, %v1406
    %v1623 = vmul.f32 %v1616, %v1621
    %v1624 = vadd.f32 %v1622, %v1623
    %v1625 = vtanh.pop %v1624
    %v1626 = vmul.f32 %v1620, %v1625
    %v1627 = vpack.c.bf16 %v1519, %v1519
    %1628 = vmatprep.subr.bf16.mxu0 %v637
    %1629 = vmatpush1.bf16.msra.mxu0 %v636
    %1630 = vmatprep.subr.bf16.mxu0 %v633
    %1631 = vmatpush1.bf16.msra.mxu0 %v632
    %1632 = vmatprep.subr.bf16.mxu0 %v629
    %1633 = vmatpush1.bf16.msra.mxu0 %v628
    %1634 = vmatprep.subr.bf16.mxu0 %v625
    %1635 = vmatpush1.bf16.msra.mxu0 %v624
    %1636 = vmatprep.subr.bf16.mxu0 %v621
    %1637 = vmatpush1.bf16.msra.mxu0 %v620
    %1638 = vmatprep.subr.bf16.mxu0 %v617
    %1639 = vmatpush1.bf16.msra.mxu0 %v616
    %1640 = vmatprep.subr.bf16.mxu0 %v613
    %1641 = vmatpush1.bf16.msra.mxu0 %v612
    %1642 = vmatprep.subr.bf16.mxu0 %v609
    %1643 = vmatpush1.bf16.msra.mxu0 %v608
    %1644 = vmatprep.subr.bf16.mxu0 0
    %1645 = vmatpush2.bf16.msra.mxu0 0
    %1646 = vmatprep.subr.bf16.mxu0 0
    %1647 = vmatpush2.bf16.msra.mxu0 0
    %1648 = vmatprep.subr.bf16.mxu0 0
    %1649 = vmatpush2.bf16.msra.mxu0 0
    %1650 = vmatprep.subr.bf16.mxu0 0
    %1651 = vmatpush2.bf16.msra.mxu0 0
    %1652 = vmatprep.subr.bf16.mxu0 0
    %1653 = vmatpush2.bf16.msra.mxu0 0
    %1654 = vmatprep.subr.bf16.mxu0 0
    %1655 = vmatpush2.bf16.msra.mxu0 0
    %1656 = vmatprep.subr.bf16.mxu0 0
    %1657 = vmatpush2.bf16.msra.mxu0 0
    %1658 = vmatprep.subr.bf16.mxu0 0
    %1659 = vmatpush2.bf16.msra.mxu0 0
    %1660 = vmatprep.mubr.bf16.mxu0 0
    %1661 = vmatmul.mubr.bf16.gmra.mxu0 %v1627
    %v1662 = vpop.f32.mrf.mxu0
    %v1663 = vadd.f32 0.0, %v1662
    %v1664 = vpop.f32.mrf.mxu0
    %v1665 = vadd.f32 0.0, %v1664
    %v1666 = vpop.f32.mrf.mxu0
    %v1667 = vpop.f32.mrf.mxu0
    %1668 = vdwg.mxu0
    %1669 = vmatprep.subr.bf16.mxu0 %v639
    %1670 = vmatpush1.bf16.msra.mxu0 %v638
    %1671 = vmatprep.subr.bf16.mxu0 %v635
    %1672 = vmatpush1.bf16.msra.mxu0 %v634
    %1673 = vmatprep.subr.bf16.mxu0 %v631
    %1674 = vmatpush1.bf16.msra.mxu0 %v630
    %1675 = vmatprep.subr.bf16.mxu0 %v627
    %1676 = vmatpush1.bf16.msra.mxu0 %v626
    %1677 = vmatprep.subr.bf16.mxu0 %v623
    %1678 = vmatpush1.bf16.msra.mxu0 %v622
    %1679 = vmatprep.subr.bf16.mxu0 %v619
    %1680 = vmatpush1.bf16.msra.mxu0 %v618
    %1681 = vmatprep.subr.bf16.mxu0 %v615
    %1682 = vmatpush1.bf16.msra.mxu0 %v614
    %1683 = vmatprep.subr.bf16.mxu0 %v611
    %1684 = vmatpush1.bf16.msra.mxu0 %v610
    %1685 = vmatprep.subr.bf16.mxu0 0
    %1686 = vmatpush2.bf16.msra.mxu0 0
    %1687 = vmatprep.subr.bf16.mxu0 0
    %1688 = vmatpush2.bf16.msra.mxu0 0
    %1689 = vmatprep.subr.bf16.mxu0 0
    %1690 = vmatpush2.bf16.msra.mxu0 0
    %1691 = vmatprep.subr.bf16.mxu0 0
    %1692 = vmatpush2.bf16.msra.mxu0 0
    %1693 = vmatprep.subr.bf16.mxu0 0
    %1694 = vmatpush2.bf16.msra.mxu0 0
    %1695 = vmatprep.subr.bf16.mxu0 0
    %1696 = vmatpush2.bf16.msra.mxu0 0
    %1697 = vmatprep.subr.bf16.mxu0 0
    %1698 = vmatpush2.bf16.msra.mxu0 0
    %1699 = vmatprep.subr.bf16.mxu0 0
    %1700 = vmatpush2.bf16.msra.mxu0 0
    %1701 = vmatprep.mubr.bf16.mxu0 0
    %1702 = vmatmul.mubr.bf16.gmra.mxu0 %v1627
    %v1703 = vpop.f32.mrf.mxu0
    %v1704 = vadd.f32 0.0, %v1703
    %v1705 = vpop.f32.mrf.mxu0
    %v1706 = vadd.f32 0.0, %v1705
    %v1707 = vpop.f32.mrf.mxu0
    %v1708 = vpop.f32.mrf.mxu0
    %1709 = vdwg.mxu0
    %v1710 = vadd.f32 %v382, %v1663
    %v1711 = vadd.f32 %v384, %v1665
    %v1712 = vadd.f32 %v455, %v1704
    %v1713 = vadd.f32 %v457, %v1706
    %v1714 = vxor.u32 %v1710, 2147483648
    %v1715 = vxor.u32 %v1711, 2147483648
    %v1716 = vxor.u32 %v1712, 2147483648
    %v1717 = vmul.f32 %v1714, 1.442695
    %v1718 = vpow.pop %v1717
    %v1719 = vmul.f32 %v1715, 1.442695
    %v1720 = vpow.pop %v1719
    %v1721 = vmul.f32 %v1716, 1.442695
    %v1722 = vpow.pop %v1721
    %v1723 = vadd.f32 %v1718, 1.0
    %v1724 = vadd.f32 %v1720, 1.0
    %v1725 = vadd.f32 %v1722, 1.0
    %v1726 = vrcp.pop %v1723
    %v1727 = vmul.f32 1.0, %v1726
    %v1728 = vrcp.pop %v1724
    %v1729 = vmul.f32 1.0, %v1728
    %v1730 = vrcp.pop %v1725
    %v1731 = vmul.f32 1.0, %v1730
    %v1732 = vtanh.pop %v1713
    %v1733 = vmul.f32 %v1729, %v1517
    %v1734 = vmul.f32 %v1727, %v1732
    %v1735 = vadd.f32 %v1733, %v1734
    %v1736 = vtanh.pop %v1735
    %v1737 = vmul.f32 %v1731, %v1736
    %v1738 = vpack.c.bf16 %v1626, %v1626
    %1739 = vmatprep.subr.bf16.mxu0 %v1204
    %1740 = vmatpush1.bf16.msra.mxu0 %v1203
    %1741 = vmatprep.subr.bf16.mxu0 %v1200
    %1742 = vmatpush1.bf16.msra.mxu0 %v1199
    %1743 = vmatprep.subr.bf16.mxu0 %v1196
    %1744 = vmatpush1.bf16.msra.mxu0 %v1195
    %1745 = vmatprep.subr.bf16.mxu0 %v1192
    %1746 = vmatpush1.bf16.msra.mxu0 %v1191
    %1747 = vmatprep.subr.bf16.mxu0 %v1188
    %1748 = vmatpush1.bf16.msra.mxu0 %v1187
    %1749 = vmatprep.subr.bf16.mxu0 %v1184
    %1750 = vmatpush1.bf16.msra.mxu0 %v1183
    %1751 = vmatprep.subr.bf16.mxu0 %v1180
    %1752 = vmatpush1.bf16.msra.mxu0 %v1179
    %1753 = vmatprep.subr.bf16.mxu0 %v1176
    %1754 = vmatpush1.bf16.msra.mxu0 %v1175
    %1755 = vmatprep.subr.bf16.mxu0 %v1236
    %1756 = vmatpush2.bf16.msra.mxu0 %v1235
    %1757 = vmatprep.subr.bf16.mxu0 %v1232
    %1758 = vmatpush2.bf16.msra.mxu0 %v1231
    %1759 = vmatprep.subr.bf16.mxu0 %v1228
    %1760 = vmatpush2.bf16.msra.mxu0 %v1227
    %1761 = vmatprep.subr.bf16.mxu0 %v1224
    %1762 = vmatpush2.bf16.msra.mxu0 %v1223
    %1763 = vmatprep.subr.bf16.mxu0 %v1220
    %1764 = vmatpush2.bf16.msra.mxu0 %v1219
    %1765 = vmatprep.subr.bf16.mxu0 %v1216
    %1766 = vmatpush2.bf16.msra.mxu0 %v1215
    %1767 = vmatprep.subr.bf16.mxu0 %v1212
    %1768 = vmatpush2.bf16.msra.mxu0 %v1211
    %1769 = vmatprep.subr.bf16.mxu0 %v1208
    %1770 = vmatpush2.bf16.msra.mxu0 %v1207
    %1771 = vmatprep.mubr.bf16.mxu0 %v1738
    %1772 = vmatmul.mubr.bf16.gmra.mxu0 %v1627
    %v1773 = vpop.f32.mrf.mxu0
    %v1774 = vadd.f32 %v966, %v1773
    %v1775 = vpop.f32.mrf.mxu0
    %v1776 = vadd.f32 %v970, %v1775
    %v1777 = vpop.f32.mrf.mxu0
    %v1778 = vpop.f32.mrf.mxu0
    %1779 = vdwg.mxu0
    %1780 = vmatprep.subr.bf16.mxu0 %v1206
    %1781 = vmatpush1.bf16.msra.mxu0 %v1205
    %1782 = vmatprep.subr.bf16.mxu0 %v1202
    %1783 = vmatpush1.bf16.msra.mxu0 %v1201
    %1784 = vmatprep.subr.bf16.mxu0 %v1198
    %1785 = vmatpush1.bf16.msra.mxu0 %v1197
    %1786 = vmatprep.subr.bf16.mxu0 %v1194
    %1787 = vmatpush1.bf16.msra.mxu0 %v1193
    %1788 = vmatprep.subr.bf16.mxu0 %v1190
    %1789 = vmatpush1.bf16.msra.mxu0 %v1189
    %1790 = vmatprep.subr.bf16.mxu0 %v1186
    %1791 = vmatpush1.bf16.msra.mxu0 %v1185
    %1792 = vmatprep.subr.bf16.mxu0 %v1182
    %1793 = vmatpush1.bf16.msra.mxu0 %v1181
    %1794 = vmatprep.subr.bf16.mxu0 %v1178
    %1795 = vmatpush1.bf16.msra.mxu0 %v1177
    %1796 = vmatprep.subr.bf16.mxu0 %v1238
    %1797 = vmatpush2.bf16.msra.mxu0 %v1237
    %1798 = vmatprep.subr.bf16.mxu0 %v1234
    %1799 = vmatpush2.bf16.msra.mxu0 %v1233
    %1800 = vmatprep.subr.bf16.mxu0 %v1230
    %1801 = vmatpush2.bf16.msra.mxu0 %v1229
    %1802 = vmatprep.subr.bf16.mxu0 %v1226
    %1803 = vmatpush2.bf16.msra.mxu0 %v1225
    %1804 = vmatprep.subr.bf16.mxu0 %v1222
    %1805 = vmatpush2.bf16.msra.mxu0 %v1221
    %1806 = vmatprep.subr.bf16.mxu0 %v1218
    %1807 = vmatpush2.bf16.msra.mxu0 %v1217
    %1808 = vmatprep.subr.bf16.mxu0 %v1214
    %1809 = vmatpush2.bf16.msra.mxu0 %v1213
    %1810 = vmatprep.subr.bf16.mxu0 %v1210
    %1811 = vmatpush2.bf16.msra.mxu0 %v1209
    %1812 = vmatprep.mubr.bf16.mxu0 %v1738
    %1813 = vmatmul.mubr.bf16.gmra.mxu0 %v1627
    %v1814 = vpop.f32.mrf.mxu0
    %v1815 = vadd.f32 %v974, %v1814
    %v1816 = vpop.f32.mrf.mxu0
    %v1817 = vadd.f32 %v978, %v1816
    %v1818 = vpop.f32.mrf.mxu0
    %v1819 = vpop.f32.mrf.mxu0
    %1820 = vdwg.mxu0
    %v1821 = vxor.u32 %v1774, 2147483648
    %v1822 = vxor.u32 %v1776, 2147483648
    %v1823 = vxor.u32 %v1815, 2147483648
    %v1824 = vmul.f32 %v1821, 1.442695
    %v1825 = vpow.pop %v1824
    %v1826 = vmul.f32 %v1822, 1.442695
    %v1827 = vpow.pop %v1826
    %v1828 = vmul.f32 %v1823, 1.442695
    %v1829 = vpow.pop %v1828
    %v1830 = vadd.f32 %v1825, 1.0
    %v1831 = vadd.f32 %v1827, 1.0
    %v1832 = vadd.f32 %v1829, 1.0
    %v1833 = vrcp.pop %v1830
    %v1834 = vmul.f32 1.0, %v1833
    %v1835 = vrcp.pop %v1831
    %v1836 = vmul.f32 1.0, %v1835
    %v1837 = vrcp.pop %v1832
    %v1838 = vmul.f32 1.0, %v1837
    %v1839 = vtanh.pop %v1817
    %v1840 = vmul.f32 %v1836, %v1624
    %v1841 = vmul.f32 %v1834, %v1839
    %v1842 = vadd.f32 %v1840, %v1841
    %v1843 = vtanh.pop %v1842
    %v1844 = vmul.f32 %v1838, %v1843
    %v1845 = vpack.c.bf16 %v1737, %v1737
    %1846 = vmatprep.subr.bf16.mxu0 %v637
    %1847 = vmatpush1.bf16.msra.mxu0 %v636
    %1848 = vmatprep.subr.bf16.mxu0 %v633
    %1849 = vmatpush1.bf16.msra.mxu0 %v632
    %1850 = vmatprep.subr.bf16.mxu0 %v629
    %1851 = vmatpush1.bf16.msra.mxu0 %v628
    %1852 = vmatprep.subr.bf16.mxu0 %v625
    %1853 = vmatpush1.bf16.msra.mxu0 %v624
    %1854 = vmatprep.subr.bf16.mxu0 %v621
    %1855 = vmatpush1.bf16.msra.mxu0 %v620
    %1856 = vmatprep.subr.bf16.mxu0 %v617
    %1857 = vmatpush1.bf16.msra.mxu0 %v616
    %1858 = vmatprep.subr.bf16.mxu0 %v613
    %1859 = vmatpush1.bf16.msra.mxu0 %v612
    %1860 = vmatprep.subr.bf16.mxu0 %v609
    %1861 = vmatpush1.bf16.msra.mxu0 %v608
    %1862 = vmatprep.subr.bf16.mxu0 0
    %1863 = vmatpush2.bf16.msra.mxu0 0
    %1864 = vmatprep.subr.bf16.mxu0 0
    %1865 = vmatpush2.bf16.msra.mxu0 0
    %1866 = vmatprep.subr.bf16.mxu0 0
    %1867 = vmatpush2.bf16.msra.mxu0 0
    %1868 = vmatprep.subr.bf16.mxu0 0
    %1869 = vmatpush2.bf16.msra.mxu0 0
    %1870 = vmatprep.subr.bf16.mxu0 0
    %1871 = vmatpush2.bf16.msra.mxu0 0
    %1872 = vmatprep.subr.bf16.mxu0 0
    %1873 = vmatpush2.bf16.msra.mxu0 0
    %1874 = vmatprep.subr.bf16.mxu0 0
    %1875 = vmatpush2.bf16.msra.mxu0 0
    %1876 = vmatprep.subr.bf16.mxu0 0
    %1877 = vmatpush2.bf16.msra.mxu0 0
    %1878 = vmatprep.mubr.bf16.mxu0 0
    %1879 = vmatmul.mubr.bf16.gmra.mxu0 %v1845
    %v1880 = vpop.f32.mrf.mxu0
    %v1881 = vadd.f32 0.0, %v1880
    %v1882 = vpop.f32.mrf.mxu0
    %v1883 = vadd.f32 0.0, %v1882
    %v1884 = vpop.f32.mrf.mxu0
    %v1885 = vpop.f32.mrf.mxu0
    %1886 = vdwg.mxu0
    %1887 = vmatprep.subr.bf16.mxu0 %v639
    %1888 = vmatpush1.bf16.msra.mxu0 %v638
    %1889 = vmatprep.subr.bf16.mxu0 %v635
    %1890 = vmatpush1.bf16.msra.mxu0 %v634
    %1891 = vmatprep.subr.bf16.mxu0 %v631
    %1892 = vmatpush1.bf16.msra.mxu0 %v630
    %1893 = vmatprep.subr.bf16.mxu0 %v627
    %1894 = vmatpush1.bf16.msra.mxu0 %v626
    %1895 = vmatprep.subr.bf16.mxu0 %v623
    %1896 = vmatpush1.bf16.msra.mxu0 %v622
    %1897 = vmatprep.subr.bf16.mxu0 %v619
    %1898 = vmatpush1.bf16.msra.mxu0 %v618
    %1899 = vmatprep.subr.bf16.mxu0 %v615
    %1900 = vmatpush1.bf16.msra.mxu0 %v614
    %1901 = vmatprep.subr.bf16.mxu0 %v611
    %1902 = vmatpush1.bf16.msra.mxu0 %v610
    %1903 = vmatprep.subr.bf16.mxu0 0
    %1904 = vmatpush2.bf16.msra.mxu0 0
    %1905 = vmatprep.subr.bf16.mxu0 0
    %1906 = vmatpush2.bf16.msra.mxu0 0
    %1907 = vmatprep.subr.bf16.mxu0 0
    %1908 = vmatpush2.bf16.msra.mxu0 0
    %1909 = vmatprep.subr.bf16.mxu0 0
    %1910 = vmatpush2.bf16.msra.mxu0 0
    %1911 = vmatprep.subr.bf16.mxu0 0
    %1912 = vmatpush2.bf16.msra.mxu0 0
    %1913 = vmatprep.subr.bf16.mxu0 0
    %1914 = vmatpush2.bf16.msra.mxu0 0
    %1915 = vmatprep.subr.bf16.mxu0 0
    %1916 = vmatpush2.bf16.msra.mxu0 0
    %1917 = vmatprep.subr.bf16.mxu0 0
    %1918 = vmatpush2.bf16.msra.mxu0 0
    %1919 = vmatprep.mubr.bf16.mxu0 0
    %1920 = vmatmul.mubr.bf16.gmra.mxu0 %v1845
    %v1921 = vpop.f32.mrf.mxu0
    %v1922 = vadd.f32 0.0, %v1921
    %v1923 = vpop.f32.mrf.mxu0
    %v1924 = vadd.f32 0.0, %v1923
    %v1925 = vpop.f32.mrf.mxu0
    %v1926 = vpop.f32.mrf.mxu0
    %1927 = vdwg.mxu0
    %v1928 = vadd.f32 %v388, %v1881
    %v1929 = vadd.f32 %v390, %v1883
    %v1930 = vadd.f32 %v461, %v1922
    %v1931 = vadd.f32 %v463, %v1924
    %v1932 = vxor.u32 %v1928, 2147483648
    %v1933 = vxor.u32 %v1929, 2147483648
    %v1934 = vxor.u32 %v1930, 2147483648
    %v1935 = vmul.f32 %v1932, 1.442695
    %v1936 = vpow.pop %v1935
    %v1937 = vmul.f32 %v1933, 1.442695
    %v1938 = vpow.pop %v1937
    %v1939 = vmul.f32 %v1934, 1.442695
    %v1940 = vpow.pop %v1939
    %v1941 = vadd.f32 %v1936, 1.0
    %v1942 = vadd.f32 %v1938, 1.0
    %v1943 = vadd.f32 %v1940, 1.0
    %v1944 = vrcp.pop %v1941
    %v1945 = vmul.f32 1.0, %v1944
    %v1946 = vrcp.pop %v1942
    %v1947 = vmul.f32 1.0, %v1946
    %v1948 = vrcp.pop %v1943
    %v1949 = vmul.f32 1.0, %v1948
    %v1950 = vtanh.pop %v1931
    %v1951 = vmul.f32 %v1947, %v1735
    %v1952 = vmul.f32 %v1945, %v1950
    %v1953 = vadd.f32 %v1951, %v1952
    %v1954 = vtanh.pop %v1953
    %v1955 = vmul.f32 %v1949, %v1954
    %v1956 = vpack.c.bf16 %v1844, %v1844
    %1957 = vmatprep.subr.bf16.mxu0 %v1204
    %1958 = vmatpush1.bf16.msra.mxu0 %v1203
    %1959 = vmatprep.subr.bf16.mxu0 %v1200
    %1960 = vmatpush1.bf16.msra.mxu0 %v1199
    %1961 = vmatprep.subr.bf16.mxu0 %v1196
    %1962 = vmatpush1.bf16.msra.mxu0 %v1195
    %1963 = vmatprep.subr.bf16.mxu0 %v1192
    %1964 = vmatpush1.bf16.msra.mxu0 %v1191
    %1965 = vmatprep.subr.bf16.mxu0 %v1188
    %1966 = vmatpush1.bf16.msra.mxu0 %v1187
    %1967 = vmatprep.subr.bf16.mxu0 %v1184
    %1968 = vmatpush1.bf16.msra.mxu0 %v1183
    %1969 = vmatprep.subr.bf16.mxu0 %v1180
    %1970 = vmatpush1.bf16.msra.mxu0 %v1179
    %1971 = vmatprep.subr.bf16.mxu0 %v1176
    %1972 = vmatpush1.bf16.msra.mxu0 %v1175
    %1973 = vmatprep.subr.bf16.mxu0 %v1236
    %1974 = vmatpush2.bf16.msra.mxu0 %v1235
    %1975 = vmatprep.subr.bf16.mxu0 %v1232
    %1976 = vmatpush2.bf16.msra.mxu0 %v1231
    %1977 = vmatprep.subr.bf16.mxu0 %v1228
    %1978 = vmatpush2.bf16.msra.mxu0 %v1227
    %1979 = vmatprep.subr.bf16.mxu0 %v1224
    %1980 = vmatpush2.bf16.msra.mxu0 %v1223
    %1981 = vmatprep.subr.bf16.mxu0 %v1220
    %1982 = vmatpush2.bf16.msra.mxu0 %v1219
    %1983 = vmatprep.subr.bf16.mxu0 %v1216
    %1984 = vmatpush2.bf16.msra.mxu0 %v1215
    %1985 = vmatprep.subr.bf16.mxu0 %v1212
    %1986 = vmatpush2.bf16.msra.mxu0 %v1211
    %1987 = vmatprep.subr.bf16.mxu0 %v1208
    %1988 = vmatpush2.bf16.msra.mxu0 %v1207
    %1989 = vmatprep.mubr.bf16.mxu0 %v1956
    %1990 = vmatmul.mubr.bf16.gmra.mxu0 %v1845
    %v1991 = vpop.f32.mrf.mxu0
    %v1992 = vadd.f32 %v966, %v1991
    %v1993 = vpop.f32.mrf.mxu0
    %v1994 = vadd.f32 %v970, %v1993
    %v1995 = vpop.f32.mrf.mxu0
    %v1996 = vpop.f32.mrf.mxu0
    %1997 = vdwg.mxu0
    %1998 = vmatprep.subr.bf16.mxu0 %v1206
    %1999 = vmatpush1.bf16.msra.mxu0 %v1205
    %2000 = vmatprep.subr.bf16.mxu0 %v1202
    %2001 = vmatpush1.bf16.msra.mxu0 %v1201
    %2002 = vmatprep.subr.bf16.mxu0 %v1198
    %2003 = vmatpush1.bf16.msra.mxu0 %v1197
    %2004 = vmatprep.subr.bf16.mxu0 %v1194
    %2005 = vmatpush1.bf16.msra.mxu0 %v1193
    %2006 = vmatprep.subr.bf16.mxu0 %v1190
    %2007 = vmatpush1.bf16.msra.mxu0 %v1189
    %2008 = vmatprep.subr.bf16.mxu0 %v1186
    %2009 = vmatpush1.bf16.msra.mxu0 %v1185
    %2010 = vmatprep.subr.bf16.mxu0 %v1182
    %2011 = vmatpush1.bf16.msra.mxu0 %v1181
    %2012 = vmatprep.subr.bf16.mxu0 %v1178
    %2013 = vmatpush1.bf16.msra.mxu0 %v1177
    %2014 = vmatprep.subr.bf16.mxu0 %v1238
    %2015 = vmatpush2.bf16.msra.mxu0 %v1237
    %2016 = vmatprep.subr.bf16.mxu0 %v1234
    %2017 = vmatpush2.bf16.msra.mxu0 %v1233
    %2018 = vmatprep.subr.bf16.mxu0 %v1230
    %2019 = vmatpush2.bf16.msra.mxu0 %v1229
    %2020 = vmatprep.subr.bf16.mxu0 %v1226
    %2021 = vmatpush2.bf16.msra.mxu0 %v1225
    %2022 = vmatprep.subr.bf16.mxu0 %v1222
    %2023 = vmatpush2.bf16.msra.mxu0 %v1221
    %2024 = vmatprep.subr.bf16.mxu0 %v1218
    %2025 = vmatpush2.bf16.msra.mxu0 %v1217
    %2026 = vmatprep.subr.bf16.mxu0 %v1214
    %2027 = vmatpush2.bf16.msra.mxu0 %v1213
    %2028 = vmatprep.subr.bf16.mxu0 %v1210
    %2029 = vmatpush2.bf16.msra.mxu0 %v1209
    %2030 = vmatprep.mubr.bf16.mxu0 %v1956
    %2031 = vmatmul.mubr.bf16.gmra.mxu0 %v1845
    %v2032 = vpop.f32.mrf.mxu0
    %v2033 = vadd.f32 %v974, %v2032
    %v2034 = vpop.f32.mrf.mxu0
    %v2035 = vadd.f32 %v978, %v2034
    %v2036 = vpop.f32.mrf.mxu0
    %v2037 = vpop.f32.mrf.mxu0
    %2038 = vdwg.mxu0
    %v2039 = vxor.u32 %v1992, 2147483648
    %v2040 = vxor.u32 %v1994, 2147483648
    %v2041 = vxor.u32 %v2033, 2147483648
    %v2042 = vmul.f32 %v2039, 1.442695
    %v2043 = vpow.pop %v2042
    %v2044 = vmul.f32 %v2040, 1.442695
    %v2045 = vpow.pop %v2044
    %v2046 = vmul.f32 %v2041, 1.442695
    %v2047 = vpow.pop %v2046
    %v2048 = vadd.f32 %v2043, 1.0
    %v2049 = vadd.f32 %v2045, 1.0
    %v2050 = vadd.f32 %v2047, 1.0
    %v2051 = vrcp.pop %v2048
    %v2052 = vmul.f32 1.0, %v2051
    %v2053 = vrcp.pop %v2049
    %v2054 = vmul.f32 1.0, %v2053
    %v2055 = vrcp.pop %v2050
    %v2056 = vmul.f32 1.0, %v2055
    %v2057 = vtanh.pop %v2035
    %v2058 = vmul.f32 %v2054, %v1842
    %v2059 = vmul.f32 %v2052, %v2057
    %v2060 = vadd.f32 %v2058, %v2059
    %v2061 = vtanh.pop %v2060
    %v2062 = vmul.f32 %v2056, %v2061
    %v2063 = vpack.c.bf16 %v1955, %v1955
    %2064 = vmatprep.subr.bf16.mxu0 %v637
    %2065 = vmatpush1.bf16.msra.mxu0 %v636
    %2066 = vmatprep.subr.bf16.mxu0 %v633
    %2067 = vmatpush1.bf16.msra.mxu0 %v632
    %2068 = vmatprep.subr.bf16.mxu0 %v629
    %2069 = vmatpush1.bf16.msra.mxu0 %v628
    %2070 = vmatprep.subr.bf16.mxu0 %v625
    %2071 = vmatpush1.bf16.msra.mxu0 %v624
    %2072 = vmatprep.subr.bf16.mxu0 %v621
    %2073 = vmatpush1.bf16.msra.mxu0 %v620
    %2074 = vmatprep.subr.bf16.mxu0 %v617
    %2075 = vmatpush1.bf16.msra.mxu0 %v616
    %2076 = vmatprep.subr.bf16.mxu0 %v613
    %2077 = vmatpush1.bf16.msra.mxu0 %v612
    %2078 = vmatprep.subr.bf16.mxu0 %v609
    %2079 = vmatpush1.bf16.msra.mxu0 %v608
    %2080 = vmatprep.subr.bf16.mxu0 0
    %2081 = vmatpush2.bf16.msra.mxu0 0
    %2082 = vmatprep.subr.bf16.mxu0 0
    %2083 = vmatpush2.bf16.msra.mxu0 0
    %2084 = vmatprep.subr.bf16.mxu0 0
    %2085 = vmatpush2.bf16.msra.mxu0 0
    %2086 = vmatprep.subr.bf16.mxu0 0
    %2087 = vmatpush2.bf16.msra.mxu0 0
    %2088 = vmatprep.subr.bf16.mxu0 0
    %2089 = vmatpush2.bf16.msra.mxu0 0
    %2090 = vmatprep.subr.bf16.mxu0 0
    %2091 = vmatpush2.bf16.msra.mxu0 0
    %2092 = vmatprep.subr.bf16.mxu0 0
    %2093 = vmatpush2.bf16.msra.mxu0 0
    %2094 = vmatprep.subr.bf16.mxu0 0
    %2095 = vmatpush2.bf16.msra.mxu0 0
    %2096 = vmatprep.mubr.bf16.mxu0 0
    %2097 = vmatmul.mubr.bf16.gmra.mxu0 %v2063
    %v2098 = vpop.f32.mrf.mxu0
    %v2099 = vadd.f32 0.0, %v2098
    %v2100 = vpop.f32.mrf.mxu0
    %v2101 = vadd.f32 0.0, %v2100
    %v2102 = vpop.f32.mrf.mxu0
    %v2103 = vpop.f32.mrf.mxu0
    %2104 = vdwg.mxu0
    %2105 = vmatprep.subr.bf16.mxu0 %v639
    %2106 = vmatpush1.bf16.msra.mxu0 %v638
    %2107 = vmatprep.subr.bf16.mxu0 %v635
    %2108 = vmatpush1.bf16.msra.mxu0 %v634
    %2109 = vmatprep.subr.bf16.mxu0 %v631
    %2110 = vmatpush1.bf16.msra.mxu0 %v630
    %2111 = vmatprep.subr.bf16.mxu0 %v627
    %2112 = vmatpush1.bf16.msra.mxu0 %v626
    %2113 = vmatprep.subr.bf16.mxu0 %v623
    %2114 = vmatpush1.bf16.msra.mxu0 %v622
    %2115 = vmatprep.subr.bf16.mxu0 %v619
    %2116 = vmatpush1.bf16.msra.mxu0 %v618
    %2117 = vmatprep.subr.bf16.mxu0 %v615
    %2118 = vmatpush1.bf16.msra.mxu0 %v614
    %2119 = vmatprep.subr.bf16.mxu0 %v611
    %2120 = vmatpush1.bf16.msra.mxu0 %v610
    %2121 = vmatprep.subr.bf16.mxu0 0
    %2122 = vmatpush2.bf16.msra.mxu0 0
    %2123 = vmatprep.subr.bf16.mxu0 0
    %2124 = vmatpush2.bf16.msra.mxu0 0
    %2125 = vmatprep.subr.bf16.mxu0 0
    %2126 = vmatpush2.bf16.msra.mxu0 0
    %2127 = vmatprep.subr.bf16.mxu0 0
    %2128 = vmatpush2.bf16.msra.mxu0 0
    %2129 = vmatprep.subr.bf16.mxu0 0
    %2130 = vmatpush2.bf16.msra.mxu0 0
    %2131 = vmatprep.subr.bf16.mxu0 0
    %2132 = vmatpush2.bf16.msra.mxu0 0
    %2133 = vmatprep.subr.bf16.mxu0 0
    %2134 = vmatpush2.bf16.msra.mxu0 0
    %2135 = vmatprep.subr.bf16.mxu0 0
    %2136 = vmatpush2.bf16.msra.mxu0 0
    %2137 = vmatprep.mubr.bf16.mxu0 0
    %2138 = vmatmul.mubr.bf16.gmra.mxu0 %v2063
    %v2139 = vpop.f32.mrf.mxu0
    %v2140 = vadd.f32 0.0, %v2139
    %v2141 = vpop.f32.mrf.mxu0
    %v2142 = vadd.f32 0.0, %v2141
    %v2143 = vpop.f32.mrf.mxu0
    %v2144 = vpop.f32.mrf.mxu0
    %2145 = vdwg.mxu0
    %v2146 = vadd.f32 %v392, %v2099
    %v2147 = vadd.f32 %v394, %v2101
    %v2148 = vadd.f32 %v465, %v2140
    %v2149 = vadd.f32 %v467, %v2142
    %v2150 = vxor.u32 %v2146, 2147483648
    %v2151 = vxor.u32 %v2147, 2147483648
    %v2152 = vxor.u32 %v2148, 2147483648
    %v2153 = vmul.f32 %v2150, 1.442695
    %v2154 = vpow.pop %v2153
    %v2155 = vmul.f32 %v2151, 1.442695
    %v2156 = vpow.pop %v2155
    %v2157 = vmul.f32 %v2152, 1.442695
    %v2158 = vpow.pop %v2157
    %v2159 = vadd.f32 %v2154, 1.0
    %v2160 = vadd.f32 %v2156, 1.0
    %v2161 = vadd.f32 %v2158, 1.0
    %v2162 = vrcp.pop %v2159
    %v2163 = vmul.f32 1.0, %v2162
    %v2164 = vrcp.pop %v2160
    %v2165 = vmul.f32 1.0, %v2164
    %v2166 = vrcp.pop %v2161
    %v2167 = vmul.f32 1.0, %v2166
    %v2168 = vtanh.pop %v2149
    %v2169 = vmul.f32 %v2165, %v1953
    %v2170 = vmul.f32 %v2163, %v2168
    %v2171 = vadd.f32 %v2169, %v2170
    %v2172 = vtanh.pop %v2171
    %v2173 = vmul.f32 %v2167, %v2172
    %v2174 = vpack.c.bf16 %v2062, %v2062
    %2175 = vmatprep.subr.bf16.mxu0 %v1204
    %2176 = vmatpush1.bf16.msra.mxu0 %v1203
    %2177 = vmatprep.subr.bf16.mxu0 %v1200
    %2178 = vmatpush1.bf16.msra.mxu0 %v1199
    %2179 = vmatprep.subr.bf16.mxu0 %v1196
    %2180 = vmatpush1.bf16.msra.mxu0 %v1195
    %2181 = vmatprep.subr.bf16.mxu0 %v1192
    %2182 = vmatpush1.bf16.msra.mxu0 %v1191
    %2183 = vmatprep.subr.bf16.mxu0 %v1188
    %2184 = vmatpush1.bf16.msra.mxu0 %v1187
    %2185 = vmatprep.subr.bf16.mxu0 %v1184
    %2186 = vmatpush1.bf16.msra.mxu0 %v1183
    %2187 = vmatprep.subr.bf16.mxu0 %v1180
    %2188 = vmatpush1.bf16.msra.mxu0 %v1179
    %2189 = vmatprep.subr.bf16.mxu0 %v1176
    %2190 = vmatpush1.bf16.msra.mxu0 %v1175
    %2191 = vmatprep.subr.bf16.mxu0 %v1236
    %2192 = vmatpush2.bf16.msra.mxu0 %v1235
    %2193 = vmatprep.subr.bf16.mxu0 %v1232
    %2194 = vmatpush2.bf16.msra.mxu0 %v1231
    %2195 = vmatprep.subr.bf16.mxu0 %v1228
    %2196 = vmatpush2.bf16.msra.mxu0 %v1227
    %2197 = vmatprep.subr.bf16.mxu0 %v1224
    %2198 = vmatpush2.bf16.msra.mxu0 %v1223
    %2199 = vmatprep.subr.bf16.mxu0 %v1220
    %2200 = vmatpush2.bf16.msra.mxu0 %v1219
    %2201 = vmatprep.subr.bf16.mxu0 %v1216
    %2202 = vmatpush2.bf16.msra.mxu0 %v1215
    %2203 = vmatprep.subr.bf16.mxu0 %v1212
    %2204 = vmatpush2.bf16.msra.mxu0 %v1211
    %2205 = vmatprep.subr.bf16.mxu0 %v1208
    %2206 = vmatpush2.bf16.msra.mxu0 %v1207
    %2207 = vmatprep.mubr.bf16.mxu0 %v2174
    %2208 = vmatmul.mubr.bf16.gmra.mxu0 %v2063
    %v2209 = vpop.f32.mrf.mxu0
    %v2210 = vadd.f32 %v966, %v2209
    %v2211 = vpop.f32.mrf.mxu0
    %v2212 = vadd.f32 %v970, %v2211
    %v2213 = vpop.f32.mrf.mxu0
    %v2214 = vpop.f32.mrf.mxu0
    %2215 = vdwg.mxu0
    %2216 = vmatprep.subr.bf16.mxu0 %v1206
    %2217 = vmatpush1.bf16.msra.mxu0 %v1205
    %2218 = vmatprep.subr.bf16.mxu0 %v1202
    %2219 = vmatpush1.bf16.msra.mxu0 %v1201
    %2220 = vmatprep.subr.bf16.mxu0 %v1198
    %2221 = vmatpush1.bf16.msra.mxu0 %v1197
    %2222 = vmatprep.subr.bf16.mxu0 %v1194
    %2223 = vmatpush1.bf16.msra.mxu0 %v1193
    %2224 = vmatprep.subr.bf16.mxu0 %v1190
    %2225 = vmatpush1.bf16.msra.mxu0 %v1189
    %2226 = vmatprep.subr.bf16.mxu0 %v1186
    %2227 = vmatpush1.bf16.msra.mxu0 %v1185
    %2228 = vmatprep.subr.bf16.mxu0 %v1182
    %2229 = vmatpush1.bf16.msra.mxu0 %v1181
    %2230 = vmatprep.subr.bf16.mxu0 %v1178
    %2231 = vmatpush1.bf16.msra.mxu0 %v1177
    %2232 = vmatprep.subr.bf16.mxu0 %v1238
    %2233 = vmatpush2.bf16.msra.mxu0 %v1237
    %2234 = vmatprep.subr.bf16.mxu0 %v1234
    %2235 = vmatpush2.bf16.msra.mxu0 %v1233
    %2236 = vmatprep.subr.bf16.mxu0 %v1230
    %2237 = vmatpush2.bf16.msra.mxu0 %v1229
    %2238 = vmatprep.subr.bf16.mxu0 %v1226
    %2239 = vmatpush2.bf16.msra.mxu0 %v1225
    %2240 = vmatprep.subr.bf16.mxu0 %v1222
    %2241 = vmatpush2.bf16.msra.mxu0 %v1221
    %2242 = vmatprep.subr.bf16.mxu0 %v1218
    %2243 = vmatpush2.bf16.msra.mxu0 %v1217
    %2244 = vmatprep.subr.bf16.mxu0 %v1214
    %2245 = vmatpush2.bf16.msra.mxu0 %v1213
    %2246 = vmatprep.subr.bf16.mxu0 %v1210
    %2247 = vmatpush2.bf16.msra.mxu0 %v1209
    %2248 = vmatprep.mubr.bf16.mxu0 %v2174
    %2249 = vmatmul.mubr.bf16.gmra.mxu0 %v2063
    %v2250 = vpop.f32.mrf.mxu0
    %v2251 = vadd.f32 %v974, %v2250
    %v2252 = vpop.f32.mrf.mxu0
    %v2253 = vadd.f32 %v978, %v2252
    %v2254 = vpop.f32.mrf.mxu0
    %v2255 = vpop.f32.mrf.mxu0
    %2256 = vdwg.mxu0
    %v2257 = vxor.u32 %v2210, 2147483648
    %v2258 = vxor.u32 %v2212, 2147483648
    %v2259 = vxor.u32 %v2251, 2147483648
    %v2260 = vmul.f32 %v2257, 1.442695
    %v2261 = vpow.pop %v2260
    %v2262 = vmul.f32 %v2258, 1.442695
    %v2263 = vpow.pop %v2262
    %v2264 = vmul.f32 %v2259, 1.442695
    %v2265 = vpow.pop %v2264
    %v2266 = vadd.f32 %v2261, 1.0
    %v2267 = vadd.f32 %v2263, 1.0
    %v2268 = vadd.f32 %v2265, 1.0
    %v2269 = vrcp.pop %v2266
    %v2270 = vmul.f32 1.0, %v2269
    %v2271 = vrcp.pop %v2267
    %v2272 = vmul.f32 1.0, %v2271
    %v2273 = vrcp.pop %v2268
    %v2274 = vmul.f32 1.0, %v2273
    %v2275 = vtanh.pop %v2253
    %v2276 = vmul.f32 %v2272, %v2060
    %v2277 = vmul.f32 %v2270, %v2275
    %v2278 = vadd.f32 %v2276, %v2277
    %v2279 = vtanh.pop %v2278
    %v2280 = vmul.f32 %v2274, %v2279
    %v2281 = vpack.c.bf16 %v2173, %v2173
    %2282 = vmatprep.subr.bf16.mxu0 %v637
    %2283 = vmatpush1.bf16.msra.mxu0 %v636
    %2284 = vmatprep.subr.bf16.mxu0 %v633
    %2285 = vmatpush1.bf16.msra.mxu0 %v632
    %2286 = vmatprep.subr.bf16.mxu0 %v629
    %2287 = vmatpush1.bf16.msra.mxu0 %v628
    %2288 = vmatprep.subr.bf16.mxu0 %v625
    %2289 = vmatpush1.bf16.msra.mxu0 %v624
    %2290 = vmatprep.subr.bf16.mxu0 %v621
    %2291 = vmatpush1.bf16.msra.mxu0 %v620
    %2292 = vmatprep.subr.bf16.mxu0 %v617
    %2293 = vmatpush1.bf16.msra.mxu0 %v616
    %2294 = vmatprep.subr.bf16.mxu0 %v613
    %2295 = vmatpush1.bf16.msra.mxu0 %v612
    %2296 = vmatprep.subr.bf16.mxu0 %v609
    %2297 = vmatpush1.bf16.msra.mxu0 %v608
    %2298 = vmatprep.subr.bf16.mxu0 0
    %2299 = vmatpush2.bf16.msra.mxu0 0
    %2300 = vmatprep.subr.bf16.mxu0 0
    %2301 = vmatpush2.bf16.msra.mxu0 0
    %2302 = vmatprep.subr.bf16.mxu0 0
    %2303 = vmatpush2.bf16.msra.mxu0 0
    %2304 = vmatprep.subr.bf16.mxu0 0
    %2305 = vmatpush2.bf16.msra.mxu0 0
    %2306 = vmatprep.subr.bf16.mxu0 0
    %2307 = vmatpush2.bf16.msra.mxu0 0
    %2308 = vmatprep.subr.bf16.mxu0 0
    %2309 = vmatpush2.bf16.msra.mxu0 0
    %2310 = vmatprep.subr.bf16.mxu0 0
    %2311 = vmatpush2.bf16.msra.mxu0 0
    %2312 = vmatprep.subr.bf16.mxu0 0
    %2313 = vmatpush2.bf16.msra.mxu0 0
    %2314 = vmatprep.mubr.bf16.mxu0 0
    %2315 = vmatmul.mubr.bf16.gmra.mxu0 %v2281
    %v2316 = vpop.f32.mrf.mxu0
    %v2317 = vadd.f32 0.0, %v2316
    %v2318 = vpop.f32.mrf.mxu0
    %v2319 = vadd.f32 0.0, %v2318
    %v2320 = vpop.f32.mrf.mxu0
    %v2321 = vpop.f32.mrf.mxu0
    %2322 = vdwg.mxu0
    %2323 = vmatprep.subr.bf16.mxu0 %v639
    %2324 = vmatpush1.bf16.msra.mxu0 %v638
    %2325 = vmatprep.subr.bf16.mxu0 %v635
    %2326 = vmatpush1.bf16.msra.mxu0 %v634
    %2327 = vmatprep.subr.bf16.mxu0 %v631
    %2328 = vmatpush1.bf16.msra.mxu0 %v630
    %2329 = vmatprep.subr.bf16.mxu0 %v627
    %2330 = vmatpush1.bf16.msra.mxu0 %v626
    %2331 = vmatprep.subr.bf16.mxu0 %v623
    %2332 = vmatpush1.bf16.msra.mxu0 %v622
    %2333 = vmatprep.subr.bf16.mxu0 %v619
    %2334 = vmatpush1.bf16.msra.mxu0 %v618
    %2335 = vmatprep.subr.bf16.mxu0 %v615
    %2336 = vmatpush1.bf16.msra.mxu0 %v614
    %2337 = vmatprep.subr.bf16.mxu0 %v611
    %2338 = vmatpush1.bf16.msra.mxu0 %v610
    %2339 = vmatprep.subr.bf16.mxu0 0
    %2340 = vmatpush2.bf16.msra.mxu0 0
    %2341 = vmatprep.subr.bf16.mxu0 0
    %2342 = vmatpush2.bf16.msra.mxu0 0
    %2343 = vmatprep.subr.bf16.mxu0 0
    %2344 = vmatpush2.bf16.msra.mxu0 0
    %2345 = vmatprep.subr.bf16.mxu0 0
    %2346 = vmatpush2.bf16.msra.mxu0 0
    %2347 = vmatprep.subr.bf16.mxu0 0
    %2348 = vmatpush2.bf16.msra.mxu0 0
    %2349 = vmatprep.subr.bf16.mxu0 0
    %2350 = vmatpush2.bf16.msra.mxu0 0
    %2351 = vmatprep.subr.bf16.mxu0 0
    %2352 = vmatpush2.bf16.msra.mxu0 0
    %2353 = vmatprep.subr.bf16.mxu0 0
    %2354 = vmatpush2.bf16.msra.mxu0 0
    %2355 = vmatprep.mubr.bf16.mxu0 0
    %2356 = vmatmul.mubr.bf16.gmra.mxu0 %v2281
    %v2357 = vpop.f32.mrf.mxu0
    %v2358 = vadd.f32 0.0, %v2357
    %v2359 = vpop.f32.mrf.mxu0
    %v2360 = vadd.f32 0.0, %v2359
    %v2361 = vpop.f32.mrf.mxu0
    %v2362 = vpop.f32.mrf.mxu0
    %2363 = vdwg.mxu0
    %v2364 = vadd.f32 %v398, %v2317
    %v2365 = vadd.f32 %v400, %v2319
    %v2366 = vadd.f32 %v471, %v2358
    %v2367 = vadd.f32 %v473, %v2360
    %v2368 = vxor.u32 %v2364, 2147483648
    %v2369 = vxor.u32 %v2365, 2147483648
    %v2370 = vxor.u32 %v2366, 2147483648
    %v2371 = vmul.f32 %v2368, 1.442695
    %v2372 = vpow.pop %v2371
    %v2373 = vmul.f32 %v2369, 1.442695
    %v2374 = vpow.pop %v2373
    %v2375 = vmul.f32 %v2370, 1.442695
    %v2376 = vpow.pop %v2375
    %v2377 = vadd.f32 %v2372, 1.0
    %v2378 = vadd.f32 %v2374, 1.0
    %v2379 = vadd.f32 %v2376, 1.0
    %v2380 = vrcp.pop %v2377
    %v2381 = vmul.f32 1.0, %v2380
    %v2382 = vrcp.pop %v2378
    %v2383 = vmul.f32 1.0, %v2382
    %v2384 = vrcp.pop %v2379
    %v2385 = vmul.f32 1.0, %v2384
    %v2386 = vtanh.pop %v2367
    %v2387 = vmul.f32 %v2383, %v2171
    %v2388 = vmul.f32 %v2381, %v2386
    %v2389 = vadd.f32 %v2387, %v2388
    %v2390 = vtanh.pop %v2389
    %v2391 = vmul.f32 %v2385, %v2390
    %v2392 = vpack.c.bf16 %v2280, %v2280
    %2393 = vmatprep.subr.bf16.mxu0 %v1204
    %2394 = vmatpush1.bf16.msra.mxu0 %v1203
    %2395 = vmatprep.subr.bf16.mxu0 %v1200
    %2396 = vmatpush1.bf16.msra.mxu0 %v1199
    %2397 = vmatprep.subr.bf16.mxu0 %v1196
    %2398 = vmatpush1.bf16.msra.mxu0 %v1195
    %2399 = vmatprep.subr.bf16.mxu0 %v1192
    %2400 = vmatpush1.bf16.msra.mxu0 %v1191
    %2401 = vmatprep.subr.bf16.mxu0 %v1188
    %2402 = vmatpush1.bf16.msra.mxu0 %v1187
    %2403 = vmatprep.subr.bf16.mxu0 %v1184
    %2404 = vmatpush1.bf16.msra.mxu0 %v1183
    %2405 = vmatprep.subr.bf16.mxu0 %v1180
    %2406 = vmatpush1.bf16.msra.mxu0 %v1179
    %2407 = vmatprep.subr.bf16.mxu0 %v1176
    %2408 = vmatpush1.bf16.msra.mxu0 %v1175
    %2409 = vmatprep.subr.bf16.mxu0 %v1236
    %2410 = vmatpush2.bf16.msra.mxu0 %v1235
    %2411 = vmatprep.subr.bf16.mxu0 %v1232
    %2412 = vmatpush2.bf16.msra.mxu0 %v1231
    %2413 = vmatprep.subr.bf16.mxu0 %v1228
    %2414 = vmatpush2.bf16.msra.mxu0 %v1227
    %2415 = vmatprep.subr.bf16.mxu0 %v1224
    %2416 = vmatpush2.bf16.msra.mxu0 %v1223
    %2417 = vmatprep.subr.bf16.mxu0 %v1220
    %2418 = vmatpush2.bf16.msra.mxu0 %v1219
    %2419 = vmatprep.subr.bf16.mxu0 %v1216
    %2420 = vmatpush2.bf16.msra.mxu0 %v1215
    %2421 = vmatprep.subr.bf16.mxu0 %v1212
    %2422 = vmatpush2.bf16.msra.mxu0 %v1211
    %2423 = vmatprep.subr.bf16.mxu0 %v1208
    %2424 = vmatpush2.bf16.msra.mxu0 %v1207
    %2425 = vmatprep.mubr.bf16.mxu0 %v2392
    %2426 = vmatmul.mubr.bf16.gmra.mxu0 %v2281
    %v2427 = vpop.f32.mrf.mxu0
    %v2428 = vadd.f32 %v966, %v2427
    %v2429 = vpop.f32.mrf.mxu0
    %v2430 = vadd.f32 %v970, %v2429
    %v2431 = vpop.f32.mrf.mxu0
    %v2432 = vpop.f32.mrf.mxu0
    %2433 = vdwg.mxu0
    %2434 = vmatprep.subr.bf16.mxu0 %v1206
    %2435 = vmatpush1.bf16.msra.mxu0 %v1205
    %2436 = vmatprep.subr.bf16.mxu0 %v1202
    %2437 = vmatpush1.bf16.msra.mxu0 %v1201
    %2438 = vmatprep.subr.bf16.mxu0 %v1198
    %2439 = vmatpush1.bf16.msra.mxu0 %v1197
    %2440 = vmatprep.subr.bf16.mxu0 %v1194
    %2441 = vmatpush1.bf16.msra.mxu0 %v1193
    %2442 = vmatprep.subr.bf16.mxu0 %v1190
    %2443 = vmatpush1.bf16.msra.mxu0 %v1189
    %2444 = vmatprep.subr.bf16.mxu0 %v1186
    %2445 = vmatpush1.bf16.msra.mxu0 %v1185
    %2446 = vmatprep.subr.bf16.mxu0 %v1182
    %2447 = vmatpush1.bf16.msra.mxu0 %v1181
    %2448 = vmatprep.subr.bf16.mxu0 %v1178
    %2449 = vmatpush1.bf16.msra.mxu0 %v1177
    %2450 = vmatprep.subr.bf16.mxu0 %v1238
    %2451 = vmatpush2.bf16.msra.mxu0 %v1237
    %2452 = vmatprep.subr.bf16.mxu0 %v1234
    %2453 = vmatpush2.bf16.msra.mxu0 %v1233
    %2454 = vmatprep.subr.bf16.mxu0 %v1230
    %2455 = vmatpush2.bf16.msra.mxu0 %v1229
    %2456 = vmatprep.subr.bf16.mxu0 %v1226
    %2457 = vmatpush2.bf16.msra.mxu0 %v1225
    %2458 = vmatprep.subr.bf16.mxu0 %v1222
    %2459 = vmatpush2.bf16.msra.mxu0 %v1221
    %2460 = vmatprep.subr.bf16.mxu0 %v1218
    %2461 = vmatpush2.bf16.msra.mxu0 %v1217
    %2462 = vmatprep.subr.bf16.mxu0 %v1214
    %2463 = vmatpush2.bf16.msra.mxu0 %v1213
    %2464 = vmatprep.subr.bf16.mxu0 %v1210
    %2465 = vmatpush2.bf16.msra.mxu0 %v1209
    %2466 = vmatprep.mubr.bf16.mxu0 %v2392
    %2467 = vmatmul.mubr.bf16.gmra.mxu0 %v2281
    %v2468 = vpop.f32.mrf.mxu0
    %v2469 = vadd.f32 %v974, %v2468
    %v2470 = vpop.f32.mrf.mxu0
    %v2471 = vadd.f32 %v978, %v2470
    %v2472 = vpop.f32.mrf.mxu0
    %v2473 = vpop.f32.mrf.mxu0
    %2474 = vdwg.mxu0
    %v2475 = vxor.u32 %v2428, 2147483648
    %v2476 = vxor.u32 %v2430, 2147483648
    %v2477 = vxor.u32 %v2469, 2147483648
    %v2478 = vmul.f32 %v2475, 1.442695
    %v2479 = vpow.pop %v2478
    %v2480 = vmul.f32 %v2476, 1.442695
    %v2481 = vpow.pop %v2480
    %v2482 = vmul.f32 %v2477, 1.442695
    %v2483 = vpow.pop %v2482
    %v2484 = vadd.f32 %v2479, 1.0
    %v2485 = vadd.f32 %v2481, 1.0
    %v2486 = vadd.f32 %v2483, 1.0
    %v2487 = vrcp.pop %v2484
    %v2488 = vmul.f32 1.0, %v2487
    %v2489 = vrcp.pop %v2485
    %v2490 = vmul.f32 1.0, %v2489
    %v2491 = vrcp.pop %v2486
    %v2492 = vmul.f32 1.0, %v2491
    %v2493 = vtanh.pop %v2471
    %v2494 = vmul.f32 %v2490, %v2278
    %v2495 = vmul.f32 %v2488, %v2493
    %v2496 = vadd.f32 %v2494, %v2495
    %v2497 = vtanh.pop %v2496
    %v2498 = vmul.f32 %v2492, %v2497
    %v2499 = vpack.c.bf16 %v2391, %v2391
    %2500 = vmatprep.subr.bf16.mxu0 %v637
    %2501 = vmatpush1.bf16.msra.mxu0 %v636
    %2502 = vmatprep.subr.bf16.mxu0 %v633
    %2503 = vmatpush1.bf16.msra.mxu0 %v632
    %2504 = vmatprep.subr.bf16.mxu0 %v629
    %2505 = vmatpush1.bf16.msra.mxu0 %v628
    %2506 = vmatprep.subr.bf16.mxu0 %v625
    %2507 = vmatpush1.bf16.msra.mxu0 %v624
    %2508 = vmatprep.subr.bf16.mxu0 %v621
    %2509 = vmatpush1.bf16.msra.mxu0 %v620
    %2510 = vmatprep.subr.bf16.mxu0 %v617
    %2511 = vmatpush1.bf16.msra.mxu0 %v616
    %2512 = vmatprep.subr.bf16.mxu0 %v613
    %2513 = vmatpush1.bf16.msra.mxu0 %v612
    %2514 = vmatprep.subr.bf16.mxu0 %v609
    %2515 = vmatpush1.bf16.msra.mxu0 %v608
    %2516 = vmatprep.subr.bf16.mxu0 0
    %2517 = vmatpush2.bf16.msra.mxu0 0
    %2518 = vmatprep.subr.bf16.mxu0 0
    %2519 = vmatpush2.bf16.msra.mxu0 0
    %2520 = vmatprep.subr.bf16.mxu0 0
    %2521 = vmatpush2.bf16.msra.mxu0 0
    %2522 = vmatprep.subr.bf16.mxu0 0
    %2523 = vmatpush2.bf16.msra.mxu0 0
    %2524 = vmatprep.subr.bf16.mxu0 0
    %2525 = vmatpush2.bf16.msra.mxu0 0
    %2526 = vmatprep.subr.bf16.mxu0 0
    %2527 = vmatpush2.bf16.msra.mxu0 0
    %2528 = vmatprep.subr.bf16.mxu0 0
    %2529 = vmatpush2.bf16.msra.mxu0 0
    %2530 = vmatprep.subr.bf16.mxu0 0
    %2531 = vmatpush2.bf16.msra.mxu0 0
    %2532 = vmatprep.mubr.bf16.mxu0 0
    %2533 = vmatmul.mubr.bf16.gmra.mxu0 %v2499
    %v2534 = vpop.f32.mrf.mxu0
    %v2535 = vadd.f32 0.0, %v2534
    %v2536 = vpop.f32.mrf.mxu0
    %v2537 = vadd.f32 0.0, %v2536
    %v2538 = vpop.f32.mrf.mxu0
    %v2539 = vpop.f32.mrf.mxu0
    %2540 = vdwg.mxu0
    %2541 = vmatprep.subr.bf16.mxu0 %v639
    %2542 = vmatpush1.bf16.msra.mxu0 %v638
    %2543 = vmatprep.subr.bf16.mxu0 %v635
    %2544 = vmatpush1.bf16.msra.mxu0 %v634
    %2545 = vmatprep.subr.bf16.mxu0 %v631
    %2546 = vmatpush1.bf16.msra.mxu0 %v630
    %2547 = vmatprep.subr.bf16.mxu0 %v627
    %2548 = vmatpush1.bf16.msra.mxu0 %v626
    %2549 = vmatprep.subr.bf16.mxu0 %v623
    %2550 = vmatpush1.bf16.msra.mxu0 %v622
    %2551 = vmatprep.subr.bf16.mxu0 %v619
    %2552 = vmatpush1.bf16.msra.mxu0 %v618
    %2553 = vmatprep.subr.bf16.mxu0 %v615
    %2554 = vmatpush1.bf16.msra.mxu0 %v614
    %2555 = vmatprep.subr.bf16.mxu0 %v611
    %2556 = vmatpush1.bf16.msra.mxu0 %v610
    %2557 = vmatprep.subr.bf16.mxu0 0
    %2558 = vmatpush2.bf16.msra.mxu0 0
    %2559 = vmatprep.subr.bf16.mxu0 0
    %2560 = vmatpush2.bf16.msra.mxu0 0
    %2561 = vmatprep.subr.bf16.mxu0 0
    %2562 = vmatpush2.bf16.msra.mxu0 0
    %2563 = vmatprep.subr.bf16.mxu0 0
    %2564 = vmatpush2.bf16.msra.mxu0 0
    %2565 = vmatprep.subr.bf16.mxu0 0
    %2566 = vmatpush2.bf16.msra.mxu0 0
    %2567 = vmatprep.subr.bf16.mxu0 0
    %2568 = vmatpush2.bf16.msra.mxu0 0
    %2569 = vmatprep.subr.bf16.mxu0 0
    %2570 = vmatpush2.bf16.msra.mxu0 0
    %2571 = vmatprep.subr.bf16.mxu0 0
    %2572 = vmatpush2.bf16.msra.mxu0 0
    %2573 = vmatprep.mubr.bf16.mxu0 0
    %2574 = vmatmul.mubr.bf16.gmra.mxu0 %v2499
    %v2575 = vpop.f32.mrf.mxu0
    %v2576 = vadd.f32 0.0, %v2575
    %v2577 = vpop.f32.mrf.mxu0
    %v2578 = vadd.f32 0.0, %v2577
    %v2579 = vpop.f32.mrf.mxu0
    %v2580 = vpop.f32.mrf.mxu0
    %2581 = vdwg.mxu0
    %v2582 = vadd.f32 %v402, %v2535
    %v2583 = vadd.f32 %v404, %v2537
    %v2584 = vadd.f32 %v475, %v2576
    %v2585 = vadd.f32 %v477, %v2578
    %v2586 = vxor.u32 %v2582, 2147483648
    %v2587 = vxor.u32 %v2583, 2147483648
    %v2588 = vxor.u32 %v2584, 2147483648
    %v2589 = vmul.f32 %v2586, 1.442695
    %v2590 = vpow.pop %v2589
    %v2591 = vmul.f32 %v2587, 1.442695
    %v2592 = vpow.pop %v2591
    %v2593 = vmul.f32 %v2588, 1.442695
    %v2594 = vpow.pop %v2593
    %v2595 = vadd.f32 %v2590, 1.0
    %v2596 = vadd.f32 %v2592, 1.0
    %v2597 = vadd.f32 %v2594, 1.0
    %v2598 = vrcp.pop %v2595
    %v2599 = vmul.f32 1.0, %v2598
    %v2600 = vrcp.pop %v2596
    %v2601 = vmul.f32 1.0, %v2600
    %v2602 = vrcp.pop %v2597
    %v2603 = vmul.f32 1.0, %v2602
    %v2604 = vtanh.pop %v2585
    %v2605 = vmul.f32 %v2601, %v2389
    %v2606 = vmul.f32 %v2599, %v2604
    %v2607 = vadd.f32 %v2605, %v2606
    %v2608 = vtanh.pop %v2607
    %v2609 = vmul.f32 %v2603, %v2608
    %v2610 = vpack.c.bf16 %v2498, %v2498
    %2611 = vmatprep.subr.bf16.mxu0 %v1204
    %2612 = vmatpush1.bf16.msra.mxu0 %v1203
    %2613 = vmatprep.subr.bf16.mxu0 %v1200
    %2614 = vmatpush1.bf16.msra.mxu0 %v1199
    %2615 = vmatprep.subr.bf16.mxu0 %v1196
    %2616 = vmatpush1.bf16.msra.mxu0 %v1195
    %2617 = vmatprep.subr.bf16.mxu0 %v1192
    %2618 = vmatpush1.bf16.msra.mxu0 %v1191
    %2619 = vmatprep.subr.bf16.mxu0 %v1188
    %2620 = vmatpush1.bf16.msra.mxu0 %v1187
    %2621 = vmatprep.subr.bf16.mxu0 %v1184
    %2622 = vmatpush1.bf16.msra.mxu0 %v1183
    %2623 = vmatprep.subr.bf16.mxu0 %v1180
    %2624 = vmatpush1.bf16.msra.mxu0 %v1179
    %2625 = vmatprep.subr.bf16.mxu0 %v1176
    %2626 = vmatpush1.bf16.msra.mxu0 %v1175
    %2627 = vmatprep.subr.bf16.mxu0 %v1236
    %2628 = vmatpush2.bf16.msra.mxu0 %v1235
    %2629 = vmatprep.subr.bf16.mxu0 %v1232
    %2630 = vmatpush2.bf16.msra.mxu0 %v1231
    %2631 = vmatprep.subr.bf16.mxu0 %v1228
    %2632 = vmatpush2.bf16.msra.mxu0 %v1227
    %2633 = vmatprep.subr.bf16.mxu0 %v1224
    %2634 = vmatpush2.bf16.msra.mxu0 %v1223
    %2635 = vmatprep.subr.bf16.mxu0 %v1220
    %2636 = vmatpush2.bf16.msra.mxu0 %v1219
    %2637 = vmatprep.subr.bf16.mxu0 %v1216
    %2638 = vmatpush2.bf16.msra.mxu0 %v1215
    %2639 = vmatprep.subr.bf16.mxu0 %v1212
    %2640 = vmatpush2.bf16.msra.mxu0 %v1211
    %2641 = vmatprep.subr.bf16.mxu0 %v1208
    %2642 = vmatpush2.bf16.msra.mxu0 %v1207
    %2643 = vmatprep.mubr.bf16.mxu0 %v2610
    %2644 = vmatmul.mubr.bf16.gmra.mxu0 %v2499
    %v2645 = vpop.f32.mrf.mxu0
    %v2646 = vadd.f32 %v966, %v2645
    %v2647 = vpop.f32.mrf.mxu0
    %v2648 = vadd.f32 %v970, %v2647
    %v2649 = vpop.f32.mrf.mxu0
    %v2650 = vpop.f32.mrf.mxu0
    %2651 = vdwg.mxu0
    %2652 = vmatprep.subr.bf16.mxu0 %v1206
    %2653 = vmatpush1.bf16.msra.mxu0 %v1205
    %2654 = vmatprep.subr.bf16.mxu0 %v1202
    %2655 = vmatpush1.bf16.msra.mxu0 %v1201
    %2656 = vmatprep.subr.bf16.mxu0 %v1198
    %2657 = vmatpush1.bf16.msra.mxu0 %v1197
    %2658 = vmatprep.subr.bf16.mxu0 %v1194
    %2659 = vmatpush1.bf16.msra.mxu0 %v1193
    %2660 = vmatprep.subr.bf16.mxu0 %v1190
    %2661 = vmatpush1.bf16.msra.mxu0 %v1189
    %2662 = vmatprep.subr.bf16.mxu0 %v1186
    %2663 = vmatpush1.bf16.msra.mxu0 %v1185
    %2664 = vmatprep.subr.bf16.mxu0 %v1182
    %2665 = vmatpush1.bf16.msra.mxu0 %v1181
    %2666 = vmatprep.subr.bf16.mxu0 %v1178
    %2667 = vmatpush1.bf16.msra.mxu0 %v1177
    %2668 = vmatprep.subr.bf16.mxu0 %v1238
    %2669 = vmatpush2.bf16.msra.mxu0 %v1237
    %2670 = vmatprep.subr.bf16.mxu0 %v1234
    %2671 = vmatpush2.bf16.msra.mxu0 %v1233
    %2672 = vmatprep.subr.bf16.mxu0 %v1230
    %2673 = vmatpush2.bf16.msra.mxu0 %v1229
    %2674 = vmatprep.subr.bf16.mxu0 %v1226
    %2675 = vmatpush2.bf16.msra.mxu0 %v1225
    %2676 = vmatprep.subr.bf16.mxu0 %v1222
    %2677 = vmatpush2.bf16.msra.mxu0 %v1221
    %2678 = vmatprep.subr.bf16.mxu0 %v1218
    %2679 = vmatpush2.bf16.msra.mxu0 %v1217
    %2680 = vmatprep.subr.bf16.mxu0 %v1214
    %2681 = vmatpush2.bf16.msra.mxu0 %v1213
    %2682 = vmatprep.subr.bf16.mxu0 %v1210
    %2683 = vmatpush2.bf16.msra.mxu0 %v1209
    %2684 = vmatprep.mubr.bf16.mxu0 %v2610
    %2685 = vmatmul.mubr.bf16.gmra.mxu0 %v2499
    %v2686 = vpop.f32.mrf.mxu0
    %v2687 = vadd.f32 %v974, %v2686
    %v2688 = vpop.f32.mrf.mxu0
    %v2689 = vadd.f32 %v978, %v2688
    %v2690 = vpop.f32.mrf.mxu0
    %v2691 = vpop.f32.mrf.mxu0
    %2692 = vdwg.mxu0
    %v2693 = vxor.u32 %v2646, 2147483648
    %v2694 = vxor.u32 %v2648, 2147483648
    %v2695 = vxor.u32 %v2687, 2147483648
    %v2696 = vmul.f32 %v2693, 1.442695
    %v2697 = vpow.pop %v2696
    %v2698 = vmul.f32 %v2694, 1.442695
    %v2699 = vpow.pop %v2698
    %v2700 = vmul.f32 %v2695, 1.442695
    %v2701 = vpow.pop %v2700
    %v2702 = vadd.f32 %v2697, 1.0
    %v2703 = vadd.f32 %v2699, 1.0
    %v2704 = vadd.f32 %v2701, 1.0
    %v2705 = vrcp.pop %v2702
    %v2706 = vmul.f32 1.0, %v2705
    %v2707 = vrcp.pop %v2703
    %v2708 = vmul.f32 1.0, %v2707
    %v2709 = vrcp.pop %v2704
    %v2710 = vmul.f32 1.0, %v2709
    %v2711 = vtanh.pop %v2689
    %v2712 = vmul.f32 %v2708, %v2496
    %v2713 = vmul.f32 %v2706, %v2711
    %v2714 = vadd.f32 %v2712, %v2713
    %v2715 = vtanh.pop %v2714
    %v2716 = vmul.f32 %v2710, %v2715
    %v2717 = vpack.c.bf16 %v2609, %v2609
    %v2718 = vpack.c.bf16 %v2716, %v2716
    %2719 = vmatprep.subr.bf16.mxu0 %v1204
    %2720 = vmatpush1.bf16.msra.mxu0 %v1203
    %2721 = vmatprep.subr.bf16.mxu0 %v1200
    %2722 = vmatpush1.bf16.msra.mxu0 %v1199
    %2723 = vmatprep.subr.bf16.mxu0 %v1196
    %2724 = vmatpush1.bf16.msra.mxu0 %v1195
    %2725 = vmatprep.subr.bf16.mxu0 %v1192
    %2726 = vmatpush1.bf16.msra.mxu0 %v1191
    %2727 = vmatprep.subr.bf16.mxu0 %v1188
    %2728 = vmatpush1.bf16.msra.mxu0 %v1187
    %2729 = vmatprep.subr.bf16.mxu0 %v1184
    %2730 = vmatpush1.bf16.msra.mxu0 %v1183
    %2731 = vmatprep.subr.bf16.mxu0 %v1180
    %2732 = vmatpush1.bf16.msra.mxu0 %v1179
    %2733 = vmatprep.subr.bf16.mxu0 %v1176
    %2734 = vmatpush1.bf16.msra.mxu0 %v1175
    %2735 = vmatprep.subr.bf16.mxu0 %v1236
    %2736 = vmatpush2.bf16.msra.mxu0 %v1235
    %2737 = vmatprep.subr.bf16.mxu0 %v1232
    %2738 = vmatpush2.bf16.msra.mxu0 %v1231
    %2739 = vmatprep.subr.bf16.mxu0 %v1228
    %2740 = vmatpush2.bf16.msra.mxu0 %v1227
    %2741 = vmatprep.subr.bf16.mxu0 %v1224
    %2742 = vmatpush2.bf16.msra.mxu0 %v1223
    %2743 = vmatprep.subr.bf16.mxu0 %v1220
    %2744 = vmatpush2.bf16.msra.mxu0 %v1219
    %2745 = vmatprep.subr.bf16.mxu0 %v1216
    %2746 = vmatpush2.bf16.msra.mxu0 %v1215
    %2747 = vmatprep.subr.bf16.mxu0 %v1212
    %2748 = vmatpush2.bf16.msra.mxu0 %v1211
    %2749 = vmatprep.subr.bf16.mxu0 %v1208
    %2750 = vmatpush2.bf16.msra.mxu0 %v1207
    %2751 = vmatprep.mubr.bf16.mxu0 %v2718
    %2752 = vmatmul.mubr.bf16.gmra.mxu0 %v2717
    %v2753 = vpop.f32.mrf.mxu0
    %v2754 = vadd.f32 %v966, %v2753
    %v2755 = vpop.f32.mrf.mxu0
    %v2756 = vadd.f32 %v970, %v2755
    %v2757 = vpop.f32.mrf.mxu0
    %v2758 = vpop.f32.mrf.mxu0
    %2759 = vdwg.mxu0
    %2760 = vmatprep.subr.bf16.mxu0 %v1206
    %2761 = vmatpush1.bf16.msra.mxu0 %v1205
    %2762 = vmatprep.subr.bf16.mxu0 %v1202
    %2763 = vmatpush1.bf16.msra.mxu0 %v1201
    %2764 = vmatprep.subr.bf16.mxu0 %v1198
    %2765 = vmatpush1.bf16.msra.mxu0 %v1197
    %2766 = vmatprep.subr.bf16.mxu0 %v1194
    %2767 = vmatpush1.bf16.msra.mxu0 %v1193
    %2768 = vmatprep.subr.bf16.mxu0 %v1190
    %2769 = vmatpush1.bf16.msra.mxu0 %v1189
    %2770 = vmatprep.subr.bf16.mxu0 %v1186
    %2771 = vmatpush1.bf16.msra.mxu0 %v1185
    %2772 = vmatprep.subr.bf16.mxu0 %v1182
    %2773 = vmatpush1.bf16.msra.mxu0 %v1181
    %2774 = vmatprep.subr.bf16.mxu0 %v1178
    %2775 = vmatpush1.bf16.msra.mxu0 %v1177
    %2776 = vmatprep.subr.bf16.mxu0 %v1238
    %2777 = vmatpush2.bf16.msra.mxu0 %v1237
    %2778 = vmatprep.subr.bf16.mxu0 %v1234
    %2779 = vmatpush2.bf16.msra.mxu0 %v1233
    %2780 = vmatprep.subr.bf16.mxu0 %v1230
    %2781 = vmatpush2.bf16.msra.mxu0 %v1229
    %2782 = vmatprep.subr.bf16.mxu0 %v1226
    %2783 = vmatpush2.bf16.msra.mxu0 %v1225
    %2784 = vmatprep.subr.bf16.mxu0 %v1222
    %2785 = vmatpush2.bf16.msra.mxu0 %v1221
    %2786 = vmatprep.subr.bf16.mxu0 %v1218
    %2787 = vmatpush2.bf16.msra.mxu0 %v1217
    %2788 = vmatprep.subr.bf16.mxu0 %v1214
    %2789 = vmatpush2.bf16.msra.mxu0 %v1213
    %2790 = vmatprep.subr.bf16.mxu0 %v1210
    %2791 = vmatpush2.bf16.msra.mxu0 %v1209
    %2792 = vmatprep.mubr.bf16.mxu0 %v2718
    %2793 = vmatmul.mubr.bf16.gmra.mxu0 %v2717
    %v2794 = vpop.f32.mrf.mxu0
    %v2795 = vadd.f32 %v974, %v2794
    %v2796 = vpop.f32.mrf.mxu0
    %v2797 = vadd.f32 %v978, %v2796
    %v2798 = vpop.f32.mrf.mxu0
    %v2799 = vpop.f32.mrf.mxu0
    %2800 = vdwg.mxu0
    %v2801 = vxor.u32 %v2754, 2147483648
    %v2802 = vxor.u32 %v2756, 2147483648
    %v2803 = vxor.u32 %v2795, 2147483648
    %v2804 = vmul.f32 %v2801, 1.442695
    %v2805 = vpow.pop %v2804
    %v2806 = vmul.f32 %v2802, 1.442695
    %v2807 = vpow.pop %v2806
    %v2808 = vmul.f32 %v2803, 1.442695
    %v2809 = vpow.pop %v2808
    %v2810 = vadd.f32 %v2805, 1.0
    %v2811 = vadd.f32 %v2807, 1.0
    %v2812 = vadd.f32 %v2809, 1.0
    %v2813 = vrcp.pop %v2810
    %v2814 = vmul.f32 1.0, %v2813
    %v2815 = vrcp.pop %v2811
    %v2816 = vmul.f32 1.0, %v2815
    %v2817 = vrcp.pop %v2812
    %v2818 = vmul.f32 1.0, %v2817
    %v2819 = vtanh.pop %v2797
    %v2820 = vmul.f32 %v2816, %v2714
    %v2821 = vmul.f32 %v2814, %v2819
    %v2822 = vadd.f32 %v2820, %v2821
    %v2823 = vtanh.pop %v2822
    %v2824 = vmul.f32 %v2818, %v2823
    %2825 = vst [vmem:[%s6] sm:$0xff] %v1408
    %2826 = vst [vmem:[%s6 + $0x8] sm:$0xff] %v1626
    %2827 = vst [vmem:[%s6 + $0x10] sm:$0xff] %v1844
    %2828 = vst [vmem:[%s6 + $0x18] sm:$0xff] %v2062
    %2829 = vst [vmem:[%s6 + $0x20] sm:$0xff] %v2280
    %2830 = vst [vmem:[%s6 + $0x28] sm:$0xff] %v2498
    %2831 = vst [vmem:[%s6 + $0x30] sm:$0xff] %v2716
    %2832 = vst [vmem:[%s6 + $0x38] sm:$0xff] %v2824
    %2833 = vst [vmem:[%s7] sm:$0xff] %v2609
    %2834 = vst [vmem:[%s7 + $0x8] sm:$0xff] %v2824
    %2835 = vst [vmem:[%s8] sm:$0xff] %v2607
    %2836 = vst [vmem:[%s8 + $0x8] sm:$0xff] %v2822
    // Predicated region
    $region42: #{text_encoder_forward.1} parent=1 // pred_check
      _
    $region43: #{text_encoder_forward.1} parent=1 // pred_check_branch
      %2838 = sbr.rel (0) target = $region45
    $region44: #{text_encoder_forward.1} parent=1 // pred_region
      _
    $region45: #{text_encoder_forward.1} parent=1 // pred_fallthru
      _
    // Predicated region
    $region46: #{text_encoder_forward.1} parent=1 // pred_check
      _
    $region47: #{text_encoder_forward.1} parent=1 // pred_check_branch
      %2840 = sbr.rel (0) target = $region49
    $region48: #{text_encoder_forward.1} parent=1 // pred_region
      _
    $region49: #{text_encoder_forward.1} parent=1 // pred_fallthru
      _
    // Predicated region
    $region50: #{text_encoder_forward.1} parent=1 // pred_check
      _
    $region51: #{text_encoder_forward.1} parent=1 // pred_check_branch
      %2842 = sbr.rel (0) target = $region53
    $region52: #{text_encoder_forward.1} parent=1 // pred_region
      _
    $region53: #{text_encoder_forward.1} parent=1 // pred_fallthru
      _
    // Predicated region
    $region54: #{text_encoder_forward.1} parent=1 // pred_check
      _
    $region55: #{text_encoder_forward.1} parent=1 // pred_check_branch
      %2844 = sbr.rel (0) target = $region57
    $region56: #{text_encoder_forward.1} parent=1 // pred_region
      _
    $region57: #{text_encoder_forward.1} parent=1 // pred_fallthru
      _
    // Predicated region
    $region58: #{text_encoder_forward.1} parent=1 // pred_check
      _
    $region59: #{text_encoder_forward.1} parent=1 // pred_check_branch
      %2846 = sbr.rel (0) target = $region61
    $region60: #{text_encoder_forward.1} parent=1 // pred_region
      _
    $region61: #{text_encoder_forward.1} parent=1 // pred_fallthru
      _
    // Predicated region
    $region62: #{text_encoder_forward.1} parent=1 // pred_check
      _
    $region63: #{text_encoder_forward.1} parent=1 // pred_check_branch
      %2848 = sbr.rel (0) target = $region65
    $region64: #{text_encoder_forward.1} parent=1 // pred_region
      _
    $region65: #{text_encoder_forward.1} parent=1 // pred_fallthru
      _
    %2849 = vsyncpa [#allocation5], 1
    %2850 = vsyncpa [#allocation7], 1
    %2851 = vsyncpa [#allocation10], 1
  %2852 = vsyncmov [#allocation3]
  %s2853 = vpop.sfrf %2852
  %p2854 = scmp.eq.s32.totalorder %s2853, 0
  %p2855 = pneg %p2854
  %2857 = shalt.err (%p2855)

</llo_original>
